<compile_context>
chip_gen: v5e
topology: v5e:2x2
jax: 0.10.0
libtpu: 0.0.40
codegen_flags: <defaults>
</compile_context>

<pallas_src>
import jax
import jax.numpy as jnp
from jax.experimental import pallas as pl
from jax.experimental.pallas import tpu as pltpu


def _round_up(x, m):
    return ((x + m - 1) // m) * m


def _make_fused_kernel(H, W, B, Lp):
    Wp = W + 2                     # padded row stride
    HWp = H * Wp                   # lanes per activation window (2 wrap cols/row)
    Lp_img = (H + 2) * Wp          # flat padded-image length
    tap_offsets = tuple(dy * Wp + dx for dy in range(3) for dx in range(3))

    def kernel(x_ref, w1_ref, b1_ref, w2_ref, b2_ref, w3_ref, b3_ref,
               w4_ref, b4_ref, o_ref, pad_ref):
        # In-kernel reflect-pad column masks: left (col 0) / right (col W+1)
        # pad column of each image row inside an H*Wp window that starts at a
        # padded-row boundary.
        col = jax.lax.broadcasted_iota(jnp.int32, (1, HWp), 1) % Wp
        lmask = col == 0
        rmask = col == (W + 1)

        # Keep the lane tail finite zeros: the bottom-right taps over-read up
        # to 2 lanes past the padded image (their results land only in the
        # don't-care wrap columns, but keep everything finite & in-bounds).
        pad_ref[:, Lp_img:Lp] = jnp.zeros(
            (pad_ref.shape[0], Lp - Lp_img), pad_ref.dtype)

        def conv_relu(w_ref, b_ref, load_window):
            """3x3 conv + bias + ReLU as 9 tap matmuls with f32 accumulation."""
            acc = None
            for t, off in enumerate(tap_offsets):
                win = load_window(off)                      # (Cin_p, HWp)
                part = jnp.dot(w_ref[t], win,
                               preferred_element_type=jnp.float32)
                acc = part if acc is None else acc + part
            return jnp.maximum(acc + b_ref[...], 0.0)        # (Cout_p, HWp) f32

        def write_padded(act):
            """Rebuild the reflect-padded (pad=1) slab of `act` inside pad_ref.

            act[:, h*Wp + w] holds output pixel (h, w) for w < W; lanes with
            w in {W, W+1} are don't-care and only ever land on pad columns,
            which are rewritten below.
            """
            cout = act.shape[0]
            act = act.astype(pad_ref.dtype)
            # 1) interior rows 1..H, cols 1..W (shift by one padded row + col).
            pad_ref[0:cout, Wp + 1:Wp + 1 + HWp] = act
            # 2) left/right reflect columns of rows 1..H in one select pass:
            #    padded(r, 0) = padded(r, 2); padded(r, W+1) = padded(r, W-1).
            body = pad_ref[0:cout, Wp:Wp + HWp]
            from_r = pad_ref[0:cout, Wp + 2:Wp + 2 + HWp]
            from_l = pad_ref[0:cout, Wp - 2:Wp - 2 + HWp]
            pad_ref[0:cout, Wp:Wp + HWp] = jnp.where(
                lmask, from_r, jnp.where(rmask, from_l, body))
            # 3) top/bottom reflect rows: row 0 = row 2, row H+1 = row H-1.
            pad_ref[0:cout, 0:Wp] = pad_ref[0:cout, 2 * Wp:3 * Wp]
            pad_ref[0:cout, (H + 1) * Wp:(H + 2) * Wp] = (
                pad_ref[0:cout, (H - 1) * Wp:H * Wp])

        layers = ((w2_ref, b2_ref), (w3_ref, b3_ref), (w4_ref, b4_ref))
        for b in range(B):
            # Layer 1: tap windows read straight from the input block (no copy).
            act = conv_relu(w1_ref, b1_ref,
                            lambda off, b=b: x_ref[b, :, off:off + HWp])
            for w_ref, b_ref in layers:
                write_padded(act)
                cin = w_ref.shape[2]
                act = conv_relu(w_ref, b_ref,
                                lambda off, cin=cin:
                                pad_ref[0:cin, off:off + HWp])
            o_ref[b, :, :] = act.astype(o_ref.dtype)

    return kernel


def reconstruction_layer(x_nchw, params, *, compute_dtype=jnp.bfloat16,
                         images_per_step=1):
    """Fused forward pass of ReconstructionLayer.

    x_nchw: (N, 16*f, H, W) float32, NCHW like PyTorch.
    params: list of 4 (weight (Cout, Cin, 3, 3), bias (Cout,)) tuples.
    compute_dtype: MXU operand dtype (bf16 default; accumulation stays f32).
    images_per_step: images packed into one grid step (amortizes per-step
        overhead on single-TC v5e/v6e; keep grid divisible by 2 on v7x).
    Returns (N, f, H, W) float32.
    """
    N, C0, H, W = x_nchw.shape
    assert H >= 2 and W >= 2, "reflect padding (pad=1) needs H, W >= 2"
    assert len(params) == 4
    assert params[0][0].shape[1] == C0
    B = images_per_step
    assert N % B == 0, "images_per_step must divide the batch"

    Wp = W + 2
    HWp = H * Wp
    Lp_img = (H + 2) * Wp
    # >=2 lanes of zero slack (bottom-right taps over-read by up to 2 lanes),
    # rounded up to a 128-lane multiple for a lane-dense input block.
    Lp = _round_up(Lp_img + 2, 128)

    # Channel schedule, padded to sublane multiples of 8 (zero weight rows/cols
    # and zero bias -> padded channels stay exactly 0 through every ReLU).
    chans = [C0] + [w.shape[0] for (w, _) in params]
    chans_p = [_round_up(c, 8) for c in chans]

    # Reflect-pad spatially, flatten row-major (row stride Wp), zero the lane
    # tail, zero-pad channels if needed, cast to MXU operand dtype.
    x_pad = jnp.pad(x_nchw.astype(jnp.float32),
                    ((0, 0), (0, 0), (1, 1), (1, 1)), mode="reflect")
    x_flat = jnp.pad(x_pad.reshape(N, C0, Lp_img),
                     ((0, 0), (0, chans_p[0] - C0), (0, Lp - Lp_img)))
    x_flat = x_flat.astype(compute_dtype)

    operands = [x_flat]
    in_specs = [pl.BlockSpec((B, chans_p[0], Lp), lambda n: (n, 0, 0))]
    for li, (w, bias) in enumerate(params):
        cout, cin = w.shape[0], w.shape[1]
        cop, cip = chans_p[li + 1], chans_p[li]
        # (Cout, Cin, 3, 3) -> (9, Cout_p, Cin_p), tap-major: t = dy*3 + dx
        # matches tap_offsets inside the kernel.
        w_t = jnp.transpose(w, (2, 3, 0, 1)).reshape(9, cout, cin)
        w_t = jnp.pad(w_t, ((0, 0), (0, cop - cout), (0, cip - cin)))
        operands.append(w_t.astype(compute_dtype))
        in_specs.append(pl.BlockSpec((9, cop, cip), lambda n: (0, 0, 0)))
        b_p = jnp.pad(bias, (0, cop - cout)).reshape(cop, 1).astype(jnp.float32)
        operands.append(b_p)
        in_specs.append(pl.BlockSpec((cop, 1), lambda n: (0, 0)))

    c_out = params[-1][0].shape[0]
    c_out_p = chans_p[-1]
    pad_rows = max(chans_p[1:4])     # padded activations only needed for layers 2-4

    out_flat = pl.pallas_call(
        _make_fused_kernel(H, W, B, Lp),
        out_shape=jax.ShapeDtypeStruct((N, c_out_p, HWp), jnp.float32),
        grid=(N // B,),
        in_specs=in_specs,
        out_specs=pl.BlockSpec((B, c_out_p, HWp), lambda n: (n, 0, 0)),
        scratch_shapes=[
            pltpu.VMEM((pad_rows, Lp), compute_dtype),   # padded activation slab
        ],
        compiler_params=pltpu.CompilerParams(
            dimension_semantics=("parallel",)),
    )(*operands)

    # Strip padded channels and the 2 wrap columns per row:
    # (N, Cfp, H*Wp) -> (N, f, H, W).
    return out_flat.reshape(N, c_out_p, H, Wp)[:, :c_out, :, :W]


def reconstruction_layer_reference(x_nchw, params):
    """Pure-JAX reference (matches the PyTorch module numerically)."""
    out = x_nchw
    for w, b in params:
        xp = jnp.pad(out, ((0, 0), (0, 0), (1, 1), (1, 1)), mode="reflect")
        out = jax.lax.conv_general_dilated(
            xp, w, window_strides=(1, 1), padding="VALID",
            dimension_numbers=("NCHW", "OIHW", "NCHW"),
            precision=jax.lax.Precision.HIGHEST)
        out = jnp.maximum(out + b[None, :, None, None], 0.0)
    return out


def init_params(in_features, key):
    """Deterministic parameter init (PyTorch Conv2d default: kaiming-uniform-ish)."""
    chans = [16 * in_features, 8 * in_features, 4 * in_features,
             2 * in_features, in_features]
    params = []
    for i in range(4):
        cin, cout = chans[i], chans[i + 1]
        key, kw, kb = jax.random.split(key, 3)
        fan_in = cin * 3 * 3
        bound = 1.0 / (fan_in ** 0.5)
        w = jax.random.uniform(kw, (cout, cin, 3, 3), jnp.float32, -bound, bound)
        b = jax.random.uniform(kb, (cout,), jnp.float32, -bound, bound)
        params.append((w, b))
    return params


if __name__ == "__main__":
    in_features = 4
    N, H, W = 2, 16, 16
    C0 = 16 * in_features                               # 64 input channels

    key = jax.random.PRNGKey(0)
    key, kx = jax.random.split(key)
    x = jax.random.normal(kx, (N, C0, H, W), jnp.float32)   # NCHW like PyTorch
    params = init_params(in_features, key)

    fwd = jax.jit(reconstruction_layer,
                  static_argnames=("compute_dtype", "images_per_step"))

    # Default path: bf16 MXU operands, one image per grid step
    # (grid=(2,) "parallel" keeps both v7x TensorCores busy).
    out = jax.block_until_ready(fwd(x, params))
    assert out.shape == (N, in_features, H, W), out.shape
    assert out.dtype == jnp.float32
    assert bool(jnp.all(jnp.isfinite(out)))
    assert bool(jnp.all(out >= 0.0))                    # final ReLU

    ref = jax.block_until_ready(reconstruction_layer_reference(x, params))
    err_bf16 = float(jnp.max(jnp.abs(out - ref)))
    assert bool(jnp.allclose(out, ref, rtol=2e-2, atol=2e-2)), err_bf16

    # f32-operand path: tight check of indexing / reflect-padding correctness.
    out_f32 = jax.block_until_ready(fwd(x, params, compute_dtype=jnp.float32))
    err_f32 = float(jnp.max(jnp.abs(out_f32 - ref)))
    assert bool(jnp.allclose(out_f32, ref, rtol=5e-3, atol=5e-3)), err_f32

    # Image-packing path (amortizes per-grid-step overhead on v5e/v6e).
    out_b2 = jax.block_until_ready(
        fwd(x, params, compute_dtype=jnp.float32, images_per_step=2))
    err_b2 = float(jnp.max(jnp.abs(out_b2 - ref)))
    assert bool(jnp.allclose(out_b2, ref, rtol=5e-3, atol=5e-3)), err_b2

    print("KERNEL_OK")
</pallas_src>

<mosaic_0001>
module attributes {stable_mosaic.version = 11 : i64} {
  func.func @kernel(%arg0: i32, %arg1: memref<1x64x384xbf16, #tpu.memory_space<vmem>>, %arg2: memref<9x32x64xbf16, #tpu.memory_space<vmem>>, %arg3: memref<32x1xf32, #tpu.memory_space<vmem>>, %arg4: memref<9x16x32xbf16, #tpu.memory_space<vmem>>, %arg5: memref<16x1xf32, #tpu.memory_space<vmem>>, %arg6: memref<9x8x16xbf16, #tpu.memory_space<vmem>>, %arg7: memref<8x1xf32, #tpu.memory_space<vmem>>, %arg8: memref<9x8x8xbf16, #tpu.memory_space<vmem>>, %arg9: memref<8x1xf32, #tpu.memory_space<vmem>>, %arg10: memref<1x8x288xf32, #tpu.memory_space<vmem>>, %arg11: memref<32x384xbf16, #tpu.memory_space<vmem>>) attributes {dimension_semantics = [#tpu.dimension_semantics<parallel>], iteration_bounds = array<i64: 2>, scalar_prefetch = 0 : i64, scratch_operands = 1 : i64, tpu.core_type = #tpu.core_type<tc>, window_params = [{transform_indices = @transform_0, window_bounds = array<i64: 1, 64, 384>}, {pipeline_mode = #tpu.pipeline_mode<synchronous>, transform_indices = @transform_1, window_bounds = array<i64: 9, 32, 64>}, {pipeline_mode = #tpu.pipeline_mode<synchronous>, transform_indices = @transform_2, window_bounds = array<i64: 32, 1>}, {pipeline_mode = #tpu.pipeline_mode<synchronous>, transform_indices = @transform_3, window_bounds = array<i64: 9, 16, 32>}, {pipeline_mode = #tpu.pipeline_mode<synchronous>, transform_indices = @transform_4, window_bounds = array<i64: 16, 1>}, {pipeline_mode = #tpu.pipeline_mode<synchronous>, transform_indices = @transform_5, window_bounds = array<i64: 9, 8, 16>}, {pipeline_mode = #tpu.pipeline_mode<synchronous>, transform_indices = @transform_6, window_bounds = array<i64: 8, 1>}, {pipeline_mode = #tpu.pipeline_mode<synchronous>, transform_indices = @transform_7, window_bounds = array<i64: 9, 8, 8>}, {pipeline_mode = #tpu.pipeline_mode<synchronous>, transform_indices = @transform_8, window_bounds = array<i64: 8, 1>}, {transform_indices = @transform_9, window_bounds = array<i64: 1, 8, 288>}]} {
    %0 = tpu.iota {dimensions = array<i32: 1>} : vector<1x288xi32>
    %c18_i32 = arith.constant 18 : i32
    %c0_i32 = arith.constant 0 : i32
    %1 = arith.cmpi eq, %c18_i32, %c0_i32 : i32
    %c1_i32 = arith.constant 1 : i32
    %2 = arith.select %1, %c1_i32, %c18_i32 : i32
    %3 = vector.broadcast %2 : i32 to vector<1x288xi32>
    %4 = arith.remsi %0, %3 : vector<1x288xi32>
    %c0_i32_0 = arith.constant 0 : i32
    %5 = vector.broadcast %c0_i32_0 : i32 to vector<1x288xi32>
    %6 = arith.cmpi ne, %4, %5 : vector<1x288xi32>
    %c0_i32_1 = arith.constant 0 : i32
    %7 = vector.broadcast %c0_i32_1 : i32 to vector<1x288xi32>
    %8 = arith.cmpi slt, %4, %7 : vector<1x288xi32>
    %c0_i32_2 = arith.constant 0 : i32
    %9 = arith.cmpi slt, %2, %c0_i32_2 : i32
    %10 = vector.broadcast %9 : i1 to vector<1x288xi1>
    %11 = vector.broadcast %10 : vector<1x288xi1> to vector<1x288xi1>
    %12 = arith.xori %8, %11 : vector<1x288xi1>
    %13 = arith.andi %12, %6 : vector<1x288xi1>
    %14 = vector.broadcast %2 : i32 to vector<1x288xi32>
    %15 = arith.addi %4, %14 : vector<1x288xi32>
    %16 = arith.select %13, %15, %4 : vector<1x288xi1>, vector<1x288xi32>
    %c0_i32_3 = arith.constant 0 : i32
    %17 = vector.broadcast %c0_i32_3 : i32 to vector<1x288xi32>
    %18 = arith.cmpi eq, %16, %17 : vector<1x288xi32>
    %c17_i32 = arith.constant 17 : i32
    %19 = vector.broadcast %c17_i32 : i32 to vector<1x288xi32>
    %20 = arith.cmpi eq, %16, %19 : vector<1x288xi32>
    %cst = arith.constant 0.000000e+00 : bf16
    %21 = vector.broadcast %cst : bf16 to vector<32x60xbf16>
    %c0 = arith.constant 0 : index
    %c324 = arith.constant 324 : index
    %22 = vector.load %arg11[%c0, %c324] : memref<32x384xbf16, #tpu.memory_space<vmem>>, vector<32x60xbf16>
    tpu.vector_store %arg11[%c0, %c324], %21 {strides = array<i32>} : memref<32x384xbf16, #tpu.memory_space<vmem>>, vector<32x60xbf16>,
    %c0_4 = arith.constant 0 : index
    %c0_5 = arith.constant 0 : index
    %c0_6 = arith.constant 0 : index
    %23 = vector.load %arg1[%c0_4, %c0_5, %c0_6] : memref<1x64x384xbf16, #tpu.memory_space<vmem>>, vector<1x64x288xbf16>
    %24 = vector.shape_cast %23 : vector<1x64x288xbf16> to vector<64x288xbf16>
    %c0_7 = arith.constant 0 : index
    %c0_8 = arith.constant 0 : index
    %c0_9 = arith.constant 0 : index
    %25 = vector.load %arg2[%c0_7, %c0_8, %c0_9] : memref<9x32x64xbf16, #tpu.memory_space<vmem>>, vector<1x32x64xbf16>
    %26 = vector.shape_cast %25 : vector<1x32x64xbf16> to vector<32x64xbf16>
    %cst_10 = arith.constant dense<0.000000e+00> : vector<32x288xf32>
    %27 = tpu.matmul %26, %24, %cst_10 {dimension_numbers = #tpu.dot_dimension_numbers<[1], [0], [0], [1], [0, 0, 1, 1], [], []>} : vector<32x64xbf16>, vector<64x288xbf16>, vector<32x288xf32> -> vector<32x288xf32>
    %c0_11 = arith.constant 0 : index
    %c0_12 = arith.constant 0 : index
    %c1 = arith.constant 1 : index
    %28 = vector.load %arg1[%c0_11, %c0_12, %c1] : memref<1x64x384xbf16, #tpu.memory_space<vmem>>, vector<1x64x288xbf16>
    %29 = vector.shape_cast %28 : vector<1x64x288xbf16> to vector<64x288xbf16>
    %c1_13 = arith.constant 1 : index
    %c0_14 = arith.constant 0 : index
    %c0_15 = arith.constant 0 : index
    %30 = vector.load %arg2[%c1_13, %c0_14, %c0_15] : memref<9x32x64xbf16, #tpu.memory_space<vmem>>, vector<1x32x64xbf16>
    %31 = vector.shape_cast %30 : vector<1x32x64xbf16> to vector<32x64xbf16>
    %cst_16 = arith.constant dense<0.000000e+00> : vector<32x288xf32>
    %32 = tpu.matmul %31, %29, %cst_16 {dimension_numbers = #tpu.dot_dimension_numbers<[1], [0], [0], [1], [0, 0, 1, 1], [], []>} : vector<32x64xbf16>, vector<64x288xbf16>, vector<32x288xf32> -> vector<32x288xf32>
    %33 = arith.addf %27, %32 : vector<32x288xf32>
    %c0_17 = arith.constant 0 : index
    %c0_18 = arith.constant 0 : index
    %c2 = arith.constant 2 : index
    %34 = vector.load %arg1[%c0_17, %c0_18, %c2] : memref<1x64x384xbf16, #tpu.memory_space<vmem>>, vector<1x64x288xbf16>
    %35 = vector.shape_cast %34 : vector<1x64x288xbf16> to vector<64x288xbf16>
    %c2_19 = arith.constant 2 : index
    %c0_20 = arith.constant 0 : index
    %c0_21 = arith.constant 0 : index
    %36 = vector.load %arg2[%c2_19, %c0_20, %c0_21] : memref<9x32x64xbf16, #tpu.memory_space<vmem>>, vector<1x32x64xbf16>
    %37 = vector.shape_cast %36 : vector<1x32x64xbf16> to vector<32x64xbf16>
    %cst_22 = arith.constant dense<0.000000e+00> : vector<32x288xf32>
    %38 = tpu.matmul %37, %35, %cst_22 {dimension_numbers = #tpu.dot_dimension_numbers<[1], [0], [0], [1], [0, 0, 1, 1], [], []>} : vector<32x64xbf16>, vector<64x288xbf16>, vector<32x288xf32> -> vector<32x288xf32>
    %39 = arith.addf %33, %38 : vector<32x288xf32>
    %c0_23 = arith.constant 0 : index
    %c0_24 = arith.constant 0 : index
    %c18 = arith.constant 18 : index
    %40 = vector.load %arg1[%c0_23, %c0_24, %c18] : memref<1x64x384xbf16, #tpu.memory_space<vmem>>, vector<1x64x288xbf16>
    %41 = vector.shape_cast %40 : vector<1x64x288xbf16> to vector<64x288xbf16>
    %c3 = arith.constant 3 : index
    %c0_25 = arith.constant 0 : index
    %c0_26 = arith.constant 0 : index
    %42 = vector.load %arg2[%c3, %c0_25, %c0_26] : memref<9x32x64xbf16, #tpu.memory_space<vmem>>, vector<1x32x64xbf16>
    %43 = vector.shape_cast %42 : vector<1x32x64xbf16> to vector<32x64xbf16>
    %cst_27 = arith.constant dense<0.000000e+00> : vector<32x288xf32>
    %44 = tpu.matmul %43, %41, %cst_27 {dimension_numbers = #tpu.dot_dimension_numbers<[1], [0], [0], [1], [0, 0, 1, 1], [], []>} : vector<32x64xbf16>, vector<64x288xbf16>, vector<32x288xf32> -> vector<32x288xf32>
    %45 = arith.addf %39, %44 : vector<32x288xf32>
    %c0_28 = arith.constant 0 : index
    %c0_29 = arith.constant 0 : index
    %c19 = arith.constant 19 : index
    %46 = vector.load %arg1[%c0_28, %c0_29, %c19] : memref<1x64x384xbf16, #tpu.memory_space<vmem>>, vector<1x64x288xbf16>
    %47 = vector.shape_cast %46 : vector<1x64x288xbf16> to vector<64x288xbf16>
    %c4 = arith.constant 4 : index
    %c0_30 = arith.constant 0 : index
    %c0_31 = arith.constant 0 : index
    %48 = vector.load %arg2[%c4, %c0_30, %c0_31] : memref<9x32x64xbf16, #tpu.memory_space<vmem>>, vector<1x32x64xbf16>
    %49 = vector.shape_cast %48 : vector<1x32x64xbf16> to vector<32x64xbf16>
    %cst_32 = arith.constant dense<0.000000e+00> : vector<32x288xf32>
    %50 = tpu.matmul %49, %47, %cst_32 {dimension_numbers = #tpu.dot_dimension_numbers<[1], [0], [0], [1], [0, 0, 1, 1], [], []>} : vector<32x64xbf16>, vector<64x288xbf16>, vector<32x288xf32> -> vector<32x288xf32>
    %51 = arith.addf %45, %50 : vector<32x288xf32>
    %c0_33 = arith.constant 0 : index
    %c0_34 = arith.constant 0 : index
    %c20 = arith.constant 20 : index
    %52 = vector.load %arg1[%c0_33, %c0_34, %c20] : memref<1x64x384xbf16, #tpu.memory_space<vmem>>, vector<1x64x288xbf16>
    %53 = vector.shape_cast %52 : vector<1x64x288xbf16> to vector<64x288xbf16>
    %c5 = arith.constant 5 : index
    %c0_35 = arith.constant 0 : index
    %c0_36 = arith.constant 0 : index
    %54 = vector.load %arg2[%c5, %c0_35, %c0_36] : memref<9x32x64xbf16, #tpu.memory_space<vmem>>, vector<1x32x64xbf16>
    %55 = vector.shape_cast %54 : vector<1x32x64xbf16> to vector<32x64xbf16>
    %cst_37 = arith.constant dense<0.000000e+00> : vector<32x288xf32>
    %56 = tpu.matmul %55, %53, %cst_37 {dimension_numbers = #tpu.dot_dimension_numbers<[1], [0], [0], [1], [0, 0, 1, 1], [], []>} : vector<32x64xbf16>, vector<64x288xbf16>, vector<32x288xf32> -> vector<32x288xf32>
    %57 = arith.addf %51, %56 : vector<32x288xf32>
    %c0_38 = arith.constant 0 : index
    %c0_39 = arith.constant 0 : index
    %c36 = arith.constant 36 : index
    %58 = vector.load %arg1[%c0_38, %c0_39, %c36] : memref<1x64x384xbf16, #tpu.memory_space<vmem>>, vector<1x64x288xbf16>
    %59 = vector.shape_cast %58 : vector<1x64x288xbf16> to vector<64x288xbf16>
    %c6 = arith.constant 6 : index
    %c0_40 = arith.constant 0 : index
    %c0_41 = arith.constant 0 : index
    %60 = vector.load %arg2[%c6, %c0_40, %c0_41] : memref<9x32x64xbf16, #tpu.memory_space<vmem>>, vector<1x32x64xbf16>
    %61 = vector.shape_cast %60 : vector<1x32x64xbf16> to vector<32x64xbf16>
    %cst_42 = arith.constant dense<0.000000e+00> : vector<32x288xf32>
    %62 = tpu.matmul %61, %59, %cst_42 {dimension_numbers = #tpu.dot_dimension_numbers<[1], [0], [0], [1], [0, 0, 1, 1], [], []>} : vector<32x64xbf16>, vector<64x288xbf16>, vector<32x288xf32> -> vector<32x288xf32>
    %63 = arith.addf %57, %62 : vector<32x288xf32>
    %c0_43 = arith.constant 0 : index
    %c0_44 = arith.constant 0 : index
    %c37 = arith.constant 37 : index
    %64 = vector.load %arg1[%c0_43, %c0_44, %c37] : memref<1x64x384xbf16, #tpu.memory_space<vmem>>, vector<1x64x288xbf16>
    %65 = vector.shape_cast %64 : vector<1x64x288xbf16> to vector<64x288xbf16>
    %c7 = arith.constant 7 : index
    %c0_45 = arith.constant 0 : index
    %c0_46 = arith.constant 0 : index
    %66 = vector.load %arg2[%c7, %c0_45, %c0_46] : memref<9x32x64xbf16, #tpu.memory_space<vmem>>, vector<1x32x64xbf16>
    %67 = vector.shape_cast %66 : vector<1x32x64xbf16> to vector<32x64xbf16>
    %cst_47 = arith.constant dense<0.000000e+00> : vector<32x288xf32>
    %68 = tpu.matmul %67, %65, %cst_47 {dimension_numbers = #tpu.dot_dimension_numbers<[1], [0], [0], [1], [0, 0, 1, 1], [], []>} : vector<32x64xbf16>, vector<64x288xbf16>, vector<32x288xf32> -> vector<32x288xf32>
    %69 = arith.addf %63, %68 : vector<32x288xf32>
    %c0_48 = arith.constant 0 : index
    %c0_49 = arith.constant 0 : index
    %c38 = arith.constant 38 : index
    %70 = vector.load %arg1[%c0_48, %c0_49, %c38] : memref<1x64x384xbf16, #tpu.memory_space<vmem>>, vector<1x64x288xbf16>
    %71 = vector.shape_cast %70 : vector<1x64x288xbf16> to vector<64x288xbf16>
    %c8 = arith.constant 8 : index
    %c0_50 = arith.constant 0 : index
    %c0_51 = arith.constant 0 : index
    %72 = vector.load %arg2[%c8, %c0_50, %c0_51] : memref<9x32x64xbf16, #tpu.memory_space<vmem>>, vector<1x32x64xbf16>
    %73 = vector.shape_cast %72 : vector<1x32x64xbf16> to vector<32x64xbf16>
    %cst_52 = arith.constant dense<0.000000e+00> : vector<32x288xf32>
    %74 = tpu.matmul %73, %71, %cst_52 {dimension_numbers = #tpu.dot_dimension_numbers<[1], [0], [0], [1], [0, 0, 1, 1], [], []>} : vector<32x64xbf16>, vector<64x288xbf16>, vector<32x288xf32> -> vector<32x288xf32>
    %75 = arith.addf %69, %74 : vector<32x288xf32>
    %c0_53 = arith.constant 0 : index
    %c0_54 = arith.constant 0 : index
    %76 = vector.load %arg3[%c0_53, %c0_54] : memref<32x1xf32, #tpu.memory_space<vmem>>, vector<32x1xf32>
    %77 = vector.broadcast %76 : vector<32x1xf32> to vector<32x288xf32>
    %78 = arith.addf %75, %77 : vector<32x288xf32>
    %cst_55 = arith.constant 0.000000e+00 : f32
    %79 = vector.broadcast %cst_55 : f32 to vector<32x288xf32>
    %80 = arith.maximumf %78, %79 : vector<32x288xf32>
    %81 = arith.truncf %80 : vector<32x288xf32> to vector<32x288xbf16>
    %c0_56 = arith.constant 0 : index
    %c19_57 = arith.constant 19 : index
    %82 = vector.load %arg11[%c0_56, %c19_57] : memref<32x384xbf16, #tpu.memory_space<vmem>>, vector<32x288xbf16>
    tpu.vector_store %arg11[%c0_56, %c19_57], %81 {strides = array<i32>} : memref<32x384xbf16, #tpu.memory_space<vmem>>, vector<32x288xbf16>,
    %c0_58 = arith.constant 0 : index
    %c18_59 = arith.constant 18 : index
    %83 = vector.load %arg11[%c0_58, %c18_59] : memref<32x384xbf16, #tpu.memory_space<vmem>>, vector<32x288xbf16>
    %c0_60 = arith.constant 0 : index
    %c20_61 = arith.constant 20 : index
    %84 = vector.load %arg11[%c0_60, %c20_61] : memref<32x384xbf16, #tpu.memory_space<vmem>>, vector<32x288xbf16>
    %c0_62 = arith.constant 0 : index
    %c16 = arith.constant 16 : index
    %85 = vector.load %arg11[%c0_62, %c16] : memref<32x384xbf16, #tpu.memory_space<vmem>>, vector<32x288xbf16>
    %86 = vector.shape_cast %20 : vector<1x288xi1> to vector<1x288xi1>
    %87 = vector.broadcast %86 : vector<1x288xi1> to vector<32x288xi1>
    %88 = arith.select %87, %85, %83 : vector<32x288xi1>, vector<32x288xbf16>
    %89 = vector.shape_cast %18 : vector<1x288xi1> to vector<1x288xi1>
    %90 = vector.broadcast %89 : vector<1x288xi1> to vector<32x288xi1>
    %91 = arith.select %90, %84, %88 : vector<32x288xi1>, vector<32x288xbf16>
    %c0_63 = arith.constant 0 : index
    %c18_64 = arith.constant 18 : index
    %92 = vector.load %arg11[%c0_63, %c18_64] : memref<32x384xbf16, #tpu.memory_space<vmem>>, vector<32x288xbf16>
    tpu.vector_store %arg11[%c0_63, %c18_64], %91 {strides = array<i32>} : memref<32x384xbf16, #tpu.memory_space<vmem>>, vector<32x288xbf16>,
    %c0_65 = arith.constant 0 : index
    %c36_66 = arith.constant 36 : index
    %93 = vector.load %arg11[%c0_65, %c36_66] : memref<32x384xbf16, #tpu.memory_space<vmem>>, vector<32x18xbf16>
    %c0_67 = arith.constant 0 : index
    %c0_68 = arith.constant 0 : index
    %94 = vector.load %arg11[%c0_67, %c0_68] : memref<32x384xbf16, #tpu.memory_space<vmem>>, vector<32x18xbf16>
    tpu.vector_store %arg11[%c0_67, %c0_68], %93 {strides = array<i32>} : memref<32x384xbf16, #tpu.memory_space<vmem>>, vector<32x18xbf16>,
    %c0_69 = arith.constant 0 : index
    %c270 = arith.constant 270 : index
    %95 = vector.load %arg11[%c0_69, %c270] : memref<32x384xbf16, #tpu.memory_space<vmem>>, vector<32x18xbf16>
    %c0_70 = arith.constant 0 : index
    %c306 = arith.constant 306 : index
    %96 = vector.load %arg11[%c0_70, %c306] : memref<32x384xbf16, #tpu.memory_space<vmem>>, vector<32x18xbf16>
    tpu.vector_store %arg11[%c0_70, %c306], %95 {strides = array<i32>} : memref<32x384xbf16, #tpu.memory_space<vmem>>, vector<32x18xbf16>,
    %c0_71 = arith.constant 0 : index
    %c0_72 = arith.constant 0 : index
    %97 = vector.load %arg11[%c0_71, %c0_72] : memref<32x384xbf16, #tpu.memory_space<vmem>>, vector<32x288xbf16>
    %c0_73 = arith.constant 0 : index
    %c0_74 = arith.constant 0 : index
    %c0_75 = arith.constant 0 : index
    %98 = vector.load %arg4[%c0_73, %c0_74, %c0_75] : memref<9x16x32xbf16, #tpu.memory_space<vmem>>, vector<1x16x32xbf16>
    %99 = vector.shape_cast %98 : vector<1x16x32xbf16> to vector<16x32xbf16>
    %cst_76 = arith.constant dense<0.000000e+00> : vector<16x288xf32>
    %100 = tpu.matmul %99, %97, %cst_76 {dimension_numbers = #tpu.dot_dimension_numbers<[1], [0], [0], [1], [0, 0, 1, 1], [], []>} : vector<16x32xbf16>, vector<32x288xbf16>, vector<16x288xf32> -> vector<16x288xf32>
    %c0_77 = arith.constant 0 : index
    %c1_78 = arith.constant 1 : index
    %101 = vector.load %arg11[%c0_77, %c1_78] : memref<32x384xbf16, #tpu.memory_space<vmem>>, vector<32x288xbf16>
    %c1_79 = arith.constant 1 : index
    %c0_80 = arith.constant 0 : index
    %c0_81 = arith.constant 0 : index
    %102 = vector.load %arg4[%c1_79, %c0_80, %c0_81] : memref<9x16x32xbf16, #tpu.memory_space<vmem>>, vector<1x16x32xbf16>
    %103 = vector.shape_cast %102 : vector<1x16x32xbf16> to vector<16x32xbf16>
    %cst_82 = arith.constant dense<0.000000e+00> : vector<16x288xf32>
    %104 = tpu.matmul %103, %101, %cst_82 {dimension_numbers = #tpu.dot_dimension_numbers<[1], [0], [0], [1], [0, 0, 1, 1], [], []>} : vector<16x32xbf16>, vector<32x288xbf16>, vector<16x288xf32> -> vector<16x288xf32>
    %105 = arith.addf %100, %104 : vector<16x288xf32>
    %c0_83 = arith.constant 0 : index
    %c2_84 = arith.constant 2 : index
    %106 = vector.load %arg11[%c0_83, %c2_84] : memref<32x384xbf16, #tpu.memory_space<vmem>>, vector<32x288xbf16>
    %c2_85 = arith.constant 2 : index
    %c0_86 = arith.constant 0 : index
    %c0_87 = arith.constant 0 : index
    %107 = vector.load %arg4[%c2_85, %c0_86, %c0_87] : memref<9x16x32xbf16, #tpu.memory_space<vmem>>, vector<1x16x32xbf16>
    %108 = vector.shape_cast %107 : vector<1x16x32xbf16> to vector<16x32xbf16>
    %cst_88 = arith.constant dense<0.000000e+00> : vector<16x288xf32>
    %109 = tpu.matmul %108, %106, %cst_88 {dimension_numbers = #tpu.dot_dimension_numbers<[1], [0], [0], [1], [0, 0, 1, 1], [], []>} : vector<16x32xbf16>, vector<32x288xbf16>, vector<16x288xf32> -> vector<16x288xf32>
    %110 = arith.addf %105, %109 : vector<16x288xf32>
    %c0_89 = arith.constant 0 : index
    %c18_90 = arith.constant 18 : index
    %111 = vector.load %arg11[%c0_89, %c18_90] : memref<32x384xbf16, #tpu.memory_space<vmem>>, vector<32x288xbf16>
    %c3_91 = arith.constant 3 : index
    %c0_92 = arith.constant 0 : index
    %c0_93 = arith.constant 0 : index
    %112 = vector.load %arg4[%c3_91, %c0_92, %c0_93] : memref<9x16x32xbf16, #tpu.memory_space<vmem>>, vector<1x16x32xbf16>
    %113 = vector.shape_cast %112 : vector<1x16x32xbf16> to vector<16x32xbf16>
    %cst_94 = arith.constant dense<0.000000e+00> : vector<16x288xf32>
    %114 = tpu.matmul %113, %111, %cst_94 {dimension_numbers = #tpu.dot_dimension_numbers<[1], [0], [0], [1], [0, 0, 1, 1], [], []>} : vector<16x32xbf16>, vector<32x288xbf16>, vector<16x288xf32> -> vector<16x288xf32>
    %115 = arith.addf %110, %114 : vector<16x288xf32>
    %c0_95 = arith.constant 0 : index
    %c19_96 = arith.constant 19 : index
    %116 = vector.load %arg11[%c0_95, %c19_96] : memref<32x384xbf16, #tpu.memory_space<vmem>>, vector<32x288xbf16>
    %c4_97 = arith.constant 4 : index
    %c0_98 = arith.constant 0 : index
    %c0_99 = arith.constant 0 : index
    %117 = vector.load %arg4[%c4_97, %c0_98, %c0_99] : memref<9x16x32xbf16, #tpu.memory_space<vmem>>, vector<1x16x32xbf16>
    %118 = vector.shape_cast %117 : vector<1x16x32xbf16> to vector<16x32xbf16>
    %cst_100 = arith.constant dense<0.000000e+00> : vector<16x288xf32>
    %119 = tpu.matmul %118, %116, %cst_100 {dimension_numbers = #tpu.dot_dimension_numbers<[1], [0], [0], [1], [0, 0, 1, 1], [], []>} : vector<16x32xbf16>, vector<32x288xbf16>, vector<16x288xf32> -> vector<16x288xf32>
    %120 = arith.addf %115, %119 : vector<16x288xf32>
    %c0_101 = arith.constant 0 : index
    %c20_102 = arith.constant 20 : index
    %121 = vector.load %arg11[%c0_101, %c20_102] : memref<32x384xbf16, #tpu.memory_space<vmem>>, vector<32x288xbf16>
    %c5_103 = arith.constant 5 : index
    %c0_104 = arith.constant 0 : index
    %c0_105 = arith.constant 0 : index
    %122 = vector.load %arg4[%c5_103, %c0_104, %c0_105] : memref<9x16x32xbf16, #tpu.memory_space<vmem>>, vector<1x16x32xbf16>
    %123 = vector.shape_cast %122 : vector<1x16x32xbf16> to vector<16x32xbf16>
    %cst_106 = arith.constant dense<0.000000e+00> : vector<16x288xf32>
    %124 = tpu.matmul %123, %121, %cst_106 {dimension_numbers = #tpu.dot_dimension_numbers<[1], [0], [0], [1], [0, 0, 1, 1], [], []>} : vector<16x32xbf16>, vector<32x288xbf16>, vector<16x288xf32> -> vector<16x288xf32>
    %125 = arith.addf %120, %124 : vector<16x288xf32>
    %c0_107 = arith.constant 0 : index
    %c36_108 = arith.constant 36 : index
    %126 = vector.load %arg11[%c0_107, %c36_108] : memref<32x384xbf16, #tpu.memory_space<vmem>>, vector<32x288xbf16>
    %c6_109 = arith.constant 6 : index
    %c0_110 = arith.constant 0 : index
    %c0_111 = arith.constant 0 : index
    %127 = vector.load %arg4[%c6_109, %c0_110, %c0_111] : memref<9x16x32xbf16, #tpu.memory_space<vmem>>, vector<1x16x32xbf16>
    %128 = vector.shape_cast %127 : vector<1x16x32xbf16> to vector<16x32xbf16>
    %cst_112 = arith.constant dense<0.000000e+00> : vector<16x288xf32>
    %129 = tpu.matmul %128, %126, %cst_112 {dimension_numbers = #tpu.dot_dimension_numbers<[1], [0], [0], [1], [0, 0, 1, 1], [], []>} : vector<16x32xbf16>, vector<32x288xbf16>, vector<16x288xf32> -> vector<16x288xf32>
    %130 = arith.addf %125, %129 : vector<16x288xf32>
    %c0_113 = arith.constant 0 : index
    %c37_114 = arith.constant 37 : index
    %131 = vector.load %arg11[%c0_113, %c37_114] : memref<32x384xbf16, #tpu.memory_space<vmem>>, vector<32x288xbf16>
    %c7_115 = arith.constant 7 : index
    %c0_116 = arith.constant 0 : index
    %c0_117 = arith.constant 0 : index
    %132 = vector.load %arg4[%c7_115, %c0_116, %c0_117] : memref<9x16x32xbf16, #tpu.memory_space<vmem>>, vector<1x16x32xbf16>
    %133 = vector.shape_cast %132 : vector<1x16x32xbf16> to vector<16x32xbf16>
    %cst_118 = arith.constant dense<0.000000e+00> : vector<16x288xf32>
    %134 = tpu.matmul %133, %131, %cst_118 {dimension_numbers = #tpu.dot_dimension_numbers<[1], [0], [0], [1], [0, 0, 1, 1], [], []>} : vector<16x32xbf16>, vector<32x288xbf16>, vector<16x288xf32> -> vector<16x288xf32>
    %135 = arith.addf %130, %134 : vector<16x288xf32>
    %c0_119 = arith.constant 0 : index
    %c38_120 = arith.constant 38 : index
    %136 = vector.load %arg11[%c0_119, %c38_120] : memref<32x384xbf16, #tpu.memory_space<vmem>>, vector<32x288xbf16>
    %c8_121 = arith.constant 8 : index
    %c0_122 = arith.constant 0 : index
    %c0_123 = arith.constant 0 : index
    %137 = vector.load %arg4[%c8_121, %c0_122, %c0_123] : memref<9x16x32xbf16, #tpu.memory_space<vmem>>, vector<1x16x32xbf16>
    %138 = vector.shape_cast %137 : vector<1x16x32xbf16> to vector<16x32xbf16>
    %cst_124 = arith.constant dense<0.000000e+00> : vector<16x288xf32>
    %139 = tpu.matmul %138, %136, %cst_124 {dimension_numbers = #tpu.dot_dimension_numbers<[1], [0], [0], [1], [0, 0, 1, 1], [], []>} : vector<16x32xbf16>, vector<32x288xbf16>, vector<16x288xf32> -> vector<16x288xf32>
    %140 = arith.addf %135, %139 : vector<16x288xf32>
    %c0_125 = arith.constant 0 : index
    %c0_126 = arith.constant 0 : index
    %141 = vector.load %arg5[%c0_125, %c0_126] : memref<16x1xf32, #tpu.memory_space<vmem>>, vector<16x1xf32>
    %142 = vector.broadcast %141 : vector<16x1xf32> to vector<16x288xf32>
    %143 = arith.addf %140, %142 : vector<16x288xf32>
    %cst_127 = arith.constant 0.000000e+00 : f32
    %144 = vector.broadcast %cst_127 : f32 to vector<16x288xf32>
    %145 = arith.maximumf %143, %144 : vector<16x288xf32>
    %146 = arith.truncf %145 : vector<16x288xf32> to vector<16x288xbf16>
    %c0_128 = arith.constant 0 : index
    %c19_129 = arith.constant 19 : index
    %147 = vector.load %arg11[%c0_128, %c19_129] : memref<32x384xbf16, #tpu.memory_space<vmem>>, vector<16x288xbf16>
    tpu.vector_store %arg11[%c0_128, %c19_129], %146 {strides = array<i32>} : memref<32x384xbf16, #tpu.memory_space<vmem>>, vector<16x288xbf16>,
    %c0_130 = arith.constant 0 : index
    %c18_131 = arith.constant 18 : index
    %148 = vector.load %arg11[%c0_130, %c18_131] : memref<32x384xbf16, #tpu.memory_space<vmem>>, vector<16x288xbf16>
    %c0_132 = arith.constant 0 : index
    %c20_133 = arith.constant 20 : index
    %149 = vector.load %arg11[%c0_132, %c20_133] : memref<32x384xbf16, #tpu.memory_space<vmem>>, vector<16x288xbf16>
    %c0_134 = arith.constant 0 : index
    %c16_135 = arith.constant 16 : index
    %150 = vector.load %arg11[%c0_134, %c16_135] : memref<32x384xbf16, #tpu.memory_space<vmem>>, vector<16x288xbf16>
    %151 = vector.shape_cast %20 : vector<1x288xi1> to vector<1x288xi1>
    %152 = vector.broadcast %151 : vector<1x288xi1> to vector<16x288xi1>
    %153 = arith.select %152, %150, %148 : vector<16x288xi1>, vector<16x288xbf16>
    %154 = vector.shape_cast %18 : vector<1x288xi1> to vector<1x288xi1>
    %155 = vector.broadcast %154 : vector<1x288xi1> to vector<16x288xi1>
    %156 = arith.select %155, %149, %153 : vector<16x288xi1>, vector<16x288xbf16>
    %c0_136 = arith.constant 0 : index
    %c18_137 = arith.constant 18 : index
    %157 = vector.load %arg11[%c0_136, %c18_137] : memref<32x384xbf16, #tpu.memory_space<vmem>>, vector<16x288xbf16>
    tpu.vector_store %arg11[%c0_136, %c18_137], %156 {strides = array<i32>} : memref<32x384xbf16, #tpu.memory_space<vmem>>, vector<16x288xbf16>,
    %c0_138 = arith.constant 0 : index
    %c36_139 = arith.constant 36 : index
    %158 = vector.load %arg11[%c0_138, %c36_139] : memref<32x384xbf16, #tpu.memory_space<vmem>>, vector<16x18xbf16>
    %c0_140 = arith.constant 0 : index
    %c0_141 = arith.constant 0 : index
    %159 = vector.load %arg11[%c0_140, %c0_141] : memref<32x384xbf16, #tpu.memory_space<vmem>>, vector<16x18xbf16>
    tpu.vector_store %arg11[%c0_140, %c0_141], %158 {strides = array<i32>} : memref<32x384xbf16, #tpu.memory_space<vmem>>, vector<16x18xbf16>,
    %c0_142 = arith.constant 0 : index
    %c270_143 = arith.constant 270 : index
    %160 = vector.load %arg11[%c0_142, %c270_143] : memref<32x384xbf16, #tpu.memory_space<vmem>>, vector<16x18xbf16>
    %c0_144 = arith.constant 0 : index
    %c306_145 = arith.constant 306 : index
    %161 = vector.load %arg11[%c0_144, %c306_145] : memref<32x384xbf16, #tpu.memory_space<vmem>>, vector<16x18xbf16>
    tpu.vector_store %arg11[%c0_144, %c306_145], %160 {strides = array<i32>} : memref<32x384xbf16, #tpu.memory_space<vmem>>, vector<16x18xbf16>,
    %c0_146 = arith.constant 0 : index
    %c0_147 = arith.constant 0 : index
    %162 = vector.load %arg11[%c0_146, %c0_147] : memref<32x384xbf16, #tpu.memory_space<vmem>>, vector<16x288xbf16>
    %c0_148 = arith.constant 0 : index
    %c0_149 = arith.constant 0 : index
    %c0_150 = arith.constant 0 : index
    %163 = vector.load %arg6[%c0_148, %c0_149, %c0_150] : memref<9x8x16xbf16, #tpu.memory_space<vmem>>, vector<1x8x16xbf16>
    %164 = vector.shape_cast %163 : vector<1x8x16xbf16> to vector<8x16xbf16>
    %cst_151 = arith.constant dense<0.000000e+00> : vector<8x288xf32>
    %165 = tpu.matmul %164, %162, %cst_151 {dimension_numbers = #tpu.dot_dimension_numbers<[1], [0], [0], [1], [0, 0, 1, 1], [], []>} : vector<8x16xbf16>, vector<16x288xbf16>, vector<8x288xf32> -> vector<8x288xf32>
    %c0_152 = arith.constant 0 : index
    %c1_153 = arith.constant 1 : index
    %166 = vector.load %arg11[%c0_152, %c1_153] : memref<32x384xbf16, #tpu.memory_space<vmem>>, vector<16x288xbf16>
    %c1_154 = arith.constant 1 : index
    %c0_155 = arith.constant 0 : index
    %c0_156 = arith.constant 0 : index
    %167 = vector.load %arg6[%c1_154, %c0_155, %c0_156] : memref<9x8x16xbf16, #tpu.memory_space<vmem>>, vector<1x8x16xbf16>
    %168 = vector.shape_cast %167 : vector<1x8x16xbf16> to vector<8x16xbf16>
    %cst_157 = arith.constant dense<0.000000e+00> : vector<8x288xf32>
    %169 = tpu.matmul %168, %166, %cst_157 {dimension_numbers = #tpu.dot_dimension_numbers<[1], [0], [0], [1], [0, 0, 1, 1], [], []>} : vector<8x16xbf16>, vector<16x288xbf16>, vector<8x288xf32> -> vector<8x288xf32>
    %170 = arith.addf %165, %169 : vector<8x288xf32>
    %c0_158 = arith.constant 0 : index
    %c2_159 = arith.constant 2 : index
    %171 = vector.load %arg11[%c0_158, %c2_159] : memref<32x384xbf16, #tpu.memory_space<vmem>>, vector<16x288xbf16>
    %c2_160 = arith.constant 2 : index
    %c0_161 = arith.constant 0 : index
    %c0_162 = arith.constant 0 : index
    %172 = vector.load %arg6[%c2_160, %c0_161, %c0_162] : memref<9x8x16xbf16, #tpu.memory_space<vmem>>, vector<1x8x16xbf16>
    %173 = vector.shape_cast %172 : vector<1x8x16xbf16> to vector<8x16xbf16>
    %cst_163 = arith.constant dense<0.000000e+00> : vector<8x288xf32>
    %174 = tpu.matmul %173, %171, %cst_163 {dimension_numbers = #tpu.dot_dimension_numbers<[1], [0], [0], [1], [0, 0, 1, 1], [], []>} : vector<8x16xbf16>, vector<16x288xbf16>, vector<8x288xf32> -> vector<8x288xf32>
    %175 = arith.addf %170, %174 : vector<8x288xf32>
    %c0_164 = arith.constant 0 : index
    %c18_165 = arith.constant 18 : index
    %176 = vector.load %arg11[%c0_164, %c18_165] : memref<32x384xbf16, #tpu.memory_space<vmem>>, vector<16x288xbf16>
    %c3_166 = arith.constant 3 : index
    %c0_167 = arith.constant 0 : index
    %c0_168 = arith.constant 0 : index
    %177 = vector.load %arg6[%c3_166, %c0_167, %c0_168] : memref<9x8x16xbf16, #tpu.memory_space<vmem>>, vector<1x8x16xbf16>
    %178 = vector.shape_cast %177 : vector<1x8x16xbf16> to vector<8x16xbf16>
    %cst_169 = arith.constant dense<0.000000e+00> : vector<8x288xf32>
    %179 = tpu.matmul %178, %176, %cst_169 {dimension_numbers = #tpu.dot_dimension_numbers<[1], [0], [0], [1], [0, 0, 1, 1], [], []>} : vector<8x16xbf16>, vector<16x288xbf16>, vector<8x288xf32> -> vector<8x288xf32>
    %180 = arith.addf %175, %179 : vector<8x288xf32>
    %c0_170 = arith.constant 0 : index
    %c19_171 = arith.constant 19 : index
    %181 = vector.load %arg11[%c0_170, %c19_171] : memref<32x384xbf16, #tpu.memory_space<vmem>>, vector<16x288xbf16>
    %c4_172 = arith.constant 4 : index
    %c0_173 = arith.constant 0 : index
    %c0_174 = arith.constant 0 : index
    %182 = vector.load %arg6[%c4_172, %c0_173, %c0_174] : memref<9x8x16xbf16, #tpu.memory_space<vmem>>, vector<1x8x16xbf16>
    %183 = vector.shape_cast %182 : vector<1x8x16xbf16> to vector<8x16xbf16>
    %cst_175 = arith.constant dense<0.000000e+00> : vector<8x288xf32>
    %184 = tpu.matmul %183, %181, %cst_175 {dimension_numbers = #tpu.dot_dimension_numbers<[1], [0], [0], [1], [0, 0, 1, 1], [], []>} : vector<8x16xbf16>, vector<16x288xbf16>, vector<8x288xf32> -> vector<8x288xf32>
    %185 = arith.addf %180, %184 : vector<8x288xf32>
    %c0_176 = arith.constant 0 : index
    %c20_177 = arith.constant 20 : index
    %186 = vector.load %arg11[%c0_176, %c20_177] : memref<32x384xbf16, #tpu.memory_space<vmem>>, vector<16x288xbf16>
    %c5_178 = arith.constant 5 : index
    %c0_179 = arith.constant 0 : index
    %c0_180 = arith.constant 0 : index
    %187 = vector.load %arg6[%c5_178, %c0_179, %c0_180] : memref<9x8x16xbf16, #tpu.memory_space<vmem>>, vector<1x8x16xbf16>
    %188 = vector.shape_cast %187 : vector<1x8x16xbf16> to vector<8x16xbf16>
    %cst_181 = arith.constant dense<0.000000e+00> : vector<8x288xf32>
    %189 = tpu.matmul %188, %186, %cst_181 {dimension_numbers = #tpu.dot_dimension_numbers<[1], [0], [0], [1], [0, 0, 1, 1], [], []>} : vector<8x16xbf16>, vector<16x288xbf16>, vector<8x288xf32> -> vector<8x288xf32>
    %190 = arith.addf %185, %189 : vector<8x288xf32>
    %c0_182 = arith.constant 0 : index
    %c36_183 = arith.constant 36 : index
    %191 = vector.load %arg11[%c0_182, %c36_183] : memref<32x384xbf16, #tpu.memory_space<vmem>>, vector<16x288xbf16>
    %c6_184 = arith.constant 6 : index
    %c0_185 = arith.constant 0 : index
    %c0_186 = arith.constant 0 : index
    %192 = vector.load %arg6[%c6_184, %c0_185, %c0_186] : memref<9x8x16xbf16, #tpu.memory_space<vmem>>, vector<1x8x16xbf16>
    %193 = vector.shape_cast %192 : vector<1x8x16xbf16> to vector<8x16xbf16>
    %cst_187 = arith.constant dense<0.000000e+00> : vector<8x288xf32>
    %194 = tpu.matmul %193, %191, %cst_187 {dimension_numbers = #tpu.dot_dimension_numbers<[1], [0], [0], [1], [0, 0, 1, 1], [], []>} : vector<8x16xbf16>, vector<16x288xbf16>, vector<8x288xf32> -> vector<8x288xf32>
    %195 = arith.addf %190, %194 : vector<8x288xf32>
    %c0_188 = arith.constant 0 : index
    %c37_189 = arith.constant 37 : index
    %196 = vector.load %arg11[%c0_188, %c37_189] : memref<32x384xbf16, #tpu.memory_space<vmem>>, vector<16x288xbf16>
    %c7_190 = arith.constant 7 : index
    %c0_191 = arith.constant 0 : index
    %c0_192 = arith.constant 0 : index
    %197 = vector.load %arg6[%c7_190, %c0_191, %c0_192] : memref<9x8x16xbf16, #tpu.memory_space<vmem>>, vector<1x8x16xbf16>
    %198 = vector.shape_cast %197 : vector<1x8x16xbf16> to vector<8x16xbf16>
    %cst_193 = arith.constant dense<0.000000e+00> : vector<8x288xf32>
    %199 = tpu.matmul %198, %196, %cst_193 {dimension_numbers = #tpu.dot_dimension_numbers<[1], [0], [0], [1], [0, 0, 1, 1], [], []>} : vector<8x16xbf16>, vector<16x288xbf16>, vector<8x288xf32> -> vector<8x288xf32>
    %200 = arith.addf %195, %199 : vector<8x288xf32>
    %c0_194 = arith.constant 0 : index
    %c38_195 = arith.constant 38 : index
    %201 = vector.load %arg11[%c0_194, %c38_195] : memref<32x384xbf16, #tpu.memory_space<vmem>>, vector<16x288xbf16>
    %c8_196 = arith.constant 8 : index
    %c0_197 = arith.constant 0 : index
    %c0_198 = arith.constant 0 : index
    %202 = vector.load %arg6[%c8_196, %c0_197, %c0_198] : memref<9x8x16xbf16, #tpu.memory_space<vmem>>, vector<1x8x16xbf16>
    %203 = vector.shape_cast %202 : vector<1x8x16xbf16> to vector<8x16xbf16>
    %cst_199 = arith.constant dense<0.000000e+00> : vector<8x288xf32>
    %204 = tpu.matmul %203, %201, %cst_199 {dimension_numbers = #tpu.dot_dimension_numbers<[1], [0], [0], [1], [0, 0, 1, 1], [], []>} : vector<8x16xbf16>, vector<16x288xbf16>, vector<8x288xf32> -> vector<8x288xf32>
    %205 = arith.addf %200, %204 : vector<8x288xf32>
    %c0_200 = arith.constant 0 : index
    %c0_201 = arith.constant 0 : index
    %206 = vector.load %arg7[%c0_200, %c0_201] : memref<8x1xf32, #tpu.memory_space<vmem>>, vector<8x1xf32>
    %207 = vector.broadcast %206 : vector<8x1xf32> to vector<8x288xf32>
    %208 = arith.addf %205, %207 : vector<8x288xf32>
    %cst_202 = arith.constant 0.000000e+00 : f32
    %209 = vector.broadcast %cst_202 : f32 to vector<8x288xf32>
    %210 = arith.maximumf %208, %209 : vector<8x288xf32>
    %211 = arith.truncf %210 : vector<8x288xf32> to vector<8x288xbf16>
    %c0_203 = arith.constant 0 : index
    %c19_204 = arith.constant 19 : index
    %212 = vector.load %arg11[%c0_203, %c19_204] : memref<32x384xbf16, #tpu.memory_space<vmem>>, vector<8x288xbf16>
    tpu.vector_store %arg11[%c0_203, %c19_204], %211 {strides = array<i32>} : memref<32x384xbf16, #tpu.memory_space<vmem>>, vector<8x288xbf16>,
    %c0_205 = arith.constant 0 : index
    %c18_206 = arith.constant 18 : index
    %213 = vector.load %arg11[%c0_205, %c18_206] : memref<32x384xbf16, #tpu.memory_space<vmem>>, vector<8x288xbf16>
    %c0_207 = arith.constant 0 : index
    %c20_208 = arith.constant 20 : index
    %214 = vector.load %arg11[%c0_207, %c20_208] : memref<32x384xbf16, #tpu.memory_space<vmem>>, vector<8x288xbf16>
    %c0_209 = arith.constant 0 : index
    %c16_210 = arith.constant 16 : index
    %215 = vector.load %arg11[%c0_209, %c16_210] : memref<32x384xbf16, #tpu.memory_space<vmem>>, vector<8x288xbf16>
    %216 = vector.shape_cast %20 : vector<1x288xi1> to vector<1x288xi1>
    %217 = vector.broadcast %216 : vector<1x288xi1> to vector<8x288xi1>
    %218 = arith.select %217, %215, %213 : vector<8x288xi1>, vector<8x288xbf16>
    %219 = vector.shape_cast %18 : vector<1x288xi1> to vector<1x288xi1>
    %220 = vector.broadcast %219 : vector<1x288xi1> to vector<8x288xi1>
    %221 = arith.select %220, %214, %218 : vector<8x288xi1>, vector<8x288xbf16>
    %c0_211 = arith.constant 0 : index
    %c18_212 = arith.constant 18 : index
    %222 = vector.load %arg11[%c0_211, %c18_212] : memref<32x384xbf16, #tpu.memory_space<vmem>>, vector<8x288xbf16>
    tpu.vector_store %arg11[%c0_211, %c18_212], %221 {strides = array<i32>} : memref<32x384xbf16, #tpu.memory_space<vmem>>, vector<8x288xbf16>,
    %c0_213 = arith.constant 0 : index
    %c36_214 = arith.constant 36 : index
    %223 = vector.load %arg11[%c0_213, %c36_214] : memref<32x384xbf16, #tpu.memory_space<vmem>>, vector<8x18xbf16>
    %c0_215 = arith.constant 0 : index
    %c0_216 = arith.constant 0 : index
    %224 = vector.load %arg11[%c0_215, %c0_216] : memref<32x384xbf16, #tpu.memory_space<vmem>>, vector<8x18xbf16>
    tpu.vector_store %arg11[%c0_215, %c0_216], %223 {strides = array<i32>} : memref<32x384xbf16, #tpu.memory_space<vmem>>, vector<8x18xbf16>,
    %c0_217 = arith.constant 0 : index
    %c270_218 = arith.constant 270 : index
    %225 = vector.load %arg11[%c0_217, %c270_218] : memref<32x384xbf16, #tpu.memory_space<vmem>>, vector<8x18xbf16>
    %c0_219 = arith.constant 0 : index
    %c306_220 = arith.constant 306 : index
    %226 = vector.load %arg11[%c0_219, %c306_220] : memref<32x384xbf16, #tpu.memory_space<vmem>>, vector<8x18xbf16>
    tpu.vector_store %arg11[%c0_219, %c306_220], %225 {strides = array<i32>} : memref<32x384xbf16, #tpu.memory_space<vmem>>, vector<8x18xbf16>,
    %c0_221 = arith.constant 0 : index
    %c0_222 = arith.constant 0 : index
    %227 = vector.load %arg11[%c0_221, %c0_222] : memref<32x384xbf16, #tpu.memory_space<vmem>>, vector<8x288xbf16>
    %c0_223 = arith.constant 0 : index
    %c0_224 = arith.constant 0 : index
    %c0_225 = arith.constant 0 : index
    %228 = vector.load %arg8[%c0_223, %c0_224, %c0_225] : memref<9x8x8xbf16, #tpu.memory_space<vmem>>, vector<1x8x8xbf16>
    %229 = vector.shape_cast %228 : vector<1x8x8xbf16> to vector<8x8xbf16>
    %cst_226 = arith.constant dense<0.000000e+00> : vector<8x288xf32>
    %230 = tpu.matmul %229, %227, %cst_226 {dimension_numbers = #tpu.dot_dimension_numbers<[1], [0], [0], [1], [0, 0, 1, 1], [], []>} : vector<8x8xbf16>, vector<8x288xbf16>, vector<8x288xf32> -> vector<8x288xf32>
    %c0_227 = arith.constant 0 : index
    %c1_228 = arith.constant 1 : index
    %231 = vector.load %arg11[%c0_227, %c1_228] : memref<32x384xbf16, #tpu.memory_space<vmem>>, vector<8x288xbf16>
    %c1_229 = arith.constant 1 : index
    %c0_230 = arith.constant 0 : index
    %c0_231 = arith.constant 0 : index
    %232 = vector.load %arg8[%c1_229, %c0_230, %c0_231] : memref<9x8x8xbf16, #tpu.memory_space<vmem>>, vector<1x8x8xbf16>
    %233 = vector.shape_cast %232 : vector<1x8x8xbf16> to vector<8x8xbf16>
    %cst_232 = arith.constant dense<0.000000e+00> : vector<8x288xf32>
    %234 = tpu.matmul %233, %231, %cst_232 {dimension_numbers = #tpu.dot_dimension_numbers<[1], [0], [0], [1], [0, 0, 1, 1], [], []>} : vector<8x8xbf16>, vector<8x288xbf16>, vector<8x288xf32> -> vector<8x288xf32>
    %235 = arith.addf %230, %234 : vector<8x288xf32>
    %c0_233 = arith.constant 0 : index
    %c2_234 = arith.constant 2 : index
    %236 = vector.load %arg11[%c0_233, %c2_234] : memref<32x384xbf16, #tpu.memory_space<vmem>>, vector<8x288xbf16>
    %c2_235 = arith.constant 2 : index
    %c0_236 = arith.constant 0 : index
    %c0_237 = arith.constant 0 : index
    %237 = vector.load %arg8[%c2_235, %c0_236, %c0_237] : memref<9x8x8xbf16, #tpu.memory_space<vmem>>, vector<1x8x8xbf16>
    %238 = vector.shape_cast %237 : vector<1x8x8xbf16> to vector<8x8xbf16>
    %cst_238 = arith.constant dense<0.000000e+00> : vector<8x288xf32>
    %239 = tpu.matmul %238, %236, %cst_238 {dimension_numbers = #tpu.dot_dimension_numbers<[1], [0], [0], [1], [0, 0, 1, 1], [], []>} : vector<8x8xbf16>, vector<8x288xbf16>, vector<8x288xf32> -> vector<8x288xf32>
    %240 = arith.addf %235, %239 : vector<8x288xf32>
    %c0_239 = arith.constant 0 : index
    %c18_240 = arith.constant 18 : index
    %241 = vector.load %arg11[%c0_239, %c18_240] : memref<32x384xbf16, #tpu.memory_space<vmem>>, vector<8x288xbf16>
    %c3_241 = arith.constant 3 : index
    %c0_242 = arith.constant 0 : index
    %c0_243 = arith.constant 0 : index
    %242 = vector.load %arg8[%c3_241, %c0_242, %c0_243] : memref<9x8x8xbf16, #tpu.memory_space<vmem>>, vector<1x8x8xbf16>
    %243 = vector.shape_cast %242 : vector<1x8x8xbf16> to vector<8x8xbf16>
    %cst_244 = arith.constant dense<0.000000e+00> : vector<8x288xf32>
    %244 = tpu.matmul %243, %241, %cst_244 {dimension_numbers = #tpu.dot_dimension_numbers<[1], [0], [0], [1], [0, 0, 1, 1], [], []>} : vector<8x8xbf16>, vector<8x288xbf16>, vector<8x288xf32> -> vector<8x288xf32>
    %245 = arith.addf %240, %244 : vector<8x288xf32>
    %c0_245 = arith.constant 0 : index
    %c19_246 = arith.constant 19 : index
    %246 = vector.load %arg11[%c0_245, %c19_246] : memref<32x384xbf16, #tpu.memory_space<vmem>>, vector<8x288xbf16>
    %c4_247 = arith.constant 4 : index
    %c0_248 = arith.constant 0 : index
    %c0_249 = arith.constant 0 : index
    %247 = vector.load %arg8[%c4_247, %c0_248, %c0_249] : memref<9x8x8xbf16, #tpu.memory_space<vmem>>, vector<1x8x8xbf16>
    %248 = vector.shape_cast %247 : vector<1x8x8xbf16> to vector<8x8xbf16>
    %cst_250 = arith.constant dense<0.000000e+00> : vector<8x288xf32>
    %249 = tpu.matmul %248, %246, %cst_250 {dimension_numbers = #tpu.dot_dimension_numbers<[1], [0], [0], [1], [0, 0, 1, 1], [], []>} : vector<8x8xbf16>, vector<8x288xbf16>, vector<8x288xf32> -> vector<8x288xf32>
    %250 = arith.addf %245, %249 : vector<8x288xf32>
    %c0_251 = arith.constant 0 : index
    %c20_252 = arith.constant 20 : index
    %251 = vector.load %arg11[%c0_251, %c20_252] : memref<32x384xbf16, #tpu.memory_space<vmem>>, vector<8x288xbf16>
    %c5_253 = arith.constant 5 : index
    %c0_254 = arith.constant 0 : index
    %c0_255 = arith.constant 0 : index
    %252 = vector.load %arg8[%c5_253, %c0_254, %c0_255] : memref<9x8x8xbf16, #tpu.memory_space<vmem>>, vector<1x8x8xbf16>
    %253 = vector.shape_cast %252 : vector<1x8x8xbf16> to vector<8x8xbf16>
    %cst_256 = arith.constant dense<0.000000e+00> : vector<8x288xf32>
    %254 = tpu.matmul %253, %251, %cst_256 {dimension_numbers = #tpu.dot_dimension_numbers<[1], [0], [0], [1], [0, 0, 1, 1], [], []>} : vector<8x8xbf16>, vector<8x288xbf16>, vector<8x288xf32> -> vector<8x288xf32>
    %255 = arith.addf %250, %254 : vector<8x288xf32>
    %c0_257 = arith.constant 0 : index
    %c36_258 = arith.constant 36 : index
    %256 = vector.load %arg11[%c0_257, %c36_258] : memref<32x384xbf16, #tpu.memory_space<vmem>>, vector<8x288xbf16>
    %c6_259 = arith.constant 6 : index
    %c0_260 = arith.constant 0 : index
    %c0_261 = arith.constant 0 : index
    %257 = vector.load %arg8[%c6_259, %c0_260, %c0_261] : memref<9x8x8xbf16, #tpu.memory_space<vmem>>, vector<1x8x8xbf16>
    %258 = vector.shape_cast %257 : vector<1x8x8xbf16> to vector<8x8xbf16>
    %cst_262 = arith.constant dense<0.000000e+00> : vector<8x288xf32>
    %259 = tpu.matmul %258, %256, %cst_262 {dimension_numbers = #tpu.dot_dimension_numbers<[1], [0], [0], [1], [0, 0, 1, 1], [], []>} : vector<8x8xbf16>, vector<8x288xbf16>, vector<8x288xf32> -> vector<8x288xf32>
    %260 = arith.addf %255, %259 : vector<8x288xf32>
    %c0_263 = arith.constant 0 : index
    %c37_264 = arith.constant 37 : index
    %261 = vector.load %arg11[%c0_263, %c37_264] : memref<32x384xbf16, #tpu.memory_space<vmem>>, vector<8x288xbf16>
    %c7_265 = arith.constant 7 : index
    %c0_266 = arith.constant 0 : index
    %c0_267 = arith.constant 0 : index
    %262 = vector.load %arg8[%c7_265, %c0_266, %c0_267] : memref<9x8x8xbf16, #tpu.memory_space<vmem>>, vector<1x8x8xbf16>
    %263 = vector.shape_cast %262 : vector<1x8x8xbf16> to vector<8x8xbf16>
    %cst_268 = arith.constant dense<0.000000e+00> : vector<8x288xf32>
    %264 = tpu.matmul %263, %261, %cst_268 {dimension_numbers = #tpu.dot_dimension_numbers<[1], [0], [0], [1], [0, 0, 1, 1], [], []>} : vector<8x8xbf16>, vector<8x288xbf16>, vector<8x288xf32> -> vector<8x288xf32>
    %265 = arith.addf %260, %264 : vector<8x288xf32>
    %c0_269 = arith.constant 0 : index
    %c38_270 = arith.constant 38 : index
    %266 = vector.load %arg11[%c0_269, %c38_270] : memref<32x384xbf16, #tpu.memory_space<vmem>>, vector<8x288xbf16>
    %c8_271 = arith.constant 8 : index
    %c0_272 = arith.constant 0 : index
    %c0_273 = arith.constant 0 : index
    %267 = vector.load %arg8[%c8_271, %c0_272, %c0_273] : memref<9x8x8xbf16, #tpu.memory_space<vmem>>, vector<1x8x8xbf16>
    %268 = vector.shape_cast %267 : vector<1x8x8xbf16> to vector<8x8xbf16>
    %cst_274 = arith.constant dense<0.000000e+00> : vector<8x288xf32>
    %269 = tpu.matmul %268, %266, %cst_274 {dimension_numbers = #tpu.dot_dimension_numbers<[1], [0], [0], [1], [0, 0, 1, 1], [], []>} : vector<8x8xbf16>, vector<8x288xbf16>, vector<8x288xf32> -> vector<8x288xf32>
    %270 = arith.addf %265, %269 : vector<8x288xf32>
    %c0_275 = arith.constant 0 : index
    %c0_276 = arith.constant 0 : index
    %271 = vector.load %arg9[%c0_275, %c0_276] : memref<8x1xf32, #tpu.memory_space<vmem>>, vector<8x1xf32>
    %272 = vector.broadcast %271 : vector<8x1xf32> to vector<8x288xf32>
    %273 = arith.addf %270, %272 : vector<8x288xf32>
    %cst_277 = arith.constant 0.000000e+00 : f32
    %274 = vector.broadcast %cst_277 : f32 to vector<8x288xf32>
    %275 = arith.maximumf %273, %274 : vector<8x288xf32>
    %c0_278 = arith.constant 0 : index
    %c0_279 = arith.constant 0 : index
    %c0_280 = arith.constant 0 : index
    %276 = vector.load %arg10[%c0_278, %c0_279, %c0_280] : memref<1x8x288xf32, #tpu.memory_space<vmem>>, vector<1x8x288xf32>
    %277 = vector.shape_cast %276 : vector<1x8x288xf32> to vector<8x288xf32>
    %278 = vector.shape_cast %275 : vector<8x288xf32> to vector<1x8x288xf32>
    tpu.vector_store %arg10[%c0_278, %c0_279, %c0_280], %278 {strides = array<i32>} : memref<1x8x288xf32, #tpu.memory_space<vmem>>, vector<1x8x288xf32>,
    return
  }
  func.func @transform_0(%arg0: i32) -> (i32, i32, i32) {
    %c0_i32 = arith.constant 0 : i32
    %c0_i32_0 = arith.constant 0 : i32
    %c0_i32_1 = arith.constant 0 : i32
    return %arg0, %c0_i32, %c0_i32_0 : i32, i32, i32
  }
  func.func @transform_1(%arg0: i32) -> (i32, i32, i32) {
    %c0_i32 = arith.constant 0 : i32
    %c0_i32_0 = arith.constant 0 : i32
    %c0_i32_1 = arith.constant 0 : i32
    %c0_i32_2 = arith.constant 0 : i32
    return %c0_i32, %c0_i32_0, %c0_i32_1 : i32, i32, i32
  }
  func.func @transform_2(%arg0: i32) -> (i32, i32) {
    %c0_i32 = arith.constant 0 : i32
    %c0_i32_0 = arith.constant 0 : i32
    %c0_i32_1 = arith.constant 0 : i32
    return %c0_i32, %c0_i32_0 : i32, i32
  }
  func.func @transform_3(%arg0: i32) -> (i32, i32, i32) {
    %c0_i32 = arith.constant 0 : i32
    %c0_i32_0 = arith.constant 0 : i32
    %c0_i32_1 = arith.constant 0 : i32
    %c0_i32_2 = arith.constant 0 : i32
    return %c0_i32, %c0_i32_0, %c0_i32_1 : i32, i32, i32
  }
  func.func @transform_4(%arg0: i32) -> (i32, i32) {
    %c0_i32 = arith.constant 0 : i32
    %c0_i32_0 = arith.constant 0 : i32
    %c0_i32_1 = arith.constant 0 : i32
    return %c0_i32, %c0_i32_0 : i32, i32
  }
  func.func @transform_5(%arg0: i32) -> (i32, i32, i32) {
    %c0_i32 = arith.constant 0 : i32
    %c0_i32_0 = arith.constant 0 : i32
    %c0_i32_1 = arith.constant 0 : i32
    %c0_i32_2 = arith.constant 0 : i32
    return %c0_i32, %c0_i32_0, %c0_i32_1 : i32, i32, i32
  }
  func.func @transform_6(%arg0: i32) -> (i32, i32) {
    %c0_i32 = arith.constant 0 : i32
    %c0_i32_0 = arith.constant 0 : i32
    %c0_i32_1 = arith.constant 0 : i32
    return %c0_i32, %c0_i32_0 : i32, i32
  }
  func.func @transform_7(%arg0: i32) -> (i32, i32, i32) {
    %c0_i32 = arith.constant 0 : i32
    %c0_i32_0 = arith.constant 0 : i32
    %c0_i32_1 = arith.constant 0 : i32
    %c0_i32_2 = arith.constant 0 : i32
    return %c0_i32, %c0_i32_0, %c0_i32_1 : i32, i32, i32
  }
  func.func @transform_8(%arg0: i32) -> (i32, i32) {
    %c0_i32 = arith.constant 0 : i32
    %c0_i32_0 = arith.constant 0 : i32
    %c0_i32_1 = arith.constant 0 : i32
    return %c0_i32, %c0_i32_0 : i32, i32
  }
  func.func @transform_9(%arg0: i32) -> (i32, i32, i32) {
    %c0_i32 = arith.constant 0 : i32
    %c0_i32_0 = arith.constant 0 : i32
    %c0_i32_1 = arith.constant 0 : i32
    return %arg0, %c0_i32, %c0_i32_0 : i32, i32, i32
  }
}

</mosaic_0001>

<llo_original>
// kernel: reconstruction_layer.1
$region0: #{reconstruction_layer.1}
  #allocation0 [shape = 'u32[]', space=smem, size = 0x4, offset = 0x4, fixed_abs, tag = 'smem constant byte address 0x4 - core index']
  #allocation1 [shape = 'u32[72,128]{1,0:T(1,128)}', space=vmem, size = 0x9000, scoped, tag = 'internal scratch']
  #allocation2 [shape = 'bf16[32,384]{1,0:T(8,128)(2,1)}', space=vmem, size = 0x6000, scoped, tag = 'scratch operand']
  %s0 = inlined_call_operand.vmem [shape: bf16[2,64,384], index: 0, kind: input, shape index: {}]
  %s1 = inlined_call_operand.vmem [shape: bf16[9,32,64], index: 1, kind: input, shape index: {}]
  %s2 = inlined_call_operand.vmem [shape: f32[32,1], index: 2, kind: input, shape index: {}]
  %s3 = inlined_call_operand.vmem [shape: bf16[9,16,32], index: 3, kind: input, shape index: {}]
  %s4 = inlined_call_operand.vmem [shape: f32[16,1], index: 4, kind: input, shape index: {}]
  %s5 = inlined_call_operand.vmem [shape: bf16[9,8,16], index: 5, kind: input, shape index: {}]
  %s6 = inlined_call_operand.vmem [shape: f32[8,1], index: 6, kind: input, shape index: {}]
  %s7 = inlined_call_operand.vmem [shape: bf16[9,8,8], index: 7, kind: input, shape index: {}]
  %s8 = inlined_call_operand.vmem [shape: f32[8,1], index: 8, kind: input, shape index: {}]
  %s9 = inlined_call_operand.vmem [shape: f32[2,8,288], index: 9, kind: output, shape index: {}]
  %s10 = sld [smem:[#allocation0]]
  $region69: #{reconstruction_layer.1} parent=0
    _
  %s12 = ssub.s32 1, %s10
  %s13 = scalar_select 0, %s12, %s10
  loop: start=0, step=1, limit=4
  $region2: #{reconstruction_layer.1} parent=0 // loop_pre_header
    _
  $region3: #{reconstruction_layer.1} parent=0 // loop_header
    %s15 = sphi 0, %s19
    %p16 = scmp.ge.s32.totalorder %s15, 4
    %s25 = sphi 0, %s27
    %s28 = sphi 0, %s25
    %s29 = sphi 0, %s28
    %s45 = sphi 0, %s29
    %s49 = sphi 0, %s49
    %s51 = sphi 0, %s49
    %s52 = sphi 0, %s51
    %s66 = sphi 0, %s52
    %s70 = sphi 0, %s70
    %s72 = sphi 0, %s70
    %s73 = sphi 0, %s72
    %s87 = sphi 0, %s73
    %s91 = sphi 0, %s91
    %s93 = sphi 0, %s91
    %s94 = sphi 0, %s93
    %s108 = sphi 0, %s94
    %s112 = sphi 0, %s112
    %s114 = sphi 0, %s112
    %s115 = sphi 0, %s114
    %s129 = sphi 0, %s115
    %s133 = sphi 0, %s133
    %s135 = sphi 0, %s133
    %s136 = sphi 0, %s135
    %s150 = sphi 0, %s136
    %s154 = sphi 0, %s154
    %s156 = sphi 0, %s154
    %s157 = sphi 0, %s156
    %s171 = sphi 0, %s157
    %s175 = sphi 0, %s175
    %s177 = sphi 0, %s175
    %s178 = sphi 0, %s177
    %s192 = sphi 0, %s178
    %s196 = sphi 0, %s196
    %s198 = sphi 0, %s196
    %s199 = sphi 0, %s198
    %s213 = sphi 0, %s199
    %s219 = sphi 0, %s221
    %s222 = sphi 0, %s219
    %s223 = sphi 0, %s222
    %s239 = sphi 0, %s223
  $region4: #{reconstruction_layer.1} parent=0 // loop_header_branch
    %18 = sbr.rel (%p16) target = $region8
  $region5: #{reconstruction_layer.1} parent=0 // loop_body
    %s20 = ssub.s32 %s15, 1
    %s21 = ssub.s32 %s15, 2
    %s22 = sadd.s32 %s15, 1
    %s23 = ssub.s32 %s15, %s22
    %p24 = scmp.eq.s32.totalorder %s23, 0
    %s26 = sadd.s32 %s25, 1
    %s27 = scalar_select %p24, %s25, %s26
    %p30 = pneg %p24
    %p31 = scmp.eq.s32.totalorder %s15, 1
    %p32 = por %p30, %p31
    %p33 = scmp.ne.s32.totalorder %s25, %s28
    %p34 = scmp.eq.s32.totalorder %s15, 0
    %p35 = por %p33, %p34
    %p36 = scmp.ne.s32.totalorder %s25, %s28
    %p37 = scmp.eq.s32.totalorder %s20, 1
    %p38 = por %p36, %p37
    %p39 = scmp.ne.s32.totalorder %s28, %s29
    %p40 = scmp.eq.s32.totalorder %s20, 0
    %p41 = por %p39, %p40
    %p42 = scmp.ne.s32.totalorder %s28, %s29
    %p43 = scmp.eq.s32.totalorder %s21, 1
    %p44 = por %p42, %p43
    %p46 = scmp.ne.s32.totalorder %s29, %s45
    %p47 = scmp.eq.s32.totalorder %s21, 0
    %p48 = por %p46, %p47
    %s50 = sadd.s32 %s49, 1
    %p53 = scmp.eq.s32.totalorder %s15, 1
    %p54 = scmp.ne.s32.totalorder %s49, %s51
    %p55 = scmp.eq.s32.totalorder %s15, 0
    %p56 = por %p54, %p55
    %p57 = scmp.ne.s32.totalorder %s49, %s51
    %p58 = scmp.eq.s32.totalorder %s20, 1
    %p59 = por %p57, %p58
    %p60 = scmp.ne.s32.totalorder %s51, %s52
    %p61 = scmp.eq.s32.totalorder %s20, 0
    %p62 = por %p60, %p61
    %p63 = scmp.ne.s32.totalorder %s51, %s52
    %p64 = scmp.eq.s32.totalorder %s21, 1
    %p65 = por %p63, %p64
    %p67 = scmp.ne.s32.totalorder %s52, %s66
    %p68 = scmp.eq.s32.totalorder %s21, 0
    %p69 = por %p67, %p68
    %s71 = sadd.s32 %s70, 1
    %p74 = scmp.eq.s32.totalorder %s15, 1
    %p75 = scmp.ne.s32.totalorder %s70, %s72
    %p76 = scmp.eq.s32.totalorder %s15, 0
    %p77 = por %p75, %p76
    %p78 = scmp.ne.s32.totalorder %s70, %s72
    %p79 = scmp.eq.s32.totalorder %s20, 1
    %p80 = por %p78, %p79
    %p81 = scmp.ne.s32.totalorder %s72, %s73
    %p82 = scmp.eq.s32.totalorder %s20, 0
    %p83 = por %p81, %p82
    %p84 = scmp.ne.s32.totalorder %s72, %s73
    %p85 = scmp.eq.s32.totalorder %s21, 1
    %p86 = por %p84, %p85
    %p88 = scmp.ne.s32.totalorder %s73, %s87
    %p89 = scmp.eq.s32.totalorder %s21, 0
    %p90 = por %p88, %p89
    %s92 = sadd.s32 %s91, 1
    %p95 = scmp.eq.s32.totalorder %s15, 1
    %p96 = scmp.ne.s32.totalorder %s91, %s93
    %p97 = scmp.eq.s32.totalorder %s15, 0
    %p98 = por %p96, %p97
    %p99 = scmp.ne.s32.totalorder %s91, %s93
    %p100 = scmp.eq.s32.totalorder %s20, 1
    %p101 = por %p99, %p100
    %p102 = scmp.ne.s32.totalorder %s93, %s94
    %p103 = scmp.eq.s32.totalorder %s20, 0
    %p104 = por %p102, %p103
    %p105 = scmp.ne.s32.totalorder %s93, %s94
    %p106 = scmp.eq.s32.totalorder %s21, 1
    %p107 = por %p105, %p106
    %p109 = scmp.ne.s32.totalorder %s94, %s108
    %p110 = scmp.eq.s32.totalorder %s21, 0
    %p111 = por %p109, %p110
    %s113 = sadd.s32 %s112, 1
    %p116 = scmp.eq.s32.totalorder %s15, 1
    %p117 = scmp.ne.s32.totalorder %s112, %s114
    %p118 = scmp.eq.s32.totalorder %s15, 0
    %p119 = por %p117, %p118
    %p120 = scmp.ne.s32.totalorder %s112, %s114
    %p121 = scmp.eq.s32.totalorder %s20, 1
    %p122 = por %p120, %p121
    %p123 = scmp.ne.s32.totalorder %s114, %s115
    %p124 = scmp.eq.s32.totalorder %s20, 0
    %p125 = por %p123, %p124
    %p126 = scmp.ne.s32.totalorder %s114, %s115
    %p127 = scmp.eq.s32.totalorder %s21, 1
    %p128 = por %p126, %p127
    %p130 = scmp.ne.s32.totalorder %s115, %s129
    %p131 = scmp.eq.s32.totalorder %s21, 0
    %p132 = por %p130, %p131
    %s134 = sadd.s32 %s133, 1
    %p137 = scmp.eq.s32.totalorder %s15, 1
    %p138 = scmp.ne.s32.totalorder %s133, %s135
    %p139 = scmp.eq.s32.totalorder %s15, 0
    %p140 = por %p138, %p139
    %p141 = scmp.ne.s32.totalorder %s133, %s135
    %p142 = scmp.eq.s32.totalorder %s20, 1
    %p143 = por %p141, %p142
    %p144 = scmp.ne.s32.totalorder %s135, %s136
    %p145 = scmp.eq.s32.totalorder %s20, 0
    %p146 = por %p144, %p145
    %p147 = scmp.ne.s32.totalorder %s135, %s136
    %p148 = scmp.eq.s32.totalorder %s21, 1
    %p149 = por %p147, %p148
    %p151 = scmp.ne.s32.totalorder %s136, %s150
    %p152 = scmp.eq.s32.totalorder %s21, 0
    %p153 = por %p151, %p152
    %s155 = sadd.s32 %s154, 1
    %p158 = scmp.eq.s32.totalorder %s15, 1
    %p159 = scmp.ne.s32.totalorder %s154, %s156
    %p160 = scmp.eq.s32.totalorder %s15, 0
    %p161 = por %p159, %p160
    %p162 = scmp.ne.s32.totalorder %s154, %s156
    %p163 = scmp.eq.s32.totalorder %s20, 1
    %p164 = por %p162, %p163
    %p165 = scmp.ne.s32.totalorder %s156, %s157
    %p166 = scmp.eq.s32.totalorder %s20, 0
    %p167 = por %p165, %p166
    %p168 = scmp.ne.s32.totalorder %s156, %s157
    %p169 = scmp.eq.s32.totalorder %s21, 1
    %p170 = por %p168, %p169
    %p172 = scmp.ne.s32.totalorder %s157, %s171
    %p173 = scmp.eq.s32.totalorder %s21, 0
    %p174 = por %p172, %p173
    %s176 = sadd.s32 %s175, 1
    %p179 = scmp.eq.s32.totalorder %s15, 1
    %p180 = scmp.ne.s32.totalorder %s175, %s177
    %p181 = scmp.eq.s32.totalorder %s15, 0
    %p182 = por %p180, %p181
    %p183 = scmp.ne.s32.totalorder %s175, %s177
    %p184 = scmp.eq.s32.totalorder %s20, 1
    %p185 = por %p183, %p184
    %p186 = scmp.ne.s32.totalorder %s177, %s178
    %p187 = scmp.eq.s32.totalorder %s20, 0
    %p188 = por %p186, %p187
    %p189 = scmp.ne.s32.totalorder %s177, %s178
    %p190 = scmp.eq.s32.totalorder %s21, 1
    %p191 = por %p189, %p190
    %p193 = scmp.ne.s32.totalorder %s178, %s192
    %p194 = scmp.eq.s32.totalorder %s21, 0
    %p195 = por %p193, %p194
    %s197 = sadd.s32 %s196, 1
    %p200 = scmp.eq.s32.totalorder %s15, 1
    %p201 = scmp.ne.s32.totalorder %s196, %s198
    %p202 = scmp.eq.s32.totalorder %s15, 0
    %p203 = por %p201, %p202
    %p204 = scmp.ne.s32.totalorder %s196, %s198
    %p205 = scmp.eq.s32.totalorder %s20, 1
    %p206 = por %p204, %p205
    %p207 = scmp.ne.s32.totalorder %s198, %s199
    %p208 = scmp.eq.s32.totalorder %s20, 0
    %p209 = por %p207, %p208
    %p210 = scmp.ne.s32.totalorder %s198, %s199
    %p211 = scmp.eq.s32.totalorder %s21, 1
    %p212 = por %p210, %p211
    %p214 = scmp.ne.s32.totalorder %s199, %s213
    %p215 = scmp.eq.s32.totalorder %s21, 0
    %p216 = por %p214, %p215
    %s217 = ssub.s32 %s15, %s22
    %p218 = scmp.eq.s32.totalorder %s217, 0
    %s220 = sadd.s32 %s219, 1
    %s221 = scalar_select %p218, %s219, %s220
    %p224 = pneg %p218
    %p225 = scmp.eq.s32.totalorder %s15, 1
    %p226 = por %p224, %p225
    %p227 = scmp.ne.s32.totalorder %s219, %s222
    %p228 = scmp.eq.s32.totalorder %s15, 0
    %p229 = por %p227, %p228
    %p230 = scmp.ne.s32.totalorder %s219, %s222
    %p231 = scmp.eq.s32.totalorder %s20, 1
    %p232 = por %p230, %p231
    %p233 = scmp.ne.s32.totalorder %s222, %s223
    %p234 = scmp.eq.s32.totalorder %s20, 0
    %p235 = por %p233, %p234
    %p236 = scmp.ne.s32.totalorder %s222, %s223
    %p237 = scmp.eq.s32.totalorder %s21, 1
    %p238 = por %p236, %p237
    %p240 = scmp.ne.s32.totalorder %s223, %s239
    %p241 = scmp.eq.s32.totalorder %s21, 0
    %p242 = por %p240, %p241
    %p243 = scmp.le.s32.totalorder 1, %s15
    %p244 = scmp.lt.s32.totalorder %s15, 3
    %p245 = pnand %p243, %p244
    %p246 = pneg %p245
    // Predicated region
    $region9: #{reconstruction_layer.1} parent=5 // pred_check
      _
    $region10: #{reconstruction_layer.1} parent=5 // pred_check_branch
      %248 = sbr.rel (%p245) target = $region12
    $region11: #{reconstruction_layer.1} parent=5 // pred_region
      %s249 = ssub.s32 %s15, 1
      // Predicated region
      $region13: #{reconstruction_layer.1} parent=11 // pred_check
        %p250 = pneg %p62
      $region14: #{reconstruction_layer.1} parent=11 // pred_check_branch
        %252 = sbr.rel (%p250) target = $region16
      $region15: #{reconstruction_layer.1} parent=11 // pred_region
        _
      $region16: #{reconstruction_layer.1} parent=11 // pred_fallthru
        _
      // Predicated region
      $region17: #{reconstruction_layer.1} parent=11 // pred_check
        %p253 = pneg %p83
      $region18: #{reconstruction_layer.1} parent=11 // pred_check_branch
        %255 = sbr.rel (%p253) target = $region20
      $region19: #{reconstruction_layer.1} parent=11 // pred_region
        _
      $region20: #{reconstruction_layer.1} parent=11 // pred_fallthru
        _
      // Predicated region
      $region21: #{reconstruction_layer.1} parent=11 // pred_check
        %p256 = pneg %p104
      $region22: #{reconstruction_layer.1} parent=11 // pred_check_branch
        %258 = sbr.rel (%p256) target = $region24
      $region23: #{reconstruction_layer.1} parent=11 // pred_region
        _
      $region24: #{reconstruction_layer.1} parent=11 // pred_fallthru
        _
      // Predicated region
      $region25: #{reconstruction_layer.1} parent=11 // pred_check
        %p259 = pneg %p125
      $region26: #{reconstruction_layer.1} parent=11 // pred_check_branch
        %261 = sbr.rel (%p259) target = $region28
      $region27: #{reconstruction_layer.1} parent=11 // pred_region
        _
      $region28: #{reconstruction_layer.1} parent=11 // pred_fallthru
        _
      // Predicated region
      $region29: #{reconstruction_layer.1} parent=11 // pred_check
        %p262 = pneg %p146
      $region30: #{reconstruction_layer.1} parent=11 // pred_check_branch
        %264 = sbr.rel (%p262) target = $region32
      $region31: #{reconstruction_layer.1} parent=11 // pred_region
        _
      $region32: #{reconstruction_layer.1} parent=11 // pred_fallthru
        _
      // Predicated region
      $region33: #{reconstruction_layer.1} parent=11 // pred_check
        %p265 = pneg %p167
      $region34: #{reconstruction_layer.1} parent=11 // pred_check_branch
        %267 = sbr.rel (%p265) target = $region36
      $region35: #{reconstruction_layer.1} parent=11 // pred_region
        _
      $region36: #{reconstruction_layer.1} parent=11 // pred_fallthru
        _
      // Predicated region
      $region37: #{reconstruction_layer.1} parent=11 // pred_check
        %p268 = pneg %p188
      $region38: #{reconstruction_layer.1} parent=11 // pred_check_branch
        %270 = sbr.rel (%p268) target = $region40
      $region39: #{reconstruction_layer.1} parent=11 // pred_region
        _
      $region40: #{reconstruction_layer.1} parent=11 // pred_fallthru
        _
      // Predicated region
      $region41: #{reconstruction_layer.1} parent=11 // pred_check
        %p271 = pneg %p209
      $region42: #{reconstruction_layer.1} parent=11 // pred_check_branch
        %273 = sbr.rel (%p271) target = $region44
      $region43: #{reconstruction_layer.1} parent=11 // pred_region
        _
      $region44: #{reconstruction_layer.1} parent=11 // pred_fallthru
        _
    $region12: #{reconstruction_layer.1} parent=5 // pred_fallthru
      _
    %p274 = scmp.lt.s32.totalorder %s15, 2
    // Predicated region
    $region45: #{reconstruction_layer.1} parent=5 // pred_check
      %p275 = pneg %p274
    $region46: #{reconstruction_layer.1} parent=5 // pred_check_branch
      %277 = sbr.rel (%p275) target = $region48
    $region47: #{reconstruction_layer.1} parent=5 // pred_region
      // Predicated region
      $region49: #{reconstruction_layer.1} parent=47 // pred_check
        %p278 = pneg %p35
      $region50: #{reconstruction_layer.1} parent=47 // pred_check_branch
        %280 = sbr.rel (%p278) target = $region52
      $region51: #{reconstruction_layer.1} parent=47 // pred_region
        %p281 = scmp.lt.s32.totalorder %s15, 1
        %s282 = scalar_select %p281, %s15, 1
        %s283 = smul.addr %s282, 24
        %s284 = smul.addr %s283, 4
        %s285 = scalar_lea.vmem %s0, %s284
      $region52: #{reconstruction_layer.1} parent=47 // pred_fallthru
        _
    $region48: #{reconstruction_layer.1} parent=5 // pred_fallthru
      _
    %p286 = scmp.le.s32.totalorder 1, %s15
    %p287 = scmp.lt.s32.totalorder %s15, 3
    %p288 = pnand %p286, %p287
    %p289 = pneg %p288
    // Predicated region
    $region53: #{reconstruction_layer.1} parent=5 // pred_check
      _
    $region54: #{reconstruction_layer.1} parent=5 // pred_check_branch
      %291 = sbr.rel (%p288) target = $region56
    $region55: #{reconstruction_layer.1} parent=5 // pred_region
      %s292 = ssub.s32 %s15, 1
      %p293 = scmp.lt.s32.totalorder %s20, 1
      %s294 = scalar_select %p293, %s20, 1
      %s295 = smul.addr %s294, 24
      %s296 = smul.addr %s295, 4
      %s297 = scalar_lea.vmem %s0, %s296
      %p298 = pneg %p41
      %p299 = pneg %p38
      %p300 = pneg %p62
      %p301 = pneg %p59
      %p302 = pneg %p83
      %p303 = pneg %p80
      %p304 = pneg %p104
      %p305 = pneg %p101
      %p306 = pneg %p125
      %p307 = pneg %p122
      %p308 = pneg %p146
      %p309 = pneg %p143
      %p310 = pneg %p167
      %p311 = pneg %p164
      %p312 = pneg %p188
      %p313 = pneg %p185
      %p314 = pneg %p209
      %p315 = pneg %p206
      %p316 = pneg %p235
      %p317 = pneg %p232
      %p318 = scmp.lt.s32.totalorder %s20, 1
      %s319 = scalar_select %p318, %s20, 1
      %s320 = smul.addr %s319, 3
      %s321 = smul.addr %s320, 8
      %s322 = scalar_lea.vmem %s9, %s321
      %p323 = scmp.lt.s32.totalorder %s20, 1
      %s324 = scalar_select %p323, %s20, 1
      %s325 = smul.addr %s324, 24
      %s326 = smul.addr %s325, 4
      %s327 = scalar_lea.vmem %s0, %s326
      %p328 = scmp.lt.s32.totalorder %s20, 1
      %s329 = scalar_select %p328, %s20, 1
      %s330 = smul.addr %s329, 3
      %s331 = smul.addr %s330, 8
      %s332 = scalar_lea.vmem %s9, %s331
      %v336 = vlaneseq
      %v337 = vand.u32 %v336, 127
      %v338 = vadd.s32 %v337, 128
      %v339 = vadd.s32 %v337, 256
      %vm340 = vcmp.lt.s32.totalorder %v337, 0
      %v341 = vsub.s32 0, %v337
      %v342 = vsel %vm340, %v341, %v337
      %v343 = vand.u32 %v342, 65535
      %v344 = vshrl.u32 %v342, 16
      %v346 = vmul.u32 %v343, 14564
      %v347 = vmul.u32 %v343, 58254
      %v348 = vmul.u32 %v344, 14564
      %v349 = vmul.u32 %v344, 58254
      %v350 = vshll.u32 %v347, 16
      %v351 = vshrl.u32 %v347, 16
      %v352 = vshll.u32 %v348, 16
      %v353 = vshrl.u32 %v348, 16
      %vm354 = vc.u32 %v346, %v350
      %v355 = vsel %vm354, 1, 0
      %v356 = vadd.s32 %v346, %v350
      %v357 = vadd.s32 %v349, %v355
      %vm358 = vc.u32 %v356, %v352
      %v359 = vsel %vm358, 1, 0
      %v360 = vadd.s32 %v356, %v352
      %v361 = vadd.s32 %v357, %v359
      %v362 = vadd.s32 %v361, %v351
      %v363 = vadd.s32 %v362, %v353
      %v364 = vshrl.u32 %v363, 4
      %v365 = vmul.u32 %v364, 18
      %v366 = vsub.s32 %v342, %v365
      %v367 = vsub.s32 0, %v366
      %v368 = vsel %vm340, %v367, %v366
      %vm369 = vcmp.lt.s32.totalorder %v338, 0
      %v370 = vsub.s32 0, %v338
      %v371 = vsel %vm369, %v370, %v338
      %v372 = vand.u32 %v371, 65535
      %v373 = vshrl.u32 %v371, 16
      %v375 = vmul.u32 %v372, 14564
      %v376 = vmul.u32 %v372, 58254
      %v377 = vmul.u32 %v373, 14564
      %v378 = vmul.u32 %v373, 58254
      %v379 = vshll.u32 %v376, 16
      %v380 = vshrl.u32 %v376, 16
      %v381 = vshll.u32 %v377, 16
      %v382 = vshrl.u32 %v377, 16
      %vm383 = vc.u32 %v375, %v379
      %v384 = vsel %vm383, 1, 0
      %v385 = vadd.s32 %v375, %v379
      %v386 = vadd.s32 %v378, %v384
      %vm387 = vc.u32 %v385, %v381
      %v388 = vsel %vm387, 1, 0
      %v389 = vadd.s32 %v385, %v381
      %v390 = vadd.s32 %v386, %v388
      %v391 = vadd.s32 %v390, %v380
      %v392 = vadd.s32 %v391, %v382
      %v393 = vshrl.u32 %v392, 4
      %v394 = vmul.u32 %v393, 18
      %v395 = vsub.s32 %v371, %v394
      %v396 = vsub.s32 0, %v395
      %v397 = vsel %vm369, %v396, %v395
      %vm398 = vcmp.lt.s32.totalorder %v339, 0
      %v399 = vsub.s32 0, %v339
      %v400 = vsel %vm398, %v399, %v339
      %v401 = vand.u32 %v400, 65535
      %v402 = vshrl.u32 %v400, 16
      %v404 = vmul.u32 %v401, 14564
      %v405 = vmul.u32 %v401, 58254
      %v406 = vmul.u32 %v402, 14564
      %v407 = vmul.u32 %v402, 58254
      %v408 = vshll.u32 %v405, 16
      %v409 = vshrl.u32 %v405, 16
      %v410 = vshll.u32 %v406, 16
      %v411 = vshrl.u32 %v406, 16
      %vm412 = vc.u32 %v404, %v408
      %v413 = vsel %vm412, 1, 0
      %v414 = vadd.s32 %v404, %v408
      %v415 = vadd.s32 %v407, %v413
      %vm416 = vc.u32 %v414, %v410
      %v417 = vsel %vm416, 1, 0
      %v418 = vadd.s32 %v414, %v410
      %v419 = vadd.s32 %v415, %v417
      %v420 = vadd.s32 %v419, %v409
      %v421 = vadd.s32 %v420, %v411
      %v422 = vshrl.u32 %v421, 4
      %v423 = vmul.u32 %v422, 18
      %v424 = vsub.s32 %v400, %v423
      %v425 = vsub.s32 0, %v424
      %v426 = vsel %vm398, %v425, %v424
      %vm427 = vcmp.ne.s32.totalorder %v368, 0
      %vm428 = vcmp.ne.s32.totalorder %v397, 0
      %vm429 = vcmp.ne.s32.totalorder %v426, 0
      %vm430 = vcmp.lt.s32.totalorder %v368, 0
      %vm431 = vcmp.lt.s32.totalorder %v397, 0
      %vm432 = vcmp.lt.s32.totalorder %v426, 0
      %vm433 = vmand %vm430, %vm427
      %vm434 = vmand %vm431, %vm428
      %vm435 = vmand %vm432, %vm429
      %v436 = vadd.s32 %v368, 18
      %v437 = vadd.s32 %v397, 18
      %v438 = vadd.s32 %v426, 18
      %v439 = vsel %vm433, %v436, %v368
      %v440 = vsel %vm434, %v437, %v397
      %v441 = vsel %vm435, %v438, %v426
      %vm442 = vcmp.eq.s32.totalorder %v439, 0
      %vm443 = vcmp.eq.s32.totalorder %v440, 0
      %vm444 = vcmp.eq.s32.totalorder %v441, 0
      %vm445 = vcmp.eq.s32.totalorder %v439, 17
      %vm446 = vcmp.eq.s32.totalorder %v440, 17
      %vm447 = vcmp.eq.s32.totalorder %v441, 17
      %vm448 = vcmask 1044000
      %449 = vst.msk [vmem:[#allocation2 + $0x8] sm:$0xf] %vm448, 0
      %450 = vst.msk [vmem:[#allocation2 + $0x14] sm:$0xf] %vm448, 0
      %451 = vst.msk [vmem:[#allocation2 + $0x20] sm:$0xf] %vm448, 0
      %452 = vst.msk [vmem:[#allocation2 + $0x2c] sm:$0xf] %vm448, 0
      %v453 = vld [vmem:[%s327] sm:$0xff]
      %v454 = vld [vmem:[%s327 + $0x8] sm:$0xf]
      %v455 = vld [vmem:[%s327 + $0xc] sm:$0xff]
      %v456 = vld [vmem:[%s327 + $0x14] sm:$0xf]
      %v457 = vld [vmem:[%s327 + $0x18] sm:$0xff]
      %v458 = vld [vmem:[%s327 + $0x20] sm:$0xf]
      %v459 = vld [vmem:[%s327 + $0x24] sm:$0xff]
      %v460 = vld [vmem:[%s327 + $0x2c] sm:$0xf]
      %v461 = vld [vmem:[%s327 + $0x30] sm:$0xff]
      %v462 = vld [vmem:[%s327 + $0x38] sm:$0xf]
      %v463 = vld [vmem:[%s327 + $0x3c] sm:$0xff]
      %v464 = vld [vmem:[%s327 + $0x44] sm:$0xf]
      %v465 = vld [vmem:[%s327 + $0x48] sm:$0xff]
      %v466 = vld [vmem:[%s327 + $0x50] sm:$0xf]
      %v467 = vld [vmem:[%s327 + $0x54] sm:$0xff]
      %v468 = vld [vmem:[%s327 + $0x5c] sm:$0xf]
      %v469 = vld [vmem:[%s1] sm:$0xf]
      %v470 = vld [vmem:[%s1 + $0x4] sm:$0xf]
      %v471 = vld [vmem:[%s1 + $0x8] sm:$0xf]
      %v472 = vld [vmem:[%s1 + $0xc] sm:$0xf]
      %s473 = scalar_lea.vmem %s1, 16
      %v474 = vld [vmem:[%s473] sm:$0xf]
      %v475 = vld [vmem:[%s473 + $0x4] sm:$0xf]
      %v476 = vld [vmem:[%s473 + $0x8] sm:$0xf]
      %v477 = vld [vmem:[%s473 + $0xc] sm:$0xf]
      %v482 = vunpack.c.l.b16 %v474
      %v483 = vunpack.c.l.b16 %v475
      %v484 = vunpack.c.l.b16 %v476
      %v485 = vunpack.c.l.b16 %v477
      %v486 = vpack.c.b16 %v483, %v482
      %v487 = vpack.c.b16 %v485, %v484
      %v504 = vunpack.c.l.b16 %v453
      %v505 = vunpack.c.h.b16 %v453
      %v506 = vunpack.c.l.b16 %v454
      %v507 = vunpack.c.l.b16 %v455
      %v508 = vunpack.c.h.b16 %v455
      %v509 = vunpack.c.l.b16 %v456
      %v510 = vunpack.c.l.b16 %v457
      %v511 = vunpack.c.h.b16 %v457
      %v512 = vunpack.c.l.b16 %v458
      %v513 = vunpack.c.l.b16 %v459
      %v514 = vunpack.c.h.b16 %v459
      %v515 = vunpack.c.l.b16 %v460
      %v516 = vunpack.c.l.b16 %v461
      %v517 = vunpack.c.h.b16 %v461
      %v518 = vunpack.c.l.b16 %v462
      %v519 = vunpack.c.l.b16 %v463
      %v520 = vunpack.c.h.b16 %v463
      %v521 = vunpack.c.l.b16 %v464
      %v522 = vunpack.c.l.b16 %v465
      %v523 = vunpack.c.h.b16 %v465
      %v524 = vunpack.c.l.b16 %v466
      %v525 = vunpack.c.l.b16 %v467
      %v526 = vunpack.c.h.b16 %v467
      %v527 = vunpack.c.l.b16 %v468
      %v528 = vpack.c.b16 %v507, %v504
      %v529 = vpack.c.b16 %v508, %v505
      %v530 = vpack.c.b16 %v509, %v506
      %v531 = vpack.c.b16 %v513, %v510
      %v532 = vpack.c.b16 %v514, %v511
      %v533 = vpack.c.b16 %v515, %v512
      %v534 = vpack.c.b16 %v519, %v516
      %v535 = vpack.c.b16 %v520, %v517
      %v536 = vpack.c.b16 %v521, %v518
      %v537 = vpack.c.b16 %v525, %v522
      %v538 = vpack.c.b16 %v526, %v523
      %v539 = vpack.c.b16 %v527, %v524
      %540 = vrot.lane.b32.xlu0 %v528, 127
      %v541 = vpop.permute.xlu0 %540
      %542 = vrot.lane.b32.xlu0 %v529, 127
      %v543 = vpop.permute.xlu0 %542
      %544 = vrot.lane.b32.xlu0 %v530, 127
      %v545 = vpop.permute.xlu0 %544
      %546 = vrot.lane.b32.xlu0 %v531, 127
      %v547 = vpop.permute.xlu0 %546
      %548 = vrot.lane.b32.xlu0 %v532, 127
      %v549 = vpop.permute.xlu0 %548
      %550 = vrot.lane.b32.xlu0 %v533, 127
      %v551 = vpop.permute.xlu0 %550
      %552 = vrot.lane.b32.xlu0 %v534, 127
      %v553 = vpop.permute.xlu0 %552
      %554 = vrot.lane.b32.xlu0 %v535, 127
      %v555 = vpop.permute.xlu0 %554
      %556 = vrot.lane.b32.xlu0 %v536, 127
      %v557 = vpop.permute.xlu0 %556
      %558 = vrot.lane.b32.xlu0 %v537, 127
      %v559 = vpop.permute.xlu0 %558
      %560 = vrot.lane.b32.xlu0 %v538, 127
      %v561 = vpop.permute.xlu0 %560
      %562 = vrot.lane.b32.xlu0 %v539, 127
      %v563 = vpop.permute.xlu0 %562
      %vm564 = vcmask 1039360
      %v565 = vsel %vm564, %v541, %v543
      %v566 = vsel %vm564, %v543, %v545
      %v567 = vsel %vm564, %v547, %v549
      %v568 = vsel %vm564, %v549, %v551
      %v569 = vsel %vm564, %v553, %v555
      %v570 = vsel %vm564, %v555, %v557
      %v571 = vsel %vm564, %v559, %v561
      %v572 = vsel %vm564, %v561, %v563
      %vm585 = vcmask 523264
      %v587 = vsel %vm585, %v486, 0
      %v590 = vsel %vm585, %v487, 0
      %592 = vmatpush.bf16.msra.mxu0 0
      %593 = vmatpush.bf16.msra.mxu0 0
      %594 = vmatpush.bf16.msra.mxu0 0
      %595 = vmatpush.bf16.msra.mxu0 0
      %596 = vmatpush.bf16.msra.mxu0 %v571
      %597 = vmatpush.bf16.msra.mxu0 %v569
      %598 = vmatpush.bf16.msra.mxu0 %v567
      %599 = vmatpush.bf16.msra.mxu0 %v565
      %600 = vmatmul.bf16.gmra.mxu0 %v587
      %v601 = vpop.f32.mrf.mxu0
      %v602 = vadd.f32 0.0, %v601
      %v603 = vpop.f32.mrf.mxu0
      %v604 = vadd.f32 0.0, %v603
      %605 = vmatmul.bf16.gmra.mxu0 %v590
      %v606 = vpop.f32.mrf.mxu0
      %v607 = vadd.f32 0.0, %v606
      %v608 = vpop.f32.mrf.mxu0
      %v609 = vadd.f32 0.0, %v608
      %610 = vdwg.mxu0
      %611 = vmatpush.bf16.msra.mxu0 0
      %612 = vmatpush.bf16.msra.mxu0 0
      %613 = vmatpush.bf16.msra.mxu0 0
      %614 = vmatpush.bf16.msra.mxu0 0
      %615 = vmatpush.bf16.msra.mxu0 %v572
      %616 = vmatpush.bf16.msra.mxu0 %v570
      %617 = vmatpush.bf16.msra.mxu0 %v568
      %618 = vmatpush.bf16.msra.mxu0 %v566
      %619 = vmatmul.bf16.gmra.mxu0 %v587
      %v620 = vpop.f32.mrf.mxu0
      %v621 = vadd.f32 0.0, %v620
      %v622 = vpop.f32.mrf.mxu0
      %v623 = vadd.f32 0.0, %v622
      %624 = vmatmul.bf16.gmra.mxu0 %v590
      %v625 = vpop.f32.mrf.mxu0
      %v626 = vadd.f32 0.0, %v625
      %v627 = vpop.f32.mrf.mxu0
      %v628 = vadd.f32 0.0, %v627
      %629 = vdwg.mxu0
      %630 = vmatpush.bf16.msra.mxu0 0
      %631 = vmatpush.bf16.msra.mxu0 0
      %632 = vmatpush.bf16.msra.mxu0 0
      %633 = vmatpush.bf16.msra.mxu0 0
      %634 = vmatpush.bf16.msra.mxu0 %v563
      %635 = vmatpush.bf16.msra.mxu0 %v557
      %636 = vmatpush.bf16.msra.mxu0 %v551
      %637 = vmatpush.bf16.msra.mxu0 %v545
      %638 = vmatmul.bf16.gmra.mxu0 %v587
      %v639 = vpop.f32.mrf.mxu0
      %v640 = vadd.f32 0.0, %v639
      %v641 = vpop.f32.mrf.mxu0
      %v642 = vadd.f32 0.0, %v641
      %643 = vmatmul.bf16.gmra.mxu0 %v590
      %v644 = vpop.f32.mrf.mxu0
      %v645 = vadd.f32 0.0, %v644
      %v646 = vpop.f32.mrf.mxu0
      %v647 = vadd.f32 0.0, %v646
      %648 = vdwg.mxu0
      %v653 = vunpack.c.l.b16 %v469
      %v654 = vunpack.c.l.b16 %v470
      %v655 = vunpack.c.l.b16 %v471
      %v656 = vunpack.c.l.b16 %v472
      %v657 = vpack.c.b16 %v654, %v653
      %v658 = vpack.c.b16 %v656, %v655
      %v672 = vsel %vm585, %v657, 0
      %v675 = vsel %vm585, %v658, 0
      %677 = vmatpush.bf16.msra.mxu0 0
      %678 = vmatpush.bf16.msra.mxu0 0
      %679 = vmatpush.bf16.msra.mxu0 0
      %680 = vmatpush.bf16.msra.mxu0 0
      %681 = vmatpush.bf16.msra.mxu0 %v537
      %682 = vmatpush.bf16.msra.mxu0 %v534
      %683 = vmatpush.bf16.msra.mxu0 %v531
      %684 = vmatpush.bf16.msra.mxu0 %v528
      %685 = vmatmul.bf16.gmra.mxu0 %v672
      %v686 = vpop.f32.mrf.mxu0
      %v687 = vadd.f32 %v602, %v686
      %v688 = vpop.f32.mrf.mxu0
      %v689 = vadd.f32 %v604, %v688
      %690 = vmatmul.bf16.gmra.mxu0 %v675
      %v691 = vpop.f32.mrf.mxu0
      %v692 = vadd.f32 %v607, %v691
      %v693 = vpop.f32.mrf.mxu0
      %v694 = vadd.f32 %v609, %v693
      %695 = vdwg.mxu0
      %696 = vmatpush.bf16.msra.mxu0 0
      %697 = vmatpush.bf16.msra.mxu0 0
      %698 = vmatpush.bf16.msra.mxu0 0
      %699 = vmatpush.bf16.msra.mxu0 0
      %700 = vmatpush.bf16.msra.mxu0 %v538
      %701 = vmatpush.bf16.msra.mxu0 %v535
      %702 = vmatpush.bf16.msra.mxu0 %v532
      %703 = vmatpush.bf16.msra.mxu0 %v529
      %704 = vmatmul.bf16.gmra.mxu0 %v672
      %v705 = vpop.f32.mrf.mxu0
      %v706 = vadd.f32 %v621, %v705
      %v707 = vpop.f32.mrf.mxu0
      %v708 = vadd.f32 %v623, %v707
      %709 = vmatmul.bf16.gmra.mxu0 %v675
      %v710 = vpop.f32.mrf.mxu0
      %v711 = vadd.f32 %v626, %v710
      %v712 = vpop.f32.mrf.mxu0
      %v713 = vadd.f32 %v628, %v712
      %714 = vdwg.mxu0
      %715 = vmatpush.bf16.msra.mxu0 0
      %716 = vmatpush.bf16.msra.mxu0 0
      %717 = vmatpush.bf16.msra.mxu0 0
      %718 = vmatpush.bf16.msra.mxu0 0
      %719 = vmatpush.bf16.msra.mxu0 %v539
      %720 = vmatpush.bf16.msra.mxu0 %v536
      %721 = vmatpush.bf16.msra.mxu0 %v533
      %722 = vmatpush.bf16.msra.mxu0 %v530
      %723 = vmatmul.bf16.gmra.mxu0 %v672
      %v724 = vpop.f32.mrf.mxu0
      %v725 = vadd.f32 %v640, %v724
      %v726 = vpop.f32.mrf.mxu0
      %v727 = vadd.f32 %v642, %v726
      %728 = vmatmul.bf16.gmra.mxu0 %v675
      %v729 = vpop.f32.mrf.mxu0
      %v730 = vadd.f32 %v645, %v729
      %v731 = vpop.f32.mrf.mxu0
      %v732 = vadd.f32 %v647, %v731
      %733 = vdwg.mxu0
      %s734 = scalar_lea.vmem %s1, 32
      %v735 = vld [vmem:[%s734] sm:$0xf]
      %v736 = vld [vmem:[%s734 + $0x4] sm:$0xf]
      %v737 = vld [vmem:[%s734 + $0x8] sm:$0xf]
      %v738 = vld [vmem:[%s734 + $0xc] sm:$0xf]
      %v743 = vunpack.c.l.b16 %v735
      %v744 = vunpack.c.l.b16 %v736
      %v745 = vunpack.c.l.b16 %v737
      %v746 = vunpack.c.l.b16 %v738
      %v747 = vpack.c.b16 %v744, %v743
      %v748 = vpack.c.b16 %v746, %v745
      %749 = vrot.lane.b32.xlu0 %v528, 126
      %v750 = vpop.permute.xlu0 %749
      %751 = vrot.lane.b32.xlu0 %v529, 126
      %v752 = vpop.permute.xlu0 %751
      %753 = vrot.lane.b32.xlu0 %v530, 126
      %v754 = vpop.permute.xlu0 %753
      %755 = vrot.lane.b32.xlu0 %v531, 126
      %v756 = vpop.permute.xlu0 %755
      %757 = vrot.lane.b32.xlu0 %v532, 126
      %v758 = vpop.permute.xlu0 %757
      %759 = vrot.lane.b32.xlu0 %v533, 126
      %v760 = vpop.permute.xlu0 %759
      %761 = vrot.lane.b32.xlu0 %v534, 126
      %v762 = vpop.permute.xlu0 %761
      %763 = vrot.lane.b32.xlu0 %v535, 126
      %v764 = vpop.permute.xlu0 %763
      %765 = vrot.lane.b32.xlu0 %v536, 126
      %v766 = vpop.permute.xlu0 %765
      %767 = vrot.lane.b32.xlu0 %v537, 126
      %v768 = vpop.permute.xlu0 %767
      %769 = vrot.lane.b32.xlu0 %v538, 126
      %v770 = vpop.permute.xlu0 %769
      %771 = vrot.lane.b32.xlu0 %v539, 126
      %v772 = vpop.permute.xlu0 %771
      %vm773 = vcmask 1031168
      %v774 = vsel %vm773, %v750, %v752
      %v775 = vsel %vm773, %v752, %v754
      %v776 = vsel %vm773, %v756, %v758
      %v777 = vsel %vm773, %v758, %v760
      %v778 = vsel %vm773, %v762, %v764
      %v779 = vsel %vm773, %v764, %v766
      %v780 = vsel %vm773, %v768, %v770
      %v781 = vsel %vm773, %v770, %v772
      %v795 = vsel %vm585, %v747, 0
      %v798 = vsel %vm585, %v748, 0
      %800 = vmatpush.bf16.msra.mxu0 0
      %801 = vmatpush.bf16.msra.mxu0 0
      %802 = vmatpush.bf16.msra.mxu0 0
      %803 = vmatpush.bf16.msra.mxu0 0
      %804 = vmatpush.bf16.msra.mxu0 %v780
      %805 = vmatpush.bf16.msra.mxu0 %v778
      %806 = vmatpush.bf16.msra.mxu0 %v776
      %807 = vmatpush.bf16.msra.mxu0 %v774
      %808 = vmatmul.bf16.gmra.mxu0 %v795
      %v809 = vpop.f32.mrf.mxu0
      %v810 = vadd.f32 0.0, %v809
      %v811 = vpop.f32.mrf.mxu0
      %v812 = vadd.f32 0.0, %v811
      %813 = vmatmul.bf16.gmra.mxu0 %v798
      %v814 = vpop.f32.mrf.mxu0
      %v815 = vadd.f32 0.0, %v814
      %v816 = vpop.f32.mrf.mxu0
      %v817 = vadd.f32 0.0, %v816
      %818 = vdwg.mxu0
      %819 = vmatpush.bf16.msra.mxu0 0
      %820 = vmatpush.bf16.msra.mxu0 0
      %821 = vmatpush.bf16.msra.mxu0 0
      %822 = vmatpush.bf16.msra.mxu0 0
      %823 = vmatpush.bf16.msra.mxu0 %v781
      %824 = vmatpush.bf16.msra.mxu0 %v779
      %825 = vmatpush.bf16.msra.mxu0 %v777
      %826 = vmatpush.bf16.msra.mxu0 %v775
      %827 = vmatmul.bf16.gmra.mxu0 %v795
      %v828 = vpop.f32.mrf.mxu0
      %v829 = vadd.f32 0.0, %v828
      %v830 = vpop.f32.mrf.mxu0
      %v831 = vadd.f32 0.0, %v830
      %832 = vmatmul.bf16.gmra.mxu0 %v798
      %v833 = vpop.f32.mrf.mxu0
      %v834 = vadd.f32 0.0, %v833
      %v835 = vpop.f32.mrf.mxu0
      %v836 = vadd.f32 0.0, %v835
      %837 = vdwg.mxu0
      %838 = vmatpush.bf16.msra.mxu0 0
      %839 = vmatpush.bf16.msra.mxu0 0
      %840 = vmatpush.bf16.msra.mxu0 0
      %841 = vmatpush.bf16.msra.mxu0 0
      %842 = vmatpush.bf16.msra.mxu0 %v772
      %843 = vmatpush.bf16.msra.mxu0 %v766
      %844 = vmatpush.bf16.msra.mxu0 %v760
      %845 = vmatpush.bf16.msra.mxu0 %v754
      %846 = vmatmul.bf16.gmra.mxu0 %v795
      %v847 = vpop.f32.mrf.mxu0
      %v848 = vadd.f32 0.0, %v847
      %v849 = vpop.f32.mrf.mxu0
      %v850 = vadd.f32 0.0, %v849
      %851 = vmatmul.bf16.gmra.mxu0 %v798
      %v852 = vpop.f32.mrf.mxu0
      %v853 = vadd.f32 0.0, %v852
      %v854 = vpop.f32.mrf.mxu0
      %v855 = vadd.f32 0.0, %v854
      %856 = vdwg.mxu0
      %v857 = vadd.f32 %v687, %v810
      %v858 = vadd.f32 %v706, %v829
      %v859 = vadd.f32 %v725, %v848
      %v860 = vadd.f32 %v689, %v812
      %v861 = vadd.f32 %v708, %v831
      %v862 = vadd.f32 %v727, %v850
      %v863 = vadd.f32 %v692, %v815
      %v864 = vadd.f32 %v711, %v834
      %v865 = vadd.f32 %v730, %v853
      %v866 = vadd.f32 %v694, %v817
      %v867 = vadd.f32 %v713, %v836
      %v868 = vadd.f32 %v732, %v855
      %s869 = scalar_lea.vmem %s1, 48
      %v870 = vld [vmem:[%s869] sm:$0xf]
      %v871 = vld [vmem:[%s869 + $0x4] sm:$0xf]
      %v872 = vld [vmem:[%s869 + $0x8] sm:$0xf]
      %v873 = vld [vmem:[%s869 + $0xc] sm:$0xf]
      %v878 = vunpack.c.l.b16 %v870
      %v879 = vunpack.c.l.b16 %v871
      %v880 = vunpack.c.l.b16 %v872
      %v881 = vunpack.c.l.b16 %v873
      %v882 = vpack.c.b16 %v879, %v878
      %v883 = vpack.c.b16 %v881, %v880
      %884 = vrot.lane.b32.xlu0 %v528, 110
      %v885 = vpop.permute.xlu0 %884
      %886 = vrot.lane.b32.xlu0 %v529, 110
      %v887 = vpop.permute.xlu0 %886
      %888 = vrot.lane.b32.xlu0 %v530, 110
      %v889 = vpop.permute.xlu0 %888
      %890 = vrot.lane.b32.xlu0 %v531, 110
      %v891 = vpop.permute.xlu0 %890
      %892 = vrot.lane.b32.xlu0 %v532, 110
      %v893 = vpop.permute.xlu0 %892
      %894 = vrot.lane.b32.xlu0 %v533, 110
      %v895 = vpop.permute.xlu0 %894
      %896 = vrot.lane.b32.xlu0 %v534, 110
      %v897 = vpop.permute.xlu0 %896
      %898 = vrot.lane.b32.xlu0 %v535, 110
      %v899 = vpop.permute.xlu0 %898
      %900 = vrot.lane.b32.xlu0 %v536, 110
      %v901 = vpop.permute.xlu0 %900
      %902 = vrot.lane.b32.xlu0 %v537, 110
      %v903 = vpop.permute.xlu0 %902
      %904 = vrot.lane.b32.xlu0 %v538, 110
      %v905 = vpop.permute.xlu0 %904
      %906 = vrot.lane.b32.xlu0 %v539, 110
      %v907 = vpop.permute.xlu0 %906
      %vm908 = vcmask 900096
      %v909 = vsel %vm908, %v885, %v887
      %v910 = vsel %vm908, %v887, %v889
      %v911 = vsel %vm908, %v891, %v893
      %v912 = vsel %vm908, %v893, %v895
      %v913 = vsel %vm908, %v897, %v899
      %v914 = vsel %vm908, %v899, %v901
      %v915 = vsel %vm908, %v903, %v905
      %v916 = vsel %vm908, %v905, %v907
      %v930 = vsel %vm585, %v882, 0
      %v933 = vsel %vm585, %v883, 0
      %935 = vmatpush.bf16.msra.mxu0 0
      %936 = vmatpush.bf16.msra.mxu0 0
      %937 = vmatpush.bf16.msra.mxu0 0
      %938 = vmatpush.bf16.msra.mxu0 0
      %939 = vmatpush.bf16.msra.mxu0 %v915
      %940 = vmatpush.bf16.msra.mxu0 %v913
      %941 = vmatpush.bf16.msra.mxu0 %v911
      %942 = vmatpush.bf16.msra.mxu0 %v909
      %943 = vmatmul.bf16.gmra.mxu0 %v930
      %v944 = vpop.f32.mrf.mxu0
      %v945 = vadd.f32 0.0, %v944
      %v946 = vpop.f32.mrf.mxu0
      %v947 = vadd.f32 0.0, %v946
      %948 = vmatmul.bf16.gmra.mxu0 %v933
      %v949 = vpop.f32.mrf.mxu0
      %v950 = vadd.f32 0.0, %v949
      %v951 = vpop.f32.mrf.mxu0
      %v952 = vadd.f32 0.0, %v951
      %953 = vdwg.mxu0
      %954 = vmatpush.bf16.msra.mxu0 0
      %955 = vmatpush.bf16.msra.mxu0 0
      %956 = vmatpush.bf16.msra.mxu0 0
      %957 = vmatpush.bf16.msra.mxu0 0
      %958 = vmatpush.bf16.msra.mxu0 %v916
      %959 = vmatpush.bf16.msra.mxu0 %v914
      %960 = vmatpush.bf16.msra.mxu0 %v912
      %961 = vmatpush.bf16.msra.mxu0 %v910
      %962 = vmatmul.bf16.gmra.mxu0 %v930
      %v963 = vpop.f32.mrf.mxu0
      %v964 = vadd.f32 0.0, %v963
      %v965 = vpop.f32.mrf.mxu0
      %v966 = vadd.f32 0.0, %v965
      %967 = vmatmul.bf16.gmra.mxu0 %v933
      %v968 = vpop.f32.mrf.mxu0
      %v969 = vadd.f32 0.0, %v968
      %v970 = vpop.f32.mrf.mxu0
      %v971 = vadd.f32 0.0, %v970
      %972 = vdwg.mxu0
      %973 = vmatpush.bf16.msra.mxu0 0
      %974 = vmatpush.bf16.msra.mxu0 0
      %975 = vmatpush.bf16.msra.mxu0 0
      %976 = vmatpush.bf16.msra.mxu0 0
      %977 = vmatpush.bf16.msra.mxu0 %v907
      %978 = vmatpush.bf16.msra.mxu0 %v901
      %979 = vmatpush.bf16.msra.mxu0 %v895
      %980 = vmatpush.bf16.msra.mxu0 %v889
      %981 = vmatmul.bf16.gmra.mxu0 %v930
      %v982 = vpop.f32.mrf.mxu0
      %v983 = vadd.f32 0.0, %v982
      %v984 = vpop.f32.mrf.mxu0
      %v985 = vadd.f32 0.0, %v984
      %986 = vmatmul.bf16.gmra.mxu0 %v933
      %v987 = vpop.f32.mrf.mxu0
      %v988 = vadd.f32 0.0, %v987
      %v989 = vpop.f32.mrf.mxu0
      %v990 = vadd.f32 0.0, %v989
      %991 = vdwg.mxu0
      %v992 = vadd.f32 %v857, %v945
      %v993 = vadd.f32 %v858, %v964
      %v994 = vadd.f32 %v859, %v983
      %v995 = vadd.f32 %v860, %v947
      %v996 = vadd.f32 %v861, %v966
      %v997 = vadd.f32 %v862, %v985
      %v998 = vadd.f32 %v863, %v950
      %v999 = vadd.f32 %v864, %v969
      %v1000 = vadd.f32 %v865, %v988
      %v1001 = vadd.f32 %v866, %v952
      %v1002 = vadd.f32 %v867, %v971
      %v1003 = vadd.f32 %v868, %v990
      %s1004 = scalar_lea.vmem %s1, 64
      %v1005 = vld [vmem:[%s1004] sm:$0xf]
      %v1006 = vld [vmem:[%s1004 + $0x4] sm:$0xf]
      %v1007 = vld [vmem:[%s1004 + $0x8] sm:$0xf]
      %v1008 = vld [vmem:[%s1004 + $0xc] sm:$0xf]
      %v1013 = vunpack.c.l.b16 %v1005
      %v1014 = vunpack.c.l.b16 %v1006
      %v1015 = vunpack.c.l.b16 %v1007
      %v1016 = vunpack.c.l.b16 %v1008
      %v1017 = vpack.c.b16 %v1014, %v1013
      %v1018 = vpack.c.b16 %v1016, %v1015
      %1019 = vrot.lane.b32.xlu0 %v528, 109
      %v1020 = vpop.permute.xlu0 %1019
      %1021 = vrot.lane.b32.xlu0 %v529, 109
      %v1022 = vpop.permute.xlu0 %1021
      %1023 = vrot.lane.b32.xlu0 %v530, 109
      %v1024 = vpop.permute.xlu0 %1023
      %1025 = vrot.lane.b32.xlu0 %v531, 109
      %v1026 = vpop.permute.xlu0 %1025
      %1027 = vrot.lane.b32.xlu0 %v532, 109
      %v1028 = vpop.permute.xlu0 %1027
      %1029 = vrot.lane.b32.xlu0 %v533, 109
      %v1030 = vpop.permute.xlu0 %1029
      %1031 = vrot.lane.b32.xlu0 %v534, 109
      %v1032 = vpop.permute.xlu0 %1031
      %1033 = vrot.lane.b32.xlu0 %v535, 109
      %v1034 = vpop.permute.xlu0 %1033
      %1035 = vrot.lane.b32.xlu0 %v536, 109
      %v1036 = vpop.permute.xlu0 %1035
      %1037 = vrot.lane.b32.xlu0 %v537, 109
      %v1038 = vpop.permute.xlu0 %1037
      %1039 = vrot.lane.b32.xlu0 %v538, 109
      %v1040 = vpop.permute.xlu0 %1039
      %1041 = vrot.lane.b32.xlu0 %v539, 109
      %v1042 = vpop.permute.xlu0 %1041
      %vm1043 = vcmask 891904
      %v1044 = vsel %vm1043, %v1020, %v1022
      %v1045 = vsel %vm1043, %v1022, %v1024
      %v1046 = vsel %vm1043, %v1026, %v1028
      %v1047 = vsel %vm1043, %v1028, %v1030
      %v1048 = vsel %vm1043, %v1032, %v1034
      %v1049 = vsel %vm1043, %v1034, %v1036
      %v1050 = vsel %vm1043, %v1038, %v1040
      %v1051 = vsel %vm1043, %v1040, %v1042
      %v1065 = vsel %vm585, %v1017, 0
      %v1068 = vsel %vm585, %v1018, 0
      %1070 = vmatpush.bf16.msra.mxu0 0
      %1071 = vmatpush.bf16.msra.mxu0 0
      %1072 = vmatpush.bf16.msra.mxu0 0
      %1073 = vmatpush.bf16.msra.mxu0 0
      %1074 = vmatpush.bf16.msra.mxu0 %v1050
      %1075 = vmatpush.bf16.msra.mxu0 %v1048
      %1076 = vmatpush.bf16.msra.mxu0 %v1046
      %1077 = vmatpush.bf16.msra.mxu0 %v1044
      %1078 = vmatmul.bf16.gmra.mxu0 %v1065
      %v1079 = vpop.f32.mrf.mxu0
      %v1080 = vadd.f32 0.0, %v1079
      %v1081 = vpop.f32.mrf.mxu0
      %v1082 = vadd.f32 0.0, %v1081
      %1083 = vmatmul.bf16.gmra.mxu0 %v1068
      %v1084 = vpop.f32.mrf.mxu0
      %v1085 = vadd.f32 0.0, %v1084
      %v1086 = vpop.f32.mrf.mxu0
      %v1087 = vadd.f32 0.0, %v1086
      %1088 = vdwg.mxu0
      %1089 = vmatpush.bf16.msra.mxu0 0
      %1090 = vmatpush.bf16.msra.mxu0 0
      %1091 = vmatpush.bf16.msra.mxu0 0
      %1092 = vmatpush.bf16.msra.mxu0 0
      %1093 = vmatpush.bf16.msra.mxu0 %v1051
      %1094 = vmatpush.bf16.msra.mxu0 %v1049
      %1095 = vmatpush.bf16.msra.mxu0 %v1047
      %1096 = vmatpush.bf16.msra.mxu0 %v1045
      %1097 = vmatmul.bf16.gmra.mxu0 %v1065
      %v1098 = vpop.f32.mrf.mxu0
      %v1099 = vadd.f32 0.0, %v1098
      %v1100 = vpop.f32.mrf.mxu0
      %v1101 = vadd.f32 0.0, %v1100
      %1102 = vmatmul.bf16.gmra.mxu0 %v1068
      %v1103 = vpop.f32.mrf.mxu0
      %v1104 = vadd.f32 0.0, %v1103
      %v1105 = vpop.f32.mrf.mxu0
      %v1106 = vadd.f32 0.0, %v1105
      %1107 = vdwg.mxu0
      %1108 = vmatpush.bf16.msra.mxu0 0
      %1109 = vmatpush.bf16.msra.mxu0 0
      %1110 = vmatpush.bf16.msra.mxu0 0
      %1111 = vmatpush.bf16.msra.mxu0 0
      %1112 = vmatpush.bf16.msra.mxu0 %v1042
      %1113 = vmatpush.bf16.msra.mxu0 %v1036
      %1114 = vmatpush.bf16.msra.mxu0 %v1030
      %1115 = vmatpush.bf16.msra.mxu0 %v1024
      %1116 = vmatmul.bf16.gmra.mxu0 %v1065
      %v1117 = vpop.f32.mrf.mxu0
      %v1118 = vadd.f32 0.0, %v1117
      %v1119 = vpop.f32.mrf.mxu0
      %v1120 = vadd.f32 0.0, %v1119
      %1121 = vmatmul.bf16.gmra.mxu0 %v1068
      %v1122 = vpop.f32.mrf.mxu0
      %v1123 = vadd.f32 0.0, %v1122
      %v1124 = vpop.f32.mrf.mxu0
      %v1125 = vadd.f32 0.0, %v1124
      %1126 = vdwg.mxu0
      %v1127 = vadd.f32 %v992, %v1080
      %v1128 = vadd.f32 %v993, %v1099
      %v1129 = vadd.f32 %v994, %v1118
      %v1130 = vadd.f32 %v995, %v1082
      %v1131 = vadd.f32 %v996, %v1101
      %v1132 = vadd.f32 %v997, %v1120
      %v1133 = vadd.f32 %v998, %v1085
      %v1134 = vadd.f32 %v999, %v1104
      %v1135 = vadd.f32 %v1000, %v1123
      %v1136 = vadd.f32 %v1001, %v1087
      %v1137 = vadd.f32 %v1002, %v1106
      %v1138 = vadd.f32 %v1003, %v1125
      %s1139 = scalar_lea.vmem %s1, 80
      %v1140 = vld [vmem:[%s1139] sm:$0xf]
      %v1141 = vld [vmem:[%s1139 + $0x4] sm:$0xf]
      %v1142 = vld [vmem:[%s1139 + $0x8] sm:$0xf]
      %v1143 = vld [vmem:[%s1139 + $0xc] sm:$0xf]
      %v1148 = vunpack.c.l.b16 %v1140
      %v1149 = vunpack.c.l.b16 %v1141
      %v1150 = vunpack.c.l.b16 %v1142
      %v1151 = vunpack.c.l.b16 %v1143
      %v1152 = vpack.c.b16 %v1149, %v1148
      %v1153 = vpack.c.b16 %v1151, %v1150
      %1154 = vrot.lane.b32.xlu0 %v528, 108
      %v1155 = vpop.permute.xlu0 %1154
      %1156 = vrot.lane.b32.xlu0 %v529, 108
      %v1157 = vpop.permute.xlu0 %1156
      %1158 = vrot.lane.b32.xlu0 %v530, 108
      %v1159 = vpop.permute.xlu0 %1158
      %1160 = vrot.lane.b32.xlu0 %v531, 108
      %v1161 = vpop.permute.xlu0 %1160
      %1162 = vrot.lane.b32.xlu0 %v532, 108
      %v1163 = vpop.permute.xlu0 %1162
      %1164 = vrot.lane.b32.xlu0 %v533, 108
      %v1165 = vpop.permute.xlu0 %1164
      %1166 = vrot.lane.b32.xlu0 %v534, 108
      %v1167 = vpop.permute.xlu0 %1166
      %1168 = vrot.lane.b32.xlu0 %v535, 108
      %v1169 = vpop.permute.xlu0 %1168
      %1170 = vrot.lane.b32.xlu0 %v536, 108
      %v1171 = vpop.permute.xlu0 %1170
      %1172 = vrot.lane.b32.xlu0 %v537, 108
      %v1173 = vpop.permute.xlu0 %1172
      %1174 = vrot.lane.b32.xlu0 %v538, 108
      %v1175 = vpop.permute.xlu0 %1174
      %1176 = vrot.lane.b32.xlu0 %v539, 108
      %v1177 = vpop.permute.xlu0 %1176
      %vm1178 = vcmask 883712
      %v1179 = vsel %vm1178, %v1155, %v1157
      %v1180 = vsel %vm1178, %v1157, %v1159
      %v1181 = vsel %vm1178, %v1161, %v1163
      %v1182 = vsel %vm1178, %v1163, %v1165
      %v1183 = vsel %vm1178, %v1167, %v1169
      %v1184 = vsel %vm1178, %v1169, %v1171
      %v1185 = vsel %vm1178, %v1173, %v1175
      %v1186 = vsel %vm1178, %v1175, %v1177
      %v1200 = vsel %vm585, %v1152, 0
      %v1203 = vsel %vm585, %v1153, 0
      %1205 = vmatpush.bf16.msra.mxu0 0
      %1206 = vmatpush.bf16.msra.mxu0 0
      %1207 = vmatpush.bf16.msra.mxu0 0
      %1208 = vmatpush.bf16.msra.mxu0 0
      %1209 = vmatpush.bf16.msra.mxu0 %v1185
      %1210 = vmatpush.bf16.msra.mxu0 %v1183
      %1211 = vmatpush.bf16.msra.mxu0 %v1181
      %1212 = vmatpush.bf16.msra.mxu0 %v1179
      %1213 = vmatmul.bf16.gmra.mxu0 %v1200
      %v1214 = vpop.f32.mrf.mxu0
      %v1215 = vadd.f32 0.0, %v1214
      %v1216 = vpop.f32.mrf.mxu0
      %v1217 = vadd.f32 0.0, %v1216
      %1218 = vmatmul.bf16.gmra.mxu0 %v1203
      %v1219 = vpop.f32.mrf.mxu0
      %v1220 = vadd.f32 0.0, %v1219
      %v1221 = vpop.f32.mrf.mxu0
      %v1222 = vadd.f32 0.0, %v1221
      %1223 = vdwg.mxu0
      %1224 = vmatpush.bf16.msra.mxu0 0
      %1225 = vmatpush.bf16.msra.mxu0 0
      %1226 = vmatpush.bf16.msra.mxu0 0
      %1227 = vmatpush.bf16.msra.mxu0 0
      %1228 = vmatpush.bf16.msra.mxu0 %v1186
      %1229 = vmatpush.bf16.msra.mxu0 %v1184
      %1230 = vmatpush.bf16.msra.mxu0 %v1182
      %1231 = vmatpush.bf16.msra.mxu0 %v1180
      %1232 = vmatmul.bf16.gmra.mxu0 %v1200
      %v1233 = vpop.f32.mrf.mxu0
      %v1234 = vadd.f32 0.0, %v1233
      %v1235 = vpop.f32.mrf.mxu0
      %v1236 = vadd.f32 0.0, %v1235
      %1237 = vmatmul.bf16.gmra.mxu0 %v1203
      %v1238 = vpop.f32.mrf.mxu0
      %v1239 = vadd.f32 0.0, %v1238
      %v1240 = vpop.f32.mrf.mxu0
      %v1241 = vadd.f32 0.0, %v1240
      %1242 = vdwg.mxu0
      %1243 = vmatpush.bf16.msra.mxu0 0
      %1244 = vmatpush.bf16.msra.mxu0 0
      %1245 = vmatpush.bf16.msra.mxu0 0
      %1246 = vmatpush.bf16.msra.mxu0 0
      %1247 = vmatpush.bf16.msra.mxu0 %v1177
      %1248 = vmatpush.bf16.msra.mxu0 %v1171
      %1249 = vmatpush.bf16.msra.mxu0 %v1165
      %1250 = vmatpush.bf16.msra.mxu0 %v1159
      %1251 = vmatmul.bf16.gmra.mxu0 %v1200
      %v1252 = vpop.f32.mrf.mxu0
      %v1253 = vadd.f32 0.0, %v1252
      %v1254 = vpop.f32.mrf.mxu0
      %v1255 = vadd.f32 0.0, %v1254
      %1256 = vmatmul.bf16.gmra.mxu0 %v1203
      %v1257 = vpop.f32.mrf.mxu0
      %v1258 = vadd.f32 0.0, %v1257
      %v1259 = vpop.f32.mrf.mxu0
      %v1260 = vadd.f32 0.0, %v1259
      %1261 = vdwg.mxu0
      %v1262 = vadd.f32 %v1127, %v1215
      %v1263 = vadd.f32 %v1128, %v1234
      %v1264 = vadd.f32 %v1129, %v1253
      %v1265 = vadd.f32 %v1130, %v1217
      %v1266 = vadd.f32 %v1131, %v1236
      %v1267 = vadd.f32 %v1132, %v1255
      %v1268 = vadd.f32 %v1133, %v1220
      %v1269 = vadd.f32 %v1134, %v1239
      %v1270 = vadd.f32 %v1135, %v1258
      %v1271 = vadd.f32 %v1136, %v1222
      %v1272 = vadd.f32 %v1137, %v1241
      %v1273 = vadd.f32 %v1138, %v1260
      %s1274 = scalar_lea.vmem %s1, 96
      %v1275 = vld [vmem:[%s1274] sm:$0xf]
      %v1276 = vld [vmem:[%s1274 + $0x4] sm:$0xf]
      %v1277 = vld [vmem:[%s1274 + $0x8] sm:$0xf]
      %v1278 = vld [vmem:[%s1274 + $0xc] sm:$0xf]
      %v1283 = vunpack.c.l.b16 %v1275
      %v1284 = vunpack.c.l.b16 %v1276
      %v1285 = vunpack.c.l.b16 %v1277
      %v1286 = vunpack.c.l.b16 %v1278
      %v1287 = vpack.c.b16 %v1284, %v1283
      %v1288 = vpack.c.b16 %v1286, %v1285
      %1289 = vrot.lane.b32.xlu0 %v528, 92
      %v1290 = vpop.permute.xlu0 %1289
      %1291 = vrot.lane.b32.xlu0 %v529, 92
      %v1292 = vpop.permute.xlu0 %1291
      %1293 = vrot.lane.b32.xlu0 %v530, 92
      %v1294 = vpop.permute.xlu0 %1293
      %1295 = vrot.lane.b32.xlu0 %v531, 92
      %v1296 = vpop.permute.xlu0 %1295
      %1297 = vrot.lane.b32.xlu0 %v532, 92
      %v1298 = vpop.permute.xlu0 %1297
      %1299 = vrot.lane.b32.xlu0 %v533, 92
      %v1300 = vpop.permute.xlu0 %1299
      %1301 = vrot.lane.b32.xlu0 %v534, 92
      %v1302 = vpop.permute.xlu0 %1301
      %1303 = vrot.lane.b32.xlu0 %v535, 92
      %v1304 = vpop.permute.xlu0 %1303
      %1305 = vrot.lane.b32.xlu0 %v536, 92
      %v1306 = vpop.permute.xlu0 %1305
      %1307 = vrot.lane.b32.xlu0 %v537, 92
      %v1308 = vpop.permute.xlu0 %1307
      %1309 = vrot.lane.b32.xlu0 %v538, 92
      %v1310 = vpop.permute.xlu0 %1309
      %1311 = vrot.lane.b32.xlu0 %v539, 92
      %v1312 = vpop.permute.xlu0 %1311
      %vm1313 = vcmask 752640
      %v1314 = vsel %vm1313, %v1290, %v1292
      %v1315 = vsel %vm1313, %v1292, %v1294
      %v1316 = vsel %vm1313, %v1296, %v1298
      %v1317 = vsel %vm1313, %v1298, %v1300
      %v1318 = vsel %vm1313, %v1302, %v1304
      %v1319 = vsel %vm1313, %v1304, %v1306
      %v1320 = vsel %vm1313, %v1308, %v1310
      %v1321 = vsel %vm1313, %v1310, %v1312
      %v1335 = vsel %vm585, %v1287, 0
      %v1338 = vsel %vm585, %v1288, 0
      %1340 = vmatpush.bf16.msra.mxu0 0
      %1341 = vmatpush.bf16.msra.mxu0 0
      %1342 = vmatpush.bf16.msra.mxu0 0
      %1343 = vmatpush.bf16.msra.mxu0 0
      %1344 = vmatpush.bf16.msra.mxu0 %v1320
      %1345 = vmatpush.bf16.msra.mxu0 %v1318
      %1346 = vmatpush.bf16.msra.mxu0 %v1316
      %1347 = vmatpush.bf16.msra.mxu0 %v1314
      %1348 = vmatmul.bf16.gmra.mxu0 %v1335
      %v1349 = vpop.f32.mrf.mxu0
      %v1350 = vadd.f32 0.0, %v1349
      %v1351 = vpop.f32.mrf.mxu0
      %v1352 = vadd.f32 0.0, %v1351
      %1353 = vmatmul.bf16.gmra.mxu0 %v1338
      %v1354 = vpop.f32.mrf.mxu0
      %v1355 = vadd.f32 0.0, %v1354
      %v1356 = vpop.f32.mrf.mxu0
      %v1357 = vadd.f32 0.0, %v1356
      %1358 = vdwg.mxu0
      %1359 = vmatpush.bf16.msra.mxu0 0
      %1360 = vmatpush.bf16.msra.mxu0 0
      %1361 = vmatpush.bf16.msra.mxu0 0
      %1362 = vmatpush.bf16.msra.mxu0 0
      %1363 = vmatpush.bf16.msra.mxu0 %v1321
      %1364 = vmatpush.bf16.msra.mxu0 %v1319
      %1365 = vmatpush.bf16.msra.mxu0 %v1317
      %1366 = vmatpush.bf16.msra.mxu0 %v1315
      %1367 = vmatmul.bf16.gmra.mxu0 %v1335
      %v1368 = vpop.f32.mrf.mxu0
      %v1369 = vadd.f32 0.0, %v1368
      %v1370 = vpop.f32.mrf.mxu0
      %v1371 = vadd.f32 0.0, %v1370
      %1372 = vmatmul.bf16.gmra.mxu0 %v1338
      %v1373 = vpop.f32.mrf.mxu0
      %v1374 = vadd.f32 0.0, %v1373
      %v1375 = vpop.f32.mrf.mxu0
      %v1376 = vadd.f32 0.0, %v1375
      %1377 = vdwg.mxu0
      %1378 = vmatpush.bf16.msra.mxu0 0
      %1379 = vmatpush.bf16.msra.mxu0 0
      %1380 = vmatpush.bf16.msra.mxu0 0
      %1381 = vmatpush.bf16.msra.mxu0 0
      %1382 = vmatpush.bf16.msra.mxu0 %v1312
      %1383 = vmatpush.bf16.msra.mxu0 %v1306
      %1384 = vmatpush.bf16.msra.mxu0 %v1300
      %1385 = vmatpush.bf16.msra.mxu0 %v1294
      %1386 = vmatmul.bf16.gmra.mxu0 %v1335
      %v1387 = vpop.f32.mrf.mxu0
      %v1388 = vadd.f32 0.0, %v1387
      %v1389 = vpop.f32.mrf.mxu0
      %v1390 = vadd.f32 0.0, %v1389
      %1391 = vmatmul.bf16.gmra.mxu0 %v1338
      %v1392 = vpop.f32.mrf.mxu0
      %v1393 = vadd.f32 0.0, %v1392
      %v1394 = vpop.f32.mrf.mxu0
      %v1395 = vadd.f32 0.0, %v1394
      %1396 = vdwg.mxu0
      %v1397 = vadd.f32 %v1262, %v1350
      %v1398 = vadd.f32 %v1263, %v1369
      %v1399 = vadd.f32 %v1264, %v1388
      %v1400 = vadd.f32 %v1265, %v1352
      %v1401 = vadd.f32 %v1266, %v1371
      %v1402 = vadd.f32 %v1267, %v1390
      %v1403 = vadd.f32 %v1268, %v1355
      %v1404 = vadd.f32 %v1269, %v1374
      %v1405 = vadd.f32 %v1270, %v1393
      %v1406 = vadd.f32 %v1271, %v1357
      %v1407 = vadd.f32 %v1272, %v1376
      %v1408 = vadd.f32 %v1273, %v1395
      %s1409 = scalar_lea.vmem %s1, 112
      %v1410 = vld [vmem:[%s1409] sm:$0xf]
      %v1411 = vld [vmem:[%s1409 + $0x4] sm:$0xf]
      %v1412 = vld [vmem:[%s1409 + $0x8] sm:$0xf]
      %v1413 = vld [vmem:[%s1409 + $0xc] sm:$0xf]
      %v1418 = vunpack.c.l.b16 %v1410
      %v1419 = vunpack.c.l.b16 %v1411
      %v1420 = vunpack.c.l.b16 %v1412
      %v1421 = vunpack.c.l.b16 %v1413
      %v1422 = vpack.c.b16 %v1419, %v1418
      %v1423 = vpack.c.b16 %v1421, %v1420
      %1424 = vrot.lane.b32.xlu0 %v528, 91
      %v1425 = vpop.permute.xlu0 %1424
      %1426 = vrot.lane.b32.xlu0 %v529, 91
      %v1427 = vpop.permute.xlu0 %1426
      %1428 = vrot.lane.b32.xlu0 %v530, 91
      %v1429 = vpop.permute.xlu0 %1428
      %1430 = vrot.lane.b32.xlu0 %v531, 91
      %v1431 = vpop.permute.xlu0 %1430
      %1432 = vrot.lane.b32.xlu0 %v532, 91
      %v1433 = vpop.permute.xlu0 %1432
      %1434 = vrot.lane.b32.xlu0 %v533, 91
      %v1435 = vpop.permute.xlu0 %1434
      %1436 = vrot.lane.b32.xlu0 %v534, 91
      %v1437 = vpop.permute.xlu0 %1436
      %1438 = vrot.lane.b32.xlu0 %v535, 91
      %v1439 = vpop.permute.xlu0 %1438
      %1440 = vrot.lane.b32.xlu0 %v536, 91
      %v1441 = vpop.permute.xlu0 %1440
      %1442 = vrot.lane.b32.xlu0 %v537, 91
      %v1443 = vpop.permute.xlu0 %1442
      %1444 = vrot.lane.b32.xlu0 %v538, 91
      %v1445 = vpop.permute.xlu0 %1444
      %1446 = vrot.lane.b32.xlu0 %v539, 91
      %v1447 = vpop.permute.xlu0 %1446
      %vm1448 = vcmask 744448
      %v1449 = vsel %vm1448, %v1425, %v1427
      %v1450 = vsel %vm1448, %v1427, %v1429
      %v1451 = vsel %vm1448, %v1431, %v1433
      %v1452 = vsel %vm1448, %v1433, %v1435
      %v1453 = vsel %vm1448, %v1437, %v1439
      %v1454 = vsel %vm1448, %v1439, %v1441
      %v1455 = vsel %vm1448, %v1443, %v1445
      %v1456 = vsel %vm1448, %v1445, %v1447
      %v1470 = vsel %vm585, %v1422, 0
      %v1473 = vsel %vm585, %v1423, 0
      %1475 = vmatpush.bf16.msra.mxu0 0
      %1476 = vmatpush.bf16.msra.mxu0 0
      %1477 = vmatpush.bf16.msra.mxu0 0
      %1478 = vmatpush.bf16.msra.mxu0 0
      %1479 = vmatpush.bf16.msra.mxu0 %v1455
      %1480 = vmatpush.bf16.msra.mxu0 %v1453
      %1481 = vmatpush.bf16.msra.mxu0 %v1451
      %1482 = vmatpush.bf16.msra.mxu0 %v1449
      %1483 = vmatmul.bf16.gmra.mxu0 %v1470
      %v1484 = vpop.f32.mrf.mxu0
      %v1485 = vadd.f32 0.0, %v1484
      %v1486 = vpop.f32.mrf.mxu0
      %v1487 = vadd.f32 0.0, %v1486
      %1488 = vmatmul.bf16.gmra.mxu0 %v1473
      %v1489 = vpop.f32.mrf.mxu0
      %v1490 = vadd.f32 0.0, %v1489
      %v1491 = vpop.f32.mrf.mxu0
      %v1492 = vadd.f32 0.0, %v1491
      %1493 = vdwg.mxu0
      %1494 = vmatpush.bf16.msra.mxu0 0
      %1495 = vmatpush.bf16.msra.mxu0 0
      %1496 = vmatpush.bf16.msra.mxu0 0
      %1497 = vmatpush.bf16.msra.mxu0 0
      %1498 = vmatpush.bf16.msra.mxu0 %v1456
      %1499 = vmatpush.bf16.msra.mxu0 %v1454
      %1500 = vmatpush.bf16.msra.mxu0 %v1452
      %1501 = vmatpush.bf16.msra.mxu0 %v1450
      %1502 = vmatmul.bf16.gmra.mxu0 %v1470
      %v1503 = vpop.f32.mrf.mxu0
      %v1504 = vadd.f32 0.0, %v1503
      %v1505 = vpop.f32.mrf.mxu0
      %v1506 = vadd.f32 0.0, %v1505
      %1507 = vmatmul.bf16.gmra.mxu0 %v1473
      %v1508 = vpop.f32.mrf.mxu0
      %v1509 = vadd.f32 0.0, %v1508
      %v1510 = vpop.f32.mrf.mxu0
      %v1511 = vadd.f32 0.0, %v1510
      %1512 = vdwg.mxu0
      %1513 = vmatpush.bf16.msra.mxu0 0
      %1514 = vmatpush.bf16.msra.mxu0 0
      %1515 = vmatpush.bf16.msra.mxu0 0
      %1516 = vmatpush.bf16.msra.mxu0 0
      %1517 = vmatpush.bf16.msra.mxu0 %v1447
      %1518 = vmatpush.bf16.msra.mxu0 %v1441
      %1519 = vmatpush.bf16.msra.mxu0 %v1435
      %1520 = vmatpush.bf16.msra.mxu0 %v1429
      %1521 = vmatmul.bf16.gmra.mxu0 %v1470
      %v1522 = vpop.f32.mrf.mxu0
      %v1523 = vadd.f32 0.0, %v1522
      %v1524 = vpop.f32.mrf.mxu0
      %v1525 = vadd.f32 0.0, %v1524
      %1526 = vmatmul.bf16.gmra.mxu0 %v1473
      %v1527 = vpop.f32.mrf.mxu0
      %v1528 = vadd.f32 0.0, %v1527
      %v1529 = vpop.f32.mrf.mxu0
      %v1530 = vadd.f32 0.0, %v1529
      %1531 = vdwg.mxu0
      %v1532 = vadd.f32 %v1397, %v1485
      %v1533 = vadd.f32 %v1398, %v1504
      %v1534 = vadd.f32 %v1399, %v1523
      %v1535 = vadd.f32 %v1400, %v1487
      %v1536 = vadd.f32 %v1401, %v1506
      %v1537 = vadd.f32 %v1402, %v1525
      %v1538 = vadd.f32 %v1403, %v1490
      %v1539 = vadd.f32 %v1404, %v1509
      %v1540 = vadd.f32 %v1405, %v1528
      %v1541 = vadd.f32 %v1406, %v1492
      %v1542 = vadd.f32 %v1407, %v1511
      %v1543 = vadd.f32 %v1408, %v1530
      %s1544 = scalar_lea.vmem %s1, 128
      %v1545 = vld [vmem:[%s1544] sm:$0xf]
      %v1546 = vld [vmem:[%s1544 + $0x4] sm:$0xf]
      %v1547 = vld [vmem:[%s1544 + $0x8] sm:$0xf]
      %v1548 = vld [vmem:[%s1544 + $0xc] sm:$0xf]
      %v1553 = vunpack.c.l.b16 %v1545
      %v1554 = vunpack.c.l.b16 %v1546
      %v1555 = vunpack.c.l.b16 %v1547
      %v1556 = vunpack.c.l.b16 %v1548
      %v1557 = vpack.c.b16 %v1554, %v1553
      %v1558 = vpack.c.b16 %v1556, %v1555
      %1559 = vrot.lane.b32.xlu0 %v528, 90
      %v1560 = vpop.permute.xlu0 %1559
      %1561 = vrot.lane.b32.xlu0 %v529, 90
      %v1562 = vpop.permute.xlu0 %1561
      %1563 = vrot.lane.b32.xlu0 %v530, 90
      %v1564 = vpop.permute.xlu0 %1563
      %1565 = vrot.lane.b32.xlu0 %v531, 90
      %v1566 = vpop.permute.xlu0 %1565
      %1567 = vrot.lane.b32.xlu0 %v532, 90
      %v1568 = vpop.permute.xlu0 %1567
      %1569 = vrot.lane.b32.xlu0 %v533, 90
      %v1570 = vpop.permute.xlu0 %1569
      %1571 = vrot.lane.b32.xlu0 %v534, 90
      %v1572 = vpop.permute.xlu0 %1571
      %1573 = vrot.lane.b32.xlu0 %v535, 90
      %v1574 = vpop.permute.xlu0 %1573
      %1575 = vrot.lane.b32.xlu0 %v536, 90
      %v1576 = vpop.permute.xlu0 %1575
      %1577 = vrot.lane.b32.xlu0 %v537, 90
      %v1578 = vpop.permute.xlu0 %1577
      %1579 = vrot.lane.b32.xlu0 %v538, 90
      %v1580 = vpop.permute.xlu0 %1579
      %1581 = vrot.lane.b32.xlu0 %v539, 90
      %v1582 = vpop.permute.xlu0 %1581
      %vm1583 = vcmask 736256
      %v1584 = vsel %vm1583, %v1560, %v1562
      %v1585 = vsel %vm1583, %v1562, %v1564
      %v1586 = vsel %vm1583, %v1566, %v1568
      %v1587 = vsel %vm1583, %v1568, %v1570
      %v1588 = vsel %vm1583, %v1572, %v1574
      %v1589 = vsel %vm1583, %v1574, %v1576
      %v1590 = vsel %vm1583, %v1578, %v1580
      %v1591 = vsel %vm1583, %v1580, %v1582
      %v1605 = vsel %vm585, %v1557, 0
      %v1608 = vsel %vm585, %v1558, 0
      %1610 = vmatpush.bf16.msra.mxu0 0
      %1611 = vmatpush.bf16.msra.mxu0 0
      %1612 = vmatpush.bf16.msra.mxu0 0
      %1613 = vmatpush.bf16.msra.mxu0 0
      %1614 = vmatpush.bf16.msra.mxu0 %v1590
      %1615 = vmatpush.bf16.msra.mxu0 %v1588
      %1616 = vmatpush.bf16.msra.mxu0 %v1586
      %1617 = vmatpush.bf16.msra.mxu0 %v1584
      %1618 = vmatmul.bf16.gmra.mxu0 %v1605
      %v1619 = vpop.f32.mrf.mxu0
      %v1620 = vadd.f32 0.0, %v1619
      %v1621 = vpop.f32.mrf.mxu0
      %v1622 = vadd.f32 0.0, %v1621
      %1623 = vmatmul.bf16.gmra.mxu0 %v1608
      %v1624 = vpop.f32.mrf.mxu0
      %v1625 = vadd.f32 0.0, %v1624
      %v1626 = vpop.f32.mrf.mxu0
      %v1627 = vadd.f32 0.0, %v1626
      %1628 = vdwg.mxu0
      %1629 = vmatpush.bf16.msra.mxu0 0
      %1630 = vmatpush.bf16.msra.mxu0 0
      %1631 = vmatpush.bf16.msra.mxu0 0
      %1632 = vmatpush.bf16.msra.mxu0 0
      %1633 = vmatpush.bf16.msra.mxu0 %v1591
      %1634 = vmatpush.bf16.msra.mxu0 %v1589
      %1635 = vmatpush.bf16.msra.mxu0 %v1587
      %1636 = vmatpush.bf16.msra.mxu0 %v1585
      %1637 = vmatmul.bf16.gmra.mxu0 %v1605
      %v1638 = vpop.f32.mrf.mxu0
      %v1639 = vadd.f32 0.0, %v1638
      %v1640 = vpop.f32.mrf.mxu0
      %v1641 = vadd.f32 0.0, %v1640
      %1642 = vmatmul.bf16.gmra.mxu0 %v1608
      %v1643 = vpop.f32.mrf.mxu0
      %v1644 = vadd.f32 0.0, %v1643
      %v1645 = vpop.f32.mrf.mxu0
      %v1646 = vadd.f32 0.0, %v1645
      %1647 = vdwg.mxu0
      %1648 = vmatpush.bf16.msra.mxu0 0
      %1649 = vmatpush.bf16.msra.mxu0 0
      %1650 = vmatpush.bf16.msra.mxu0 0
      %1651 = vmatpush.bf16.msra.mxu0 0
      %1652 = vmatpush.bf16.msra.mxu0 %v1582
      %1653 = vmatpush.bf16.msra.mxu0 %v1576
      %1654 = vmatpush.bf16.msra.mxu0 %v1570
      %1655 = vmatpush.bf16.msra.mxu0 %v1564
      %1656 = vmatmul.bf16.gmra.mxu0 %v1605
      %v1657 = vpop.f32.mrf.mxu0
      %v1658 = vadd.f32 0.0, %v1657
      %v1659 = vpop.f32.mrf.mxu0
      %v1660 = vadd.f32 0.0, %v1659
      %1661 = vmatmul.bf16.gmra.mxu0 %v1608
      %v1662 = vpop.f32.mrf.mxu0
      %v1663 = vadd.f32 0.0, %v1662
      %v1664 = vpop.f32.mrf.mxu0
      %v1665 = vadd.f32 0.0, %v1664
      %1666 = vdwg.mxu0
      %v1667 = vadd.f32 %v1532, %v1620
      %v1668 = vadd.f32 %v1533, %v1639
      %v1669 = vadd.f32 %v1534, %v1658
      %v1670 = vadd.f32 %v1535, %v1622
      %v1671 = vadd.f32 %v1536, %v1641
      %v1672 = vadd.f32 %v1537, %v1660
      %v1673 = vadd.f32 %v1538, %v1625
      %v1674 = vadd.f32 %v1539, %v1644
      %v1675 = vadd.f32 %v1540, %v1663
      %v1676 = vadd.f32 %v1541, %v1627
      %v1677 = vadd.f32 %v1542, %v1646
      %v1678 = vadd.f32 %v1543, %v1665
      %v1679 = vld [vmem:[%s2] sm:$0xff]
      %v1680 = vld [vmem:[%s2 + $0x8] sm:$0xff]
      %v1681 = vld [vmem:[%s2 + $0x10] sm:$0xff]
      %v1682 = vld [vmem:[%s2 + $0x18] sm:$0xff]
      %1684 = vset.pattern.permute.xlu0 0
      %1685 = vperm.xlu0 %1684, %v1679
      %v1686 = vpop.permute.xlu0 %1685
      %1689 = vset.pattern.permute.xlu0 0
      %1690 = vperm.xlu0 %1689, %v1680
      %v1691 = vpop.permute.xlu0 %1690
      %1694 = vset.pattern.permute.xlu0 0
      %1695 = vperm.xlu0 %1694, %v1681
      %v1696 = vpop.permute.xlu0 %1695
      %1699 = vset.pattern.permute.xlu0 0
      %1700 = vperm.xlu0 %1699, %v1682
      %v1701 = vpop.permute.xlu0 %1700
      %v1703 = vadd.f32 %v1667, %v1686
      %v1704 = vadd.f32 %v1668, %v1686
      %v1705 = vadd.f32 %v1669, %v1686
      %v1706 = vadd.f32 %v1670, %v1691
      %v1707 = vadd.f32 %v1671, %v1691
      %v1708 = vadd.f32 %v1672, %v1691
      %v1709 = vadd.f32 %v1673, %v1696
      %v1710 = vadd.f32 %v1674, %v1696
      %v1711 = vadd.f32 %v1675, %v1696
      %v1712 = vadd.f32 %v1676, %v1701
      %v1713 = vadd.f32 %v1677, %v1701
      %v1714 = vadd.f32 %v1678, %v1701
      %v1715 = vmax.f32 %v1703, 0.0
      %v1716 = vmax.f32 %v1704, 0.0
      %v1717 = vmax.f32 %v1705, 0.0
      %v1718 = vmax.f32 %v1706, 0.0
      %v1719 = vmax.f32 %v1707, 0.0
      %v1720 = vmax.f32 %v1708, 0.0
      %v1721 = vmax.f32 %v1709, 0.0
      %v1722 = vmax.f32 %v1710, 0.0
      %v1723 = vmax.f32 %v1711, 0.0
      %v1724 = vmax.f32 %v1712, 0.0
      %v1725 = vmax.f32 %v1713, 0.0
      %v1726 = vmax.f32 %v1714, 0.0
      %v1727 = vpack.c.bf16 %v1716, %v1715
      %v1728 = vpack.c.bf16 %v1717, %v1717
      %v1729 = vpack.c.bf16 %v1719, %v1718
      %v1730 = vpack.c.bf16 %v1720, %v1720
      %v1731 = vpack.c.bf16 %v1722, %v1721
      %v1732 = vpack.c.bf16 %v1723, %v1723
      %v1733 = vpack.c.bf16 %v1725, %v1724
      %v1734 = vpack.c.bf16 %v1726, %v1726
      %1743 = vrot.lane.b32.xlu0 %v1727, 19
      %v1744 = vpop.permute.xlu0 %1743
      %1745 = vrot.lane.b32.xlu0 %v1728, 19
      %v1746 = vpop.permute.xlu0 %1745
      %1747 = vrot.lane.b32.xlu0 %v1729, 19
      %v1748 = vpop.permute.xlu0 %1747
      %1749 = vrot.lane.b32.xlu0 %v1730, 19
      %v1750 = vpop.permute.xlu0 %1749
      %1751 = vrot.lane.b32.xlu0 %v1731, 19
      %v1752 = vpop.permute.xlu0 %1751
      %1753 = vrot.lane.b32.xlu0 %v1732, 19
      %v1754 = vpop.permute.xlu0 %1753
      %1755 = vrot.lane.b32.xlu0 %v1733, 19
      %v1756 = vpop.permute.xlu0 %1755
      %1757 = vrot.lane.b32.xlu0 %v1734, 19
      %v1758 = vpop.permute.xlu0 %1757
      %v1759 = vrot.slane %v1744, 4
      %v1760 = vrot.slane %v1748, 4
      %v1761 = vrot.slane %v1752, 4
      %v1762 = vrot.slane %v1756, 4
      %vm1763 = vcmask 154624
      %v1764 = vsel %vm1763, %v1759, %v1744
      %v1765 = vsel %vm1763, %v1759, %v1746
      %v1766 = vsel %vm1763, %v1760, %v1748
      %v1767 = vsel %vm1763, %v1760, %v1750
      %v1768 = vsel %vm1763, %v1761, %v1752
      %v1769 = vsel %vm1763, %v1761, %v1754
      %v1770 = vsel %vm1763, %v1762, %v1756
      %v1771 = vsel %vm1763, %v1762, %v1758
      %vm1780 = vcmask 1043608
      %vm1781 = vcmask 1047556
      %vm1782 = vmor %vm1781, %vm1780
      %1783 = vst.msk [vmem:[#allocation2] sm:$0xff] %vm1782, %v1764
      %vm1784 = vcmask 412672
      %1785 = vst.msk [vmem:[#allocation2 + $0x8] sm:$0xf] %vm1784, %v1765
      %1786 = vst.msk [vmem:[#allocation2 + $0xc] sm:$0xff] %vm1782, %v1766
      %1787 = vst.msk [vmem:[#allocation2 + $0x14] sm:$0xf] %vm1784, %v1767
      %1788 = vst.msk [vmem:[#allocation2 + $0x18] sm:$0xff] %vm1782, %v1768
      %1789 = vst.msk [vmem:[#allocation2 + $0x20] sm:$0xf] %vm1784, %v1769
      %1790 = vst.msk [vmem:[#allocation2 + $0x24] sm:$0xff] %vm1782, %v1770
      %1791 = vst.msk [vmem:[#allocation2 + $0x2c] sm:$0xf] %vm1784, %v1771
      %v1792 = vld [vmem:[#allocation2] sm:$0xff]
      %v1793 = vld [vmem:[#allocation2 + $0x8] sm:$0xf]
      %v1794 = vld [vmem:[#allocation2 + $0xc] sm:$0xff]
      %v1795 = vld [vmem:[#allocation2 + $0x14] sm:$0xf]
      %v1796 = vld [vmem:[#allocation2 + $0x18] sm:$0xff]
      %v1797 = vld [vmem:[#allocation2 + $0x20] sm:$0xf]
      %v1798 = vld [vmem:[#allocation2 + $0x24] sm:$0xff]
      %v1799 = vld [vmem:[#allocation2 + $0x2c] sm:$0xf]
      %v1800 = vsel %vm445, 1, 0
      %v1801 = vsel %vm446, 1, 0
      %v1802 = vsel %vm447, 1, 0
      %vm1803 = vcmp.eq.s32.totalorder %v1800, 1
      %vm1804 = vcmp.eq.s32.totalorder %v1801, 1
      %vm1805 = vcmp.eq.s32.totalorder %v1802, 1
      %vm1806 = vmpackc.low %vm1804, %vm1803
      %vm1807 = vmpackc.low %vm1805, %vm1805
      %v1808 = vsel %vm1806, 65537, 0
      %v1809 = vsel %vm1807, 65537, 0
      %1810 = vrot.lane.b32.xlu0 %v1808, 16
      %v1811 = vpop.permute.xlu0 %1810
      %1812 = vrot.lane.b32.xlu0 %v1809, 16
      %v1813 = vpop.permute.xlu0 %1812
      %v1814 = vrot.slane %v1811, 4
      %vm1815 = vcmask 130048
      %v1816 = vsel %vm1815, %v1814, %v1811
      %v1817 = vsel %vm1815, %v1814, %v1813
      %v1818 = vunpack.c.l.b16 %v1816
      %v1819 = vunpack.c.h.b16 %v1816
      %v1820 = vunpack.c.l.b16 0
      %v1821 = vunpack.c.h.b16 0
      %vm1822 = vcmp.ne.s32.totalorder %v1818, %v1820
      %vm1823 = vcmp.ne.s32.totalorder %v1819, %v1821
      %vm1824 = vmpackc.low %vm1823, %vm1822
      %v1825 = vunpack.c.l.b16 %v1817
      %v1826 = vunpack.c.h.b16 %v1817
      %v1827 = vunpack.c.l.b16 0
      %v1828 = vunpack.c.h.b16 0
      %vm1829 = vcmp.ne.s32.totalorder %v1825, %v1827
      %vm1830 = vcmp.ne.s32.totalorder %v1826, %v1828
      %vm1831 = vmpackc.low %vm1830, %vm1829
      %1840 = vrot.lane.b32.xlu0 %v1792, 126
      %v1841 = vpop.permute.xlu0 %1840
      %1842 = vrot.lane.b32.xlu0 %v1793, 126
      %v1843 = vpop.permute.xlu0 %1842
      %1844 = vrot.lane.b32.xlu0 %v1794, 126
      %v1845 = vpop.permute.xlu0 %1844
      %1846 = vrot.lane.b32.xlu0 %v1795, 126
      %v1847 = vpop.permute.xlu0 %1846
      %1848 = vrot.lane.b32.xlu0 %v1796, 126
      %v1849 = vpop.permute.xlu0 %1848
      %1850 = vrot.lane.b32.xlu0 %v1797, 126
      %v1851 = vpop.permute.xlu0 %1850
      %1852 = vrot.lane.b32.xlu0 %v1798, 126
      %v1853 = vpop.permute.xlu0 %1852
      %1854 = vrot.lane.b32.xlu0 %v1799, 126
      %v1855 = vpop.permute.xlu0 %1854
      %v1856 = vrot.slane %v1841, 4
      %v1857 = vrot.slane %v1843, 4
      %v1858 = vrot.slane %v1845, 4
      %v1859 = vrot.slane %v1847, 4
      %v1860 = vrot.slane %v1849, 4
      %v1861 = vrot.slane %v1851, 4
      %v1862 = vrot.slane %v1853, 4
      %v1863 = vrot.slane %v1855, 4
      %vm1864 = vcmask 1043456
      %v1865 = vsel %vm1864, %v1856, %v1857
      %v1866 = vsel %vm773, %v1841, %v1865
      %v1867 = vsel %vm1864, %v1858, %v1859
      %v1868 = vsel %vm773, %v1845, %v1867
      %v1869 = vsel %vm1864, %v1860, %v1861
      %v1870 = vsel %vm773, %v1849, %v1869
      %v1871 = vsel %vm1864, %v1862, %v1863
      %v1872 = vsel %vm773, %v1853, %v1871
      %v1881 = vsel %vm1824, %v1792, %v1866
      %v1882 = vsel %vm1831, %v1793, %v1843
      %v1883 = vsel %vm1824, %v1794, %v1868
      %v1884 = vsel %vm1831, %v1795, %v1847
      %v1885 = vsel %vm1824, %v1796, %v1870
      %v1886 = vsel %vm1831, %v1797, %v1851
      %v1887 = vsel %vm1824, %v1798, %v1872
      %v1888 = vsel %vm1831, %v1799, %v1855
      %v1889 = vsel %vm442, 1, 0
      %v1890 = vsel %vm443, 1, 0
      %v1891 = vsel %vm444, 1, 0
      %vm1892 = vcmp.eq.s32.totalorder %v1889, 1
      %vm1893 = vcmp.eq.s32.totalorder %v1890, 1
      %vm1894 = vcmp.eq.s32.totalorder %v1891, 1
      %vm1895 = vmpackc.low %vm1893, %vm1892
      %vm1896 = vmpackc.low %vm1894, %vm1894
      %v1897 = vsel %vm1895, 65537, 0
      %v1898 = vsel %vm1896, 65537, 0
      %1899 = vrot.lane.b32.xlu0 %v1897, 20
      %v1900 = vpop.permute.xlu0 %1899
      %1901 = vrot.lane.b32.xlu0 %v1898, 20
      %v1902 = vpop.permute.xlu0 %1901
      %v1903 = vrot.slane %v1900, 4
      %vm1904 = vcmask 162816
      %v1905 = vsel %vm1904, %v1903, %v1900
      %v1906 = vsel %vm1904, %v1903, %v1902
      %v1907 = vunpack.c.l.b16 %v1905
      %v1908 = vunpack.c.h.b16 %v1905
      %v1909 = vunpack.c.l.b16 0
      %v1910 = vunpack.c.h.b16 0
      %vm1911 = vcmp.ne.s32.totalorder %v1907, %v1909
      %vm1912 = vcmp.ne.s32.totalorder %v1908, %v1910
      %vm1913 = vmpackc.low %vm1912, %vm1911
      %v1914 = vunpack.c.l.b16 %v1906
      %v1915 = vunpack.c.h.b16 %v1906
      %v1916 = vunpack.c.l.b16 0
      %v1917 = vunpack.c.h.b16 0
      %vm1918 = vcmp.ne.s32.totalorder %v1914, %v1916
      %vm1919 = vcmp.ne.s32.totalorder %v1915, %v1917
      %vm1920 = vmpackc.low %vm1919, %vm1918
      %1929 = vrot.lane.b32.xlu0 %v1881, 4
      %v1930 = vpop.permute.xlu0 %1929
      %1931 = vrot.lane.b32.xlu0 %v1882, 4
      %v1932 = vpop.permute.xlu0 %1931
      %1933 = vrot.lane.b32.xlu0 %v1883, 4
      %v1934 = vpop.permute.xlu0 %1933
      %1935 = vrot.lane.b32.xlu0 %v1884, 4
      %v1936 = vpop.permute.xlu0 %1935
      %1937 = vrot.lane.b32.xlu0 %v1885, 4
      %v1938 = vpop.permute.xlu0 %1937
      %1939 = vrot.lane.b32.xlu0 %v1886, 4
      %v1940 = vpop.permute.xlu0 %1939
      %1941 = vrot.lane.b32.xlu0 %v1887, 4
      %v1942 = vpop.permute.xlu0 %1941
      %1943 = vrot.lane.b32.xlu0 %v1888, 4
      %v1944 = vpop.permute.xlu0 %1943
      %v1945 = vrot.slane %v1930, 4
      %v1946 = vrot.slane %v1934, 4
      %v1947 = vrot.slane %v1938, 4
      %v1948 = vrot.slane %v1942, 4
      %vm1949 = vcmask 31744
      %v1950 = vsel %vm1949, %v1945, %v1930
      %v1951 = vsel %vm1949, %v1945, %v1932
      %v1952 = vsel %vm1949, %v1946, %v1934
      %v1953 = vsel %vm1949, %v1946, %v1936
      %v1954 = vsel %vm1949, %v1947, %v1938
      %v1955 = vsel %vm1949, %v1947, %v1940
      %v1956 = vsel %vm1949, %v1948, %v1942
      %v1957 = vsel %vm1949, %v1948, %v1944
      %v1966 = vsel %vm1913, %v1792, %v1950
      %v1967 = vsel %vm1920, %v1793, %v1951
      %v1968 = vsel %vm1913, %v1794, %v1952
      %v1969 = vsel %vm1920, %v1795, %v1953
      %v1970 = vsel %vm1913, %v1796, %v1954
      %v1971 = vsel %vm1920, %v1797, %v1955
      %v1972 = vsel %vm1913, %v1798, %v1956
      %v1973 = vsel %vm1920, %v1799, %v1957
      %1982 = vrot.lane.b32.xlu0 %v1966, 126
      %v1983 = vpop.permute.xlu0 %1982
      %1984 = vrot.lane.b32.xlu0 %v1967, 126
      %v1985 = vpop.permute.xlu0 %1984
      %1986 = vrot.lane.b32.xlu0 %v1968, 126
      %v1987 = vpop.permute.xlu0 %1986
      %1988 = vrot.lane.b32.xlu0 %v1969, 126
      %v1989 = vpop.permute.xlu0 %1988
      %1990 = vrot.lane.b32.xlu0 %v1970, 126
      %v1991 = vpop.permute.xlu0 %1990
      %1992 = vrot.lane.b32.xlu0 %v1971, 126
      %v1993 = vpop.permute.xlu0 %1992
      %1994 = vrot.lane.b32.xlu0 %v1972, 126
      %v1995 = vpop.permute.xlu0 %1994
      %1996 = vrot.lane.b32.xlu0 %v1973, 126
      %v1997 = vpop.permute.xlu0 %1996
      %v1998 = vrot.slane %v1983, 4
      %v1999 = vrot.slane %v1985, 4
      %v2000 = vrot.slane %v1987, 4
      %v2001 = vrot.slane %v1989, 4
      %v2002 = vrot.slane %v1991, 4
      %v2003 = vrot.slane %v1993, 4
      %v2004 = vrot.slane %v1995, 4
      %v2005 = vrot.slane %v1997, 4
      %v2006 = vsel %vm1864, %v1998, %v1999
      %v2007 = vsel %vm773, %v1983, %v2006
      %v2008 = vsel %vm1864, %v2000, %v2001
      %v2009 = vsel %vm773, %v1987, %v2008
      %v2010 = vsel %vm1864, %v2002, %v2003
      %v2011 = vsel %vm773, %v1991, %v2010
      %v2012 = vsel %vm1864, %v2004, %v2005
      %v2013 = vsel %vm773, %v1995, %v2012
      %vm2022 = vcmask 1043600
      %vm2023 = vmor %vm1781, %vm2022
      %2024 = vst.msk [vmem:[#allocation2] sm:$0xff] %vm2023, %v2007
      %vm2025 = vcmask 404480
      %2026 = vst.msk [vmem:[#allocation2 + $0x8] sm:$0xf] %vm2025, %v1985
      %2027 = vst.msk [vmem:[#allocation2 + $0xc] sm:$0xff] %vm2023, %v2009
      %2028 = vst.msk [vmem:[#allocation2 + $0x14] sm:$0xf] %vm2025, %v1989
      %2029 = vst.msk [vmem:[#allocation2 + $0x18] sm:$0xff] %vm2023, %v2011
      %2030 = vst.msk [vmem:[#allocation2 + $0x20] sm:$0xf] %vm2025, %v1993
      %2031 = vst.msk [vmem:[#allocation2 + $0x24] sm:$0xff] %vm2023, %v2013
      %2032 = vst.msk [vmem:[#allocation2 + $0x2c] sm:$0xf] %vm2025, %v1997
      %v2033 = vld [vmem:[#allocation2] sm:$0xf]
      %v2034 = vld [vmem:[#allocation2 + $0xc] sm:$0xf]
      %v2035 = vld [vmem:[#allocation2 + $0x18] sm:$0xf]
      %v2036 = vld [vmem:[#allocation2 + $0x24] sm:$0xf]
      %2041 = vrot.lane.b32.xlu0 %v2033, 92
      %v2042 = vpop.permute.xlu0 %2041
      %2043 = vrot.lane.b32.xlu0 %v2034, 92
      %v2044 = vpop.permute.xlu0 %2043
      %2045 = vrot.lane.b32.xlu0 %v2035, 92
      %v2046 = vpop.permute.xlu0 %2045
      %2047 = vrot.lane.b32.xlu0 %v2036, 92
      %v2048 = vpop.permute.xlu0 %2047
      %vm2053 = vcmask 142336
      %2054 = vst.msk [vmem:[#allocation2] sm:$0xf] %vm2053, %v2042
      %2055 = vst.msk [vmem:[#allocation2 + $0xc] sm:$0xf] %vm2053, %v2044
      %2056 = vst.msk [vmem:[#allocation2 + $0x18] sm:$0xf] %vm2053, %v2046
      %2057 = vst.msk [vmem:[#allocation2 + $0x24] sm:$0xf] %vm2053, %v2048
      %v2058 = vld [vmem:[#allocation2 + $0x8] sm:$0xf]
      %v2059 = vld [vmem:[#allocation2 + $0x14] sm:$0xf]
      %v2060 = vld [vmem:[#allocation2 + $0x20] sm:$0xf]
      %v2061 = vld [vmem:[#allocation2 + $0x2c] sm:$0xf]
      %2066 = vrot.lane.b32.xlu0 %v2058, 36
      %v2067 = vpop.permute.xlu0 %2066
      %2068 = vrot.lane.b32.xlu0 %v2059, 36
      %v2069 = vpop.permute.xlu0 %2068
      %2070 = vrot.lane.b32.xlu0 %v2060, 36
      %v2071 = vpop.permute.xlu0 %2070
      %2072 = vrot.lane.b32.xlu0 %v2061, 36
      %v2073 = vpop.permute.xlu0 %2072
      %vm2078 = vcmask 552336
      %2079 = vst.msk [vmem:[#allocation2 + $0x8] sm:$0xf] %vm2078, %v2067
      %2080 = vst.msk [vmem:[#allocation2 + $0x14] sm:$0xf] %vm2078, %v2069
      %2081 = vst.msk [vmem:[#allocation2 + $0x20] sm:$0xf] %vm2078, %v2071
      %2082 = vst.msk [vmem:[#allocation2 + $0x2c] sm:$0xf] %vm2078, %v2073
      %v2083 = vld [vmem:[#allocation2] sm:$0xff]
      %v2084 = vld [vmem:[#allocation2 + $0x8] sm:$0xf]
      %v2085 = vld [vmem:[#allocation2 + $0xc] sm:$0xff]
      %v2086 = vld [vmem:[#allocation2 + $0x14] sm:$0xf]
      %v2087 = vld [vmem:[#allocation2 + $0x18] sm:$0xff]
      %v2088 = vld [vmem:[#allocation2 + $0x20] sm:$0xf]
      %v2089 = vld [vmem:[#allocation2 + $0x24] sm:$0xff]
      %v2090 = vld [vmem:[#allocation2 + $0x2c] sm:$0xf]
      %v2091 = vld [vmem:[%s3] sm:$0xf]
      %v2092 = vld [vmem:[%s3 + $0x4] sm:$0xf]
      %s2093 = scalar_lea.vmem %s3, 8
      %v2094 = vld [vmem:[%s2093] sm:$0xf]
      %v2095 = vld [vmem:[%s2093 + $0x4] sm:$0xf]
      %v2098 = vunpack.c.l.b16 %v2094
      %v2099 = vunpack.c.l.b16 %v2095
      %v2100 = vpack.c.b16 %v2099, %v2098
      %v2109 = vunpack.c.l.b16 %v2083
      %v2110 = vunpack.c.h.b16 %v2083
      %v2111 = vunpack.c.l.b16 %v2084
      %v2112 = vunpack.c.l.b16 %v2085
      %v2113 = vunpack.c.h.b16 %v2085
      %v2114 = vunpack.c.l.b16 %v2086
      %v2115 = vunpack.c.l.b16 %v2087
      %v2116 = vunpack.c.h.b16 %v2087
      %v2117 = vunpack.c.l.b16 %v2088
      %v2118 = vunpack.c.l.b16 %v2089
      %v2119 = vunpack.c.h.b16 %v2089
      %v2120 = vunpack.c.l.b16 %v2090
      %v2121 = vpack.c.b16 %v2112, %v2109
      %v2122 = vpack.c.b16 %v2113, %v2110
      %v2123 = vpack.c.b16 %v2114, %v2111
      %v2124 = vpack.c.b16 %v2118, %v2115
      %v2125 = vpack.c.b16 %v2119, %v2116
      %v2126 = vpack.c.b16 %v2120, %v2117
      %2127 = vrot.lane.b32.xlu0 %v2121, 127
      %v2128 = vpop.permute.xlu0 %2127
      %2129 = vrot.lane.b32.xlu0 %v2122, 127
      %v2130 = vpop.permute.xlu0 %2129
      %2131 = vrot.lane.b32.xlu0 %v2123, 127
      %v2132 = vpop.permute.xlu0 %2131
      %2133 = vrot.lane.b32.xlu0 %v2124, 127
      %v2134 = vpop.permute.xlu0 %2133
      %2135 = vrot.lane.b32.xlu0 %v2125, 127
      %v2136 = vpop.permute.xlu0 %2135
      %2137 = vrot.lane.b32.xlu0 %v2126, 127
      %v2138 = vpop.permute.xlu0 %2137
      %v2139 = vsel %vm564, %v2128, %v2130
      %v2140 = vsel %vm564, %v2130, %v2132
      %v2141 = vsel %vm564, %v2134, %v2136
      %v2142 = vsel %vm564, %v2136, %v2138
      %vm2149 = vcmask 261120
      %v2151 = vsel %vm2149, %v2100, 0
      %2153 = vmatpush.bf16.msra.mxu0 0
      %2154 = vmatpush.bf16.msra.mxu0 0
      %2155 = vmatpush.bf16.msra.mxu0 0
      %2156 = vmatpush.bf16.msra.mxu0 0
      %2157 = vmatpush.bf16.msra.mxu0 0
      %2158 = vmatpush.bf16.msra.mxu0 0
      %2159 = vmatpush.bf16.msra.mxu0 %v2141
      %2160 = vmatpush.bf16.msra.mxu0 %v2139
      %2161 = vmatmul.bf16.gmra.mxu0 %v2151
      %v2162 = vpop.f32.mrf.mxu0
      %v2163 = vadd.f32 0.0, %v2162
      %v2164 = vpop.f32.mrf.mxu0
      %v2165 = vadd.f32 0.0, %v2164
      %2166 = vdwg.mxu0
      %2167 = vmatpush.bf16.msra.mxu0 0
      %2168 = vmatpush.bf16.msra.mxu0 0
      %2169 = vmatpush.bf16.msra.mxu0 0
      %2170 = vmatpush.bf16.msra.mxu0 0
      %2171 = vmatpush.bf16.msra.mxu0 0
      %2172 = vmatpush.bf16.msra.mxu0 0
      %2173 = vmatpush.bf16.msra.mxu0 %v2142
      %2174 = vmatpush.bf16.msra.mxu0 %v2140
      %2175 = vmatmul.bf16.gmra.mxu0 %v2151
      %v2176 = vpop.f32.mrf.mxu0
      %v2177 = vadd.f32 0.0, %v2176
      %v2178 = vpop.f32.mrf.mxu0
      %v2179 = vadd.f32 0.0, %v2178
      %2180 = vdwg.mxu0
      %2181 = vmatpush.bf16.msra.mxu0 0
      %2182 = vmatpush.bf16.msra.mxu0 0
      %2183 = vmatpush.bf16.msra.mxu0 0
      %2184 = vmatpush.bf16.msra.mxu0 0
      %2185 = vmatpush.bf16.msra.mxu0 0
      %2186 = vmatpush.bf16.msra.mxu0 0
      %2187 = vmatpush.bf16.msra.mxu0 %v2138
      %2188 = vmatpush.bf16.msra.mxu0 %v2132
      %2189 = vmatmul.bf16.gmra.mxu0 %v2151
      %v2190 = vpop.f32.mrf.mxu0
      %v2191 = vadd.f32 0.0, %v2190
      %v2192 = vpop.f32.mrf.mxu0
      %v2193 = vadd.f32 0.0, %v2192
      %2194 = vdwg.mxu0
      %v2197 = vunpack.c.l.b16 %v2091
      %v2198 = vunpack.c.l.b16 %v2092
      %v2199 = vpack.c.b16 %v2198, %v2197
      %v2207 = vsel %vm2149, %v2199, 0
      %2209 = vmatpush.bf16.msra.mxu0 0
      %2210 = vmatpush.bf16.msra.mxu0 0
      %2211 = vmatpush.bf16.msra.mxu0 0
      %2212 = vmatpush.bf16.msra.mxu0 0
      %2213 = vmatpush.bf16.msra.mxu0 0
      %2214 = vmatpush.bf16.msra.mxu0 0
      %2215 = vmatpush.bf16.msra.mxu0 %v2124
      %2216 = vmatpush.bf16.msra.mxu0 %v2121
      %2217 = vmatmul.bf16.gmra.mxu0 %v2207
      %v2218 = vpop.f32.mrf.mxu0
      %v2219 = vadd.f32 %v2163, %v2218
      %v2220 = vpop.f32.mrf.mxu0
      %v2221 = vadd.f32 %v2165, %v2220
      %2222 = vdwg.mxu0
      %2223 = vmatpush.bf16.msra.mxu0 0
      %2224 = vmatpush.bf16.msra.mxu0 0
      %2225 = vmatpush.bf16.msra.mxu0 0
      %2226 = vmatpush.bf16.msra.mxu0 0
      %2227 = vmatpush.bf16.msra.mxu0 0
      %2228 = vmatpush.bf16.msra.mxu0 0
      %2229 = vmatpush.bf16.msra.mxu0 %v2125
      %2230 = vmatpush.bf16.msra.mxu0 %v2122
      %2231 = vmatmul.bf16.gmra.mxu0 %v2207
      %v2232 = vpop.f32.mrf.mxu0
      %v2233 = vadd.f32 %v2177, %v2232
      %v2234 = vpop.f32.mrf.mxu0
      %v2235 = vadd.f32 %v2179, %v2234
      %2236 = vdwg.mxu0
      %2237 = vmatpush.bf16.msra.mxu0 0
      %2238 = vmatpush.bf16.msra.mxu0 0
      %2239 = vmatpush.bf16.msra.mxu0 0
      %2240 = vmatpush.bf16.msra.mxu0 0
      %2241 = vmatpush.bf16.msra.mxu0 0
      %2242 = vmatpush.bf16.msra.mxu0 0
      %2243 = vmatpush.bf16.msra.mxu0 %v2126
      %2244 = vmatpush.bf16.msra.mxu0 %v2123
      %2245 = vmatmul.bf16.gmra.mxu0 %v2207
      %v2246 = vpop.f32.mrf.mxu0
      %v2247 = vadd.f32 %v2191, %v2246
      %v2248 = vpop.f32.mrf.mxu0
      %v2249 = vadd.f32 %v2193, %v2248
      %2250 = vdwg.mxu0
      %s2251 = scalar_lea.vmem %s3, 16
      %v2252 = vld [vmem:[%s2251] sm:$0xf]
      %v2253 = vld [vmem:[%s2251 + $0x4] sm:$0xf]
      %v2256 = vunpack.c.l.b16 %v2252
      %v2257 = vunpack.c.l.b16 %v2253
      %v2258 = vpack.c.b16 %v2257, %v2256
      %2259 = vrot.lane.b32.xlu0 %v2121, 126
      %v2260 = vpop.permute.xlu0 %2259
      %2261 = vrot.lane.b32.xlu0 %v2122, 126
      %v2262 = vpop.permute.xlu0 %2261
      %2263 = vrot.lane.b32.xlu0 %v2123, 126
      %v2264 = vpop.permute.xlu0 %2263
      %2265 = vrot.lane.b32.xlu0 %v2124, 126
      %v2266 = vpop.permute.xlu0 %2265
      %2267 = vrot.lane.b32.xlu0 %v2125, 126
      %v2268 = vpop.permute.xlu0 %2267
      %2269 = vrot.lane.b32.xlu0 %v2126, 126
      %v2270 = vpop.permute.xlu0 %2269
      %v2271 = vsel %vm773, %v2260, %v2262
      %v2272 = vsel %vm773, %v2262, %v2264
      %v2273 = vsel %vm773, %v2266, %v2268
      %v2274 = vsel %vm773, %v2268, %v2270
      %v2282 = vsel %vm2149, %v2258, 0
      %2284 = vmatpush.bf16.msra.mxu0 0
      %2285 = vmatpush.bf16.msra.mxu0 0
      %2286 = vmatpush.bf16.msra.mxu0 0
      %2287 = vmatpush.bf16.msra.mxu0 0
      %2288 = vmatpush.bf16.msra.mxu0 0
      %2289 = vmatpush.bf16.msra.mxu0 0
      %2290 = vmatpush.bf16.msra.mxu0 %v2273
      %2291 = vmatpush.bf16.msra.mxu0 %v2271
      %2292 = vmatmul.bf16.gmra.mxu0 %v2282
      %v2293 = vpop.f32.mrf.mxu0
      %v2294 = vadd.f32 0.0, %v2293
      %v2295 = vpop.f32.mrf.mxu0
      %v2296 = vadd.f32 0.0, %v2295
      %2297 = vdwg.mxu0
      %2298 = vmatpush.bf16.msra.mxu0 0
      %2299 = vmatpush.bf16.msra.mxu0 0
      %2300 = vmatpush.bf16.msra.mxu0 0
      %2301 = vmatpush.bf16.msra.mxu0 0
      %2302 = vmatpush.bf16.msra.mxu0 0
      %2303 = vmatpush.bf16.msra.mxu0 0
      %2304 = vmatpush.bf16.msra.mxu0 %v2274
      %2305 = vmatpush.bf16.msra.mxu0 %v2272
      %2306 = vmatmul.bf16.gmra.mxu0 %v2282
      %v2307 = vpop.f32.mrf.mxu0
      %v2308 = vadd.f32 0.0, %v2307
      %v2309 = vpop.f32.mrf.mxu0
      %v2310 = vadd.f32 0.0, %v2309
      %2311 = vdwg.mxu0
      %2312 = vmatpush.bf16.msra.mxu0 0
      %2313 = vmatpush.bf16.msra.mxu0 0
      %2314 = vmatpush.bf16.msra.mxu0 0
      %2315 = vmatpush.bf16.msra.mxu0 0
      %2316 = vmatpush.bf16.msra.mxu0 0
      %2317 = vmatpush.bf16.msra.mxu0 0
      %2318 = vmatpush.bf16.msra.mxu0 %v2270
      %2319 = vmatpush.bf16.msra.mxu0 %v2264
      %2320 = vmatmul.bf16.gmra.mxu0 %v2282
      %v2321 = vpop.f32.mrf.mxu0
      %v2322 = vadd.f32 0.0, %v2321
      %v2323 = vpop.f32.mrf.mxu0
      %v2324 = vadd.f32 0.0, %v2323
      %2325 = vdwg.mxu0
      %v2326 = vadd.f32 %v2219, %v2294
      %v2327 = vadd.f32 %v2233, %v2308
      %v2328 = vadd.f32 %v2247, %v2322
      %v2329 = vadd.f32 %v2221, %v2296
      %v2330 = vadd.f32 %v2235, %v2310
      %v2331 = vadd.f32 %v2249, %v2324
      %s2332 = scalar_lea.vmem %s3, 24
      %v2333 = vld [vmem:[%s2332] sm:$0xf]
      %v2334 = vld [vmem:[%s2332 + $0x4] sm:$0xf]
      %v2337 = vunpack.c.l.b16 %v2333
      %v2338 = vunpack.c.l.b16 %v2334
      %v2339 = vpack.c.b16 %v2338, %v2337
      %2340 = vrot.lane.b32.xlu0 %v2121, 110
      %v2341 = vpop.permute.xlu0 %2340
      %2342 = vrot.lane.b32.xlu0 %v2122, 110
      %v2343 = vpop.permute.xlu0 %2342
      %2344 = vrot.lane.b32.xlu0 %v2123, 110
      %v2345 = vpop.permute.xlu0 %2344
      %2346 = vrot.lane.b32.xlu0 %v2124, 110
      %v2347 = vpop.permute.xlu0 %2346
      %2348 = vrot.lane.b32.xlu0 %v2125, 110
      %v2349 = vpop.permute.xlu0 %2348
      %2350 = vrot.lane.b32.xlu0 %v2126, 110
      %v2351 = vpop.permute.xlu0 %2350
      %v2352 = vsel %vm908, %v2341, %v2343
      %v2353 = vsel %vm908, %v2343, %v2345
      %v2354 = vsel %vm908, %v2347, %v2349
      %v2355 = vsel %vm908, %v2349, %v2351
      %v2363 = vsel %vm2149, %v2339, 0
      %2365 = vmatpush.bf16.msra.mxu0 0
      %2366 = vmatpush.bf16.msra.mxu0 0
      %2367 = vmatpush.bf16.msra.mxu0 0
      %2368 = vmatpush.bf16.msra.mxu0 0
      %2369 = vmatpush.bf16.msra.mxu0 0
      %2370 = vmatpush.bf16.msra.mxu0 0
      %2371 = vmatpush.bf16.msra.mxu0 %v2354
      %2372 = vmatpush.bf16.msra.mxu0 %v2352
      %2373 = vmatmul.bf16.gmra.mxu0 %v2363
      %v2374 = vpop.f32.mrf.mxu0
      %v2375 = vadd.f32 0.0, %v2374
      %v2376 = vpop.f32.mrf.mxu0
      %v2377 = vadd.f32 0.0, %v2376
      %2378 = vdwg.mxu0
      %2379 = vmatpush.bf16.msra.mxu0 0
      %2380 = vmatpush.bf16.msra.mxu0 0
      %2381 = vmatpush.bf16.msra.mxu0 0
      %2382 = vmatpush.bf16.msra.mxu0 0
      %2383 = vmatpush.bf16.msra.mxu0 0
      %2384 = vmatpush.bf16.msra.mxu0 0
      %2385 = vmatpush.bf16.msra.mxu0 %v2355
      %2386 = vmatpush.bf16.msra.mxu0 %v2353
      %2387 = vmatmul.bf16.gmra.mxu0 %v2363
      %v2388 = vpop.f32.mrf.mxu0
      %v2389 = vadd.f32 0.0, %v2388
      %v2390 = vpop.f32.mrf.mxu0
      %v2391 = vadd.f32 0.0, %v2390
      %2392 = vdwg.mxu0
      %2393 = vmatpush.bf16.msra.mxu0 0
      %2394 = vmatpush.bf16.msra.mxu0 0
      %2395 = vmatpush.bf16.msra.mxu0 0
      %2396 = vmatpush.bf16.msra.mxu0 0
      %2397 = vmatpush.bf16.msra.mxu0 0
      %2398 = vmatpush.bf16.msra.mxu0 0
      %2399 = vmatpush.bf16.msra.mxu0 %v2351
      %2400 = vmatpush.bf16.msra.mxu0 %v2345
      %2401 = vmatmul.bf16.gmra.mxu0 %v2363
      %v2402 = vpop.f32.mrf.mxu0
      %v2403 = vadd.f32 0.0, %v2402
      %v2404 = vpop.f32.mrf.mxu0
      %v2405 = vadd.f32 0.0, %v2404
      %2406 = vdwg.mxu0
      %v2407 = vadd.f32 %v2326, %v2375
      %v2408 = vadd.f32 %v2327, %v2389
      %v2409 = vadd.f32 %v2328, %v2403
      %v2410 = vadd.f32 %v2329, %v2377
      %v2411 = vadd.f32 %v2330, %v2391
      %v2412 = vadd.f32 %v2331, %v2405
      %s2413 = scalar_lea.vmem %s3, 32
      %v2414 = vld [vmem:[%s2413] sm:$0xf]
      %v2415 = vld [vmem:[%s2413 + $0x4] sm:$0xf]
      %v2418 = vunpack.c.l.b16 %v2414
      %v2419 = vunpack.c.l.b16 %v2415
      %v2420 = vpack.c.b16 %v2419, %v2418
      %2421 = vrot.lane.b32.xlu0 %v2121, 109
      %v2422 = vpop.permute.xlu0 %2421
      %2423 = vrot.lane.b32.xlu0 %v2122, 109
      %v2424 = vpop.permute.xlu0 %2423
      %2425 = vrot.lane.b32.xlu0 %v2123, 109
      %v2426 = vpop.permute.xlu0 %2425
      %2427 = vrot.lane.b32.xlu0 %v2124, 109
      %v2428 = vpop.permute.xlu0 %2427
      %2429 = vrot.lane.b32.xlu0 %v2125, 109
      %v2430 = vpop.permute.xlu0 %2429
      %2431 = vrot.lane.b32.xlu0 %v2126, 109
      %v2432 = vpop.permute.xlu0 %2431
      %v2433 = vsel %vm1043, %v2422, %v2424
      %v2434 = vsel %vm1043, %v2424, %v2426
      %v2435 = vsel %vm1043, %v2428, %v2430
      %v2436 = vsel %vm1043, %v2430, %v2432
      %v2444 = vsel %vm2149, %v2420, 0
      %2446 = vmatpush.bf16.msra.mxu0 0
      %2447 = vmatpush.bf16.msra.mxu0 0
      %2448 = vmatpush.bf16.msra.mxu0 0
      %2449 = vmatpush.bf16.msra.mxu0 0
      %2450 = vmatpush.bf16.msra.mxu0 0
      %2451 = vmatpush.bf16.msra.mxu0 0
      %2452 = vmatpush.bf16.msra.mxu0 %v2435
      %2453 = vmatpush.bf16.msra.mxu0 %v2433
      %2454 = vmatmul.bf16.gmra.mxu0 %v2444
      %v2455 = vpop.f32.mrf.mxu0
      %v2456 = vadd.f32 0.0, %v2455
      %v2457 = vpop.f32.mrf.mxu0
      %v2458 = vadd.f32 0.0, %v2457
      %2459 = vdwg.mxu0
      %2460 = vmatpush.bf16.msra.mxu0 0
      %2461 = vmatpush.bf16.msra.mxu0 0
      %2462 = vmatpush.bf16.msra.mxu0 0
      %2463 = vmatpush.bf16.msra.mxu0 0
      %2464 = vmatpush.bf16.msra.mxu0 0
      %2465 = vmatpush.bf16.msra.mxu0 0
      %2466 = vmatpush.bf16.msra.mxu0 %v2436
      %2467 = vmatpush.bf16.msra.mxu0 %v2434
      %2468 = vmatmul.bf16.gmra.mxu0 %v2444
      %v2469 = vpop.f32.mrf.mxu0
      %v2470 = vadd.f32 0.0, %v2469
      %v2471 = vpop.f32.mrf.mxu0
      %v2472 = vadd.f32 0.0, %v2471
      %2473 = vdwg.mxu0
      %2474 = vmatpush.bf16.msra.mxu0 0
      %2475 = vmatpush.bf16.msra.mxu0 0
      %2476 = vmatpush.bf16.msra.mxu0 0
      %2477 = vmatpush.bf16.msra.mxu0 0
      %2478 = vmatpush.bf16.msra.mxu0 0
      %2479 = vmatpush.bf16.msra.mxu0 0
      %2480 = vmatpush.bf16.msra.mxu0 %v2432
      %2481 = vmatpush.bf16.msra.mxu0 %v2426
      %2482 = vmatmul.bf16.gmra.mxu0 %v2444
      %v2483 = vpop.f32.mrf.mxu0
      %v2484 = vadd.f32 0.0, %v2483
      %v2485 = vpop.f32.mrf.mxu0
      %v2486 = vadd.f32 0.0, %v2485
      %2487 = vdwg.mxu0
      %v2488 = vadd.f32 %v2407, %v2456
      %v2489 = vadd.f32 %v2408, %v2470
      %v2490 = vadd.f32 %v2409, %v2484
      %v2491 = vadd.f32 %v2410, %v2458
      %v2492 = vadd.f32 %v2411, %v2472
      %v2493 = vadd.f32 %v2412, %v2486
      %s2494 = scalar_lea.vmem %s3, 40
      %v2495 = vld [vmem:[%s2494] sm:$0xf]
      %v2496 = vld [vmem:[%s2494 + $0x4] sm:$0xf]
      %v2499 = vunpack.c.l.b16 %v2495
      %v2500 = vunpack.c.l.b16 %v2496
      %v2501 = vpack.c.b16 %v2500, %v2499
      %2502 = vrot.lane.b32.xlu0 %v2121, 108
      %v2503 = vpop.permute.xlu0 %2502
      %2504 = vrot.lane.b32.xlu0 %v2122, 108
      %v2505 = vpop.permute.xlu0 %2504
      %2506 = vrot.lane.b32.xlu0 %v2123, 108
      %v2507 = vpop.permute.xlu0 %2506
      %2508 = vrot.lane.b32.xlu0 %v2124, 108
      %v2509 = vpop.permute.xlu0 %2508
      %2510 = vrot.lane.b32.xlu0 %v2125, 108
      %v2511 = vpop.permute.xlu0 %2510
      %2512 = vrot.lane.b32.xlu0 %v2126, 108
      %v2513 = vpop.permute.xlu0 %2512
      %v2514 = vsel %vm1178, %v2503, %v2505
      %v2515 = vsel %vm1178, %v2505, %v2507
      %v2516 = vsel %vm1178, %v2509, %v2511
      %v2517 = vsel %vm1178, %v2511, %v2513
      %v2525 = vsel %vm2149, %v2501, 0
      %2527 = vmatpush.bf16.msra.mxu0 0
      %2528 = vmatpush.bf16.msra.mxu0 0
      %2529 = vmatpush.bf16.msra.mxu0 0
      %2530 = vmatpush.bf16.msra.mxu0 0
      %2531 = vmatpush.bf16.msra.mxu0 0
      %2532 = vmatpush.bf16.msra.mxu0 0
      %2533 = vmatpush.bf16.msra.mxu0 %v2516
      %2534 = vmatpush.bf16.msra.mxu0 %v2514
      %2535 = vmatmul.bf16.gmra.mxu0 %v2525
      %v2536 = vpop.f32.mrf.mxu0
      %v2537 = vadd.f32 0.0, %v2536
      %v2538 = vpop.f32.mrf.mxu0
      %v2539 = vadd.f32 0.0, %v2538
      %2540 = vdwg.mxu0
      %2541 = vmatpush.bf16.msra.mxu0 0
      %2542 = vmatpush.bf16.msra.mxu0 0
      %2543 = vmatpush.bf16.msra.mxu0 0
      %2544 = vmatpush.bf16.msra.mxu0 0
      %2545 = vmatpush.bf16.msra.mxu0 0
      %2546 = vmatpush.bf16.msra.mxu0 0
      %2547 = vmatpush.bf16.msra.mxu0 %v2517
      %2548 = vmatpush.bf16.msra.mxu0 %v2515
      %2549 = vmatmul.bf16.gmra.mxu0 %v2525
      %v2550 = vpop.f32.mrf.mxu0
      %v2551 = vadd.f32 0.0, %v2550
      %v2552 = vpop.f32.mrf.mxu0
      %v2553 = vadd.f32 0.0, %v2552
      %2554 = vdwg.mxu0
      %2555 = vmatpush.bf16.msra.mxu0 0
      %2556 = vmatpush.bf16.msra.mxu0 0
      %2557 = vmatpush.bf16.msra.mxu0 0
      %2558 = vmatpush.bf16.msra.mxu0 0
      %2559 = vmatpush.bf16.msra.mxu0 0
      %2560 = vmatpush.bf16.msra.mxu0 0
      %2561 = vmatpush.bf16.msra.mxu0 %v2513
      %2562 = vmatpush.bf16.msra.mxu0 %v2507
      %2563 = vmatmul.bf16.gmra.mxu0 %v2525
      %v2564 = vpop.f32.mrf.mxu0
      %v2565 = vadd.f32 0.0, %v2564
      %v2566 = vpop.f32.mrf.mxu0
      %v2567 = vadd.f32 0.0, %v2566
      %2568 = vdwg.mxu0
      %v2569 = vadd.f32 %v2488, %v2537
      %v2570 = vadd.f32 %v2489, %v2551
      %v2571 = vadd.f32 %v2490, %v2565
      %v2572 = vadd.f32 %v2491, %v2539
      %v2573 = vadd.f32 %v2492, %v2553
      %v2574 = vadd.f32 %v2493, %v2567
      %s2575 = scalar_lea.vmem %s3, 48
      %v2576 = vld [vmem:[%s2575] sm:$0xf]
      %v2577 = vld [vmem:[%s2575 + $0x4] sm:$0xf]
      %v2580 = vunpack.c.l.b16 %v2576
      %v2581 = vunpack.c.l.b16 %v2577
      %v2582 = vpack.c.b16 %v2581, %v2580
      %2583 = vrot.lane.b32.xlu0 %v2121, 92
      %v2584 = vpop.permute.xlu0 %2583
      %2585 = vrot.lane.b32.xlu0 %v2122, 92
      %v2586 = vpop.permute.xlu0 %2585
      %2587 = vrot.lane.b32.xlu0 %v2123, 92
      %v2588 = vpop.permute.xlu0 %2587
      %2589 = vrot.lane.b32.xlu0 %v2124, 92
      %v2590 = vpop.permute.xlu0 %2589
      %2591 = vrot.lane.b32.xlu0 %v2125, 92
      %v2592 = vpop.permute.xlu0 %2591
      %2593 = vrot.lane.b32.xlu0 %v2126, 92
      %v2594 = vpop.permute.xlu0 %2593
      %v2595 = vsel %vm1313, %v2584, %v2586
      %v2596 = vsel %vm1313, %v2586, %v2588
      %v2597 = vsel %vm1313, %v2590, %v2592
      %v2598 = vsel %vm1313, %v2592, %v2594
      %v2606 = vsel %vm2149, %v2582, 0
      %2608 = vmatpush.bf16.msra.mxu0 0
      %2609 = vmatpush.bf16.msra.mxu0 0
      %2610 = vmatpush.bf16.msra.mxu0 0
      %2611 = vmatpush.bf16.msra.mxu0 0
      %2612 = vmatpush.bf16.msra.mxu0 0
      %2613 = vmatpush.bf16.msra.mxu0 0
      %2614 = vmatpush.bf16.msra.mxu0 %v2597
      %2615 = vmatpush.bf16.msra.mxu0 %v2595
      %2616 = vmatmul.bf16.gmra.mxu0 %v2606
      %v2617 = vpop.f32.mrf.mxu0
      %v2618 = vadd.f32 0.0, %v2617
      %v2619 = vpop.f32.mrf.mxu0
      %v2620 = vadd.f32 0.0, %v2619
      %2621 = vdwg.mxu0
      %2622 = vmatpush.bf16.msra.mxu0 0
      %2623 = vmatpush.bf16.msra.mxu0 0
      %2624 = vmatpush.bf16.msra.mxu0 0
      %2625 = vmatpush.bf16.msra.mxu0 0
      %2626 = vmatpush.bf16.msra.mxu0 0
      %2627 = vmatpush.bf16.msra.mxu0 0
      %2628 = vmatpush.bf16.msra.mxu0 %v2598
      %2629 = vmatpush.bf16.msra.mxu0 %v2596
      %2630 = vmatmul.bf16.gmra.mxu0 %v2606
      %v2631 = vpop.f32.mrf.mxu0
      %v2632 = vadd.f32 0.0, %v2631
      %v2633 = vpop.f32.mrf.mxu0
      %v2634 = vadd.f32 0.0, %v2633
      %2635 = vdwg.mxu0
      %2636 = vmatpush.bf16.msra.mxu0 0
      %2637 = vmatpush.bf16.msra.mxu0 0
      %2638 = vmatpush.bf16.msra.mxu0 0
      %2639 = vmatpush.bf16.msra.mxu0 0
      %2640 = vmatpush.bf16.msra.mxu0 0
      %2641 = vmatpush.bf16.msra.mxu0 0
      %2642 = vmatpush.bf16.msra.mxu0 %v2594
      %2643 = vmatpush.bf16.msra.mxu0 %v2588
      %2644 = vmatmul.bf16.gmra.mxu0 %v2606
      %v2645 = vpop.f32.mrf.mxu0
      %v2646 = vadd.f32 0.0, %v2645
      %v2647 = vpop.f32.mrf.mxu0
      %v2648 = vadd.f32 0.0, %v2647
      %2649 = vdwg.mxu0
      %v2650 = vadd.f32 %v2569, %v2618
      %v2651 = vadd.f32 %v2570, %v2632
      %v2652 = vadd.f32 %v2571, %v2646
      %v2653 = vadd.f32 %v2572, %v2620
      %v2654 = vadd.f32 %v2573, %v2634
      %v2655 = vadd.f32 %v2574, %v2648
      %s2656 = scalar_lea.vmem %s3, 56
      %v2657 = vld [vmem:[%s2656] sm:$0xf]
      %v2658 = vld [vmem:[%s2656 + $0x4] sm:$0xf]
      %v2661 = vunpack.c.l.b16 %v2657
      %v2662 = vunpack.c.l.b16 %v2658
      %v2663 = vpack.c.b16 %v2662, %v2661
      %2664 = vrot.lane.b32.xlu0 %v2121, 91
      %v2665 = vpop.permute.xlu0 %2664
      %2666 = vrot.lane.b32.xlu0 %v2122, 91
      %v2667 = vpop.permute.xlu0 %2666
      %2668 = vrot.lane.b32.xlu0 %v2123, 91
      %v2669 = vpop.permute.xlu0 %2668
      %2670 = vrot.lane.b32.xlu0 %v2124, 91
      %v2671 = vpop.permute.xlu0 %2670
      %2672 = vrot.lane.b32.xlu0 %v2125, 91
      %v2673 = vpop.permute.xlu0 %2672
      %2674 = vrot.lane.b32.xlu0 %v2126, 91
      %v2675 = vpop.permute.xlu0 %2674
      %v2676 = vsel %vm1448, %v2665, %v2667
      %v2677 = vsel %vm1448, %v2667, %v2669
      %v2678 = vsel %vm1448, %v2671, %v2673
      %v2679 = vsel %vm1448, %v2673, %v2675
      %v2687 = vsel %vm2149, %v2663, 0
      %2689 = vmatpush.bf16.msra.mxu0 0
      %2690 = vmatpush.bf16.msra.mxu0 0
      %2691 = vmatpush.bf16.msra.mxu0 0
      %2692 = vmatpush.bf16.msra.mxu0 0
      %2693 = vmatpush.bf16.msra.mxu0 0
      %2694 = vmatpush.bf16.msra.mxu0 0
      %2695 = vmatpush.bf16.msra.mxu0 %v2678
      %2696 = vmatpush.bf16.msra.mxu0 %v2676
      %2697 = vmatmul.bf16.gmra.mxu0 %v2687
      %v2698 = vpop.f32.mrf.mxu0
      %v2699 = vadd.f32 0.0, %v2698
      %v2700 = vpop.f32.mrf.mxu0
      %v2701 = vadd.f32 0.0, %v2700
      %2702 = vdwg.mxu0
      %2703 = vmatpush.bf16.msra.mxu0 0
      %2704 = vmatpush.bf16.msra.mxu0 0
      %2705 = vmatpush.bf16.msra.mxu0 0
      %2706 = vmatpush.bf16.msra.mxu0 0
      %2707 = vmatpush.bf16.msra.mxu0 0
      %2708 = vmatpush.bf16.msra.mxu0 0
      %2709 = vmatpush.bf16.msra.mxu0 %v2679
      %2710 = vmatpush.bf16.msra.mxu0 %v2677
      %2711 = vmatmul.bf16.gmra.mxu0 %v2687
      %v2712 = vpop.f32.mrf.mxu0
      %v2713 = vadd.f32 0.0, %v2712
      %v2714 = vpop.f32.mrf.mxu0
      %v2715 = vadd.f32 0.0, %v2714
      %2716 = vdwg.mxu0
      %2717 = vmatpush.bf16.msra.mxu0 0
      %2718 = vmatpush.bf16.msra.mxu0 0
      %2719 = vmatpush.bf16.msra.mxu0 0
      %2720 = vmatpush.bf16.msra.mxu0 0
      %2721 = vmatpush.bf16.msra.mxu0 0
      %2722 = vmatpush.bf16.msra.mxu0 0
      %2723 = vmatpush.bf16.msra.mxu0 %v2675
      %2724 = vmatpush.bf16.msra.mxu0 %v2669
      %2725 = vmatmul.bf16.gmra.mxu0 %v2687
      %v2726 = vpop.f32.mrf.mxu0
      %v2727 = vadd.f32 0.0, %v2726
      %v2728 = vpop.f32.mrf.mxu0
      %v2729 = vadd.f32 0.0, %v2728
      %2730 = vdwg.mxu0
      %v2731 = vadd.f32 %v2650, %v2699
      %v2732 = vadd.f32 %v2651, %v2713
      %v2733 = vadd.f32 %v2652, %v2727
      %v2734 = vadd.f32 %v2653, %v2701
      %v2735 = vadd.f32 %v2654, %v2715
      %v2736 = vadd.f32 %v2655, %v2729
      %s2737 = scalar_lea.vmem %s3, 64
      %v2738 = vld [vmem:[%s2737] sm:$0xf]
      %v2739 = vld [vmem:[%s2737 + $0x4] sm:$0xf]
      %v2742 = vunpack.c.l.b16 %v2738
      %v2743 = vunpack.c.l.b16 %v2739
      %v2744 = vpack.c.b16 %v2743, %v2742
      %2745 = vrot.lane.b32.xlu0 %v2121, 90
      %v2746 = vpop.permute.xlu0 %2745
      %2747 = vrot.lane.b32.xlu0 %v2122, 90
      %v2748 = vpop.permute.xlu0 %2747
      %2749 = vrot.lane.b32.xlu0 %v2123, 90
      %v2750 = vpop.permute.xlu0 %2749
      %2751 = vrot.lane.b32.xlu0 %v2124, 90
      %v2752 = vpop.permute.xlu0 %2751
      %2753 = vrot.lane.b32.xlu0 %v2125, 90
      %v2754 = vpop.permute.xlu0 %2753
      %2755 = vrot.lane.b32.xlu0 %v2126, 90
      %v2756 = vpop.permute.xlu0 %2755
      %v2757 = vsel %vm1583, %v2746, %v2748
      %v2758 = vsel %vm1583, %v2748, %v2750
      %v2759 = vsel %vm1583, %v2752, %v2754
      %v2760 = vsel %vm1583, %v2754, %v2756
      %v2768 = vsel %vm2149, %v2744, 0
      %2770 = vmatpush.bf16.msra.mxu0 0
      %2771 = vmatpush.bf16.msra.mxu0 0
      %2772 = vmatpush.bf16.msra.mxu0 0
      %2773 = vmatpush.bf16.msra.mxu0 0
      %2774 = vmatpush.bf16.msra.mxu0 0
      %2775 = vmatpush.bf16.msra.mxu0 0
      %2776 = vmatpush.bf16.msra.mxu0 %v2759
      %2777 = vmatpush.bf16.msra.mxu0 %v2757
      %2778 = vmatmul.bf16.gmra.mxu0 %v2768
      %v2779 = vpop.f32.mrf.mxu0
      %v2780 = vadd.f32 0.0, %v2779
      %v2781 = vpop.f32.mrf.mxu0
      %v2782 = vadd.f32 0.0, %v2781
      %2783 = vdwg.mxu0
      %2784 = vmatpush.bf16.msra.mxu0 0
      %2785 = vmatpush.bf16.msra.mxu0 0
      %2786 = vmatpush.bf16.msra.mxu0 0
      %2787 = vmatpush.bf16.msra.mxu0 0
      %2788 = vmatpush.bf16.msra.mxu0 0
      %2789 = vmatpush.bf16.msra.mxu0 0
      %2790 = vmatpush.bf16.msra.mxu0 %v2760
      %2791 = vmatpush.bf16.msra.mxu0 %v2758
      %2792 = vmatmul.bf16.gmra.mxu0 %v2768
      %v2793 = vpop.f32.mrf.mxu0
      %v2794 = vadd.f32 0.0, %v2793
      %v2795 = vpop.f32.mrf.mxu0
      %v2796 = vadd.f32 0.0, %v2795
      %2797 = vdwg.mxu0
      %2798 = vmatpush.bf16.msra.mxu0 0
      %2799 = vmatpush.bf16.msra.mxu0 0
      %2800 = vmatpush.bf16.msra.mxu0 0
      %2801 = vmatpush.bf16.msra.mxu0 0
      %2802 = vmatpush.bf16.msra.mxu0 0
      %2803 = vmatpush.bf16.msra.mxu0 0
      %2804 = vmatpush.bf16.msra.mxu0 %v2756
      %2805 = vmatpush.bf16.msra.mxu0 %v2750
      %2806 = vmatmul.bf16.gmra.mxu0 %v2768
      %v2807 = vpop.f32.mrf.mxu0
      %v2808 = vadd.f32 0.0, %v2807
      %v2809 = vpop.f32.mrf.mxu0
      %v2810 = vadd.f32 0.0, %v2809
      %2811 = vdwg.mxu0
      %v2812 = vadd.f32 %v2731, %v2780
      %v2813 = vadd.f32 %v2732, %v2794
      %v2814 = vadd.f32 %v2733, %v2808
      %v2815 = vadd.f32 %v2734, %v2782
      %v2816 = vadd.f32 %v2735, %v2796
      %v2817 = vadd.f32 %v2736, %v2810
      %v2818 = vld [vmem:[%s4] sm:$0xff]
      %v2819 = vld [vmem:[%s4 + $0x8] sm:$0xff]
      %2821 = vset.pattern.permute.xlu0 0
      %2822 = vperm.xlu0 %2821, %v2818
      %v2823 = vpop.permute.xlu0 %2822
      %2826 = vset.pattern.permute.xlu0 0
      %2827 = vperm.xlu0 %2826, %v2819
      %v2828 = vpop.permute.xlu0 %2827
      %v2830 = vadd.f32 %v2812, %v2823
      %v2831 = vadd.f32 %v2813, %v2823
      %v2832 = vadd.f32 %v2814, %v2823
      %v2833 = vadd.f32 %v2815, %v2828
      %v2834 = vadd.f32 %v2816, %v2828
      %v2835 = vadd.f32 %v2817, %v2828
      %v2836 = vmax.f32 %v2830, 0.0
      %v2837 = vmax.f32 %v2831, 0.0
      %v2838 = vmax.f32 %v2832, 0.0
      %v2839 = vmax.f32 %v2833, 0.0
      %v2840 = vmax.f32 %v2834, 0.0
      %v2841 = vmax.f32 %v2835, 0.0
      %v2842 = vpack.c.bf16 %v2837, %v2836
      %v2843 = vpack.c.bf16 %v2838, %v2838
      %v2844 = vpack.c.bf16 %v2840, %v2839
      %v2845 = vpack.c.bf16 %v2841, %v2841
      %2850 = vrot.lane.b32.xlu0 %v2842, 19
      %v2851 = vpop.permute.xlu0 %2850
      %2852 = vrot.lane.b32.xlu0 %v2843, 19
      %v2853 = vpop.permute.xlu0 %2852
      %2854 = vrot.lane.b32.xlu0 %v2844, 19
      %v2855 = vpop.permute.xlu0 %2854
      %2856 = vrot.lane.b32.xlu0 %v2845, 19
      %v2857 = vpop.permute.xlu0 %2856
      %v2858 = vrot.slane %v2851, 4
      %v2859 = vrot.slane %v2855, 4
      %v2860 = vsel %vm1763, %v2858, %v2851
      %v2861 = vsel %vm1763, %v2858, %v2853
      %v2862 = vsel %vm1763, %v2859, %v2855
      %v2863 = vsel %vm1763, %v2859, %v2857
      %2868 = vst.msk [vmem:[#allocation2] sm:$0xff] %vm1782, %v2860
      %2869 = vst.msk [vmem:[#allocation2 + $0x8] sm:$0xf] %vm1784, %v2861
      %2870 = vst.msk [vmem:[#allocation2 + $0xc] sm:$0xff] %vm1782, %v2862
      %2871 = vst.msk [vmem:[#allocation2 + $0x14] sm:$0xf] %vm1784, %v2863
      %v2872 = vld [vmem:[#allocation2] sm:$0xff]
      %v2873 = vld [vmem:[#allocation2 + $0x8] sm:$0xf]
      %v2874 = vld [vmem:[#allocation2 + $0xc] sm:$0xff]
      %v2875 = vld [vmem:[#allocation2 + $0x14] sm:$0xf]
      %2880 = vrot.lane.b32.xlu0 %v2872, 126
      %v2881 = vpop.permute.xlu0 %2880
      %2882 = vrot.lane.b32.xlu0 %v2873, 126
      %v2883 = vpop.permute.xlu0 %2882
      %2884 = vrot.lane.b32.xlu0 %v2874, 126
      %v2885 = vpop.permute.xlu0 %2884
      %2886 = vrot.lane.b32.xlu0 %v2875, 126
      %v2887 = vpop.permute.xlu0 %2886
      %v2888 = vrot.slane %v2881, 4
      %v2889 = vrot.slane %v2883, 4
      %v2890 = vrot.slane %v2885, 4
      %v2891 = vrot.slane %v2887, 4
      %v2892 = vsel %vm1864, %v2888, %v2889
      %v2893 = vsel %vm773, %v2881, %v2892
      %v2894 = vsel %vm1864, %v2890, %v2891
      %v2895 = vsel %vm773, %v2885, %v2894
      %v2900 = vsel %vm1824, %v2872, %v2893
      %v2901 = vsel %vm1831, %v2873, %v2883
      %v2902 = vsel %vm1824, %v2874, %v2895
      %v2903 = vsel %vm1831, %v2875, %v2887
      %2908 = vrot.lane.b32.xlu0 %v2900, 4
      %v2909 = vpop.permute.xlu0 %2908
      %2910 = vrot.lane.b32.xlu0 %v2901, 4
      %v2911 = vpop.permute.xlu0 %2910
      %2912 = vrot.lane.b32.xlu0 %v2902, 4
      %v2913 = vpop.permute.xlu0 %2912
      %2914 = vrot.lane.b32.xlu0 %v2903, 4
      %v2915 = vpop.permute.xlu0 %2914
      %v2916 = vrot.slane %v2909, 4
      %v2917 = vrot.slane %v2913, 4
      %v2918 = vsel %vm1949, %v2916, %v2909
      %v2919 = vsel %vm1949, %v2916, %v2911
      %v2920 = vsel %vm1949, %v2917, %v2913
      %v2921 = vsel %vm1949, %v2917, %v2915
      %v2926 = vsel %vm1913, %v2872, %v2918
      %v2927 = vsel %vm1920, %v2873, %v2919
      %v2928 = vsel %vm1913, %v2874, %v2920
      %v2929 = vsel %vm1920, %v2875, %v2921
      %2934 = vrot.lane.b32.xlu0 %v2926, 126
      %v2935 = vpop.permute.xlu0 %2934
      %2936 = vrot.lane.b32.xlu0 %v2927, 126
      %v2937 = vpop.permute.xlu0 %2936
      %2938 = vrot.lane.b32.xlu0 %v2928, 126
      %v2939 = vpop.permute.xlu0 %2938
      %2940 = vrot.lane.b32.xlu0 %v2929, 126
      %v2941 = vpop.permute.xlu0 %2940
      %v2942 = vrot.slane %v2935, 4
      %v2943 = vrot.slane %v2937, 4
      %v2944 = vrot.slane %v2939, 4
      %v2945 = vrot.slane %v2941, 4
      %v2946 = vsel %vm1864, %v2942, %v2943
      %v2947 = vsel %vm773, %v2935, %v2946
      %v2948 = vsel %vm1864, %v2944, %v2945
      %v2949 = vsel %vm773, %v2939, %v2948
      %2954 = vst.msk [vmem:[#allocation2] sm:$0xff] %vm2023, %v2947
      %2955 = vst.msk [vmem:[#allocation2 + $0x8] sm:$0xf] %vm2025, %v2937
      %2956 = vst.msk [vmem:[#allocation2 + $0xc] sm:$0xff] %vm2023, %v2949
      %2957 = vst.msk [vmem:[#allocation2 + $0x14] sm:$0xf] %vm2025, %v2941
      %v2958 = vld [vmem:[#allocation2] sm:$0xf]
      %v2959 = vld [vmem:[#allocation2 + $0xc] sm:$0xf]
      %2962 = vrot.lane.b32.xlu0 %v2958, 92
      %v2963 = vpop.permute.xlu0 %2962
      %2964 = vrot.lane.b32.xlu0 %v2959, 92
      %v2965 = vpop.permute.xlu0 %2964
      %2968 = vst.msk [vmem:[#allocation2] sm:$0xf] %vm2053, %v2963
      %2969 = vst.msk [vmem:[#allocation2 + $0xc] sm:$0xf] %vm2053, %v2965
      %v2970 = vld [vmem:[#allocation2 + $0x8] sm:$0xf]
      %v2971 = vld [vmem:[#allocation2 + $0x14] sm:$0xf]
      %2974 = vrot.lane.b32.xlu0 %v2970, 36
      %v2975 = vpop.permute.xlu0 %2974
      %2976 = vrot.lane.b32.xlu0 %v2971, 36
      %v2977 = vpop.permute.xlu0 %2976
      %2980 = vst.msk [vmem:[#allocation2 + $0x8] sm:$0xf] %vm2078, %v2975
      %2981 = vst.msk [vmem:[#allocation2 + $0x14] sm:$0xf] %vm2078, %v2977
      %v2982 = vld [vmem:[#allocation2] sm:$0xff]
      %v2983 = vld [vmem:[#allocation2 + $0x8] sm:$0xf]
      %v2984 = vld [vmem:[#allocation2 + $0xc] sm:$0xff]
      %v2985 = vld [vmem:[#allocation2 + $0x14] sm:$0xf]
      %v2986 = vld [vmem:[%s5] sm:$0xf]
      %s2987 = scalar_lea.vmem %s5, 4
      %v2988 = vld [vmem:[%s2987] sm:$0xf]
      %v2993 = vunpack.c.l.b16 %v2982
      %v2994 = vunpack.c.h.b16 %v2982
      %v2995 = vunpack.c.l.b16 %v2983
      %v2996 = vunpack.c.l.b16 %v2984
      %v2997 = vunpack.c.h.b16 %v2984
      %v2998 = vunpack.c.l.b16 %v2985
      %v2999 = vpack.c.b16 %v2996, %v2993
      %v3000 = vpack.c.b16 %v2997, %v2994
      %v3001 = vpack.c.b16 %v2998, %v2995
      %3002 = vrot.lane.b32.xlu0 %v2999, 127
      %v3003 = vpop.permute.xlu0 %3002
      %3004 = vrot.lane.b32.xlu0 %v3000, 127
      %v3005 = vpop.permute.xlu0 %3004
      %3006 = vrot.lane.b32.xlu0 %v3001, 127
      %v3007 = vpop.permute.xlu0 %3006
      %v3008 = vsel %vm564, %v3003, %v3005
      %v3009 = vsel %vm564, %v3005, %v3007
      %vm3013 = vcmask 130048
      %v3015 = vsel %vm3013, %v2988, 0
      %3017 = vmatpush.bf16.msra.mxu0 0
      %3018 = vmatpush.bf16.msra.mxu0 0
      %3019 = vmatpush.bf16.msra.mxu0 0
      %3020 = vmatpush.bf16.msra.mxu0 0
      %3021 = vmatpush.bf16.msra.mxu0 0
      %3022 = vmatpush.bf16.msra.mxu0 0
      %3023 = vmatpush.bf16.msra.mxu0 0
      %3024 = vmatpush.bf16.msra.mxu0 %v3008
      %3025 = vmatmul.bf16.gmra.mxu0 %v3015
      %v3026 = vpop.f32.mrf.mxu0
      %v3027 = vadd.f32 0.0, %v3026
      %v3028 = vpop.f32.mrf.mxu0
      %3029 = vdwg.mxu0
      %3030 = vmatpush.bf16.msra.mxu0 0
      %3031 = vmatpush.bf16.msra.mxu0 0
      %3032 = vmatpush.bf16.msra.mxu0 0
      %3033 = vmatpush.bf16.msra.mxu0 0
      %3034 = vmatpush.bf16.msra.mxu0 0
      %3035 = vmatpush.bf16.msra.mxu0 0
      %3036 = vmatpush.bf16.msra.mxu0 0
      %3037 = vmatpush.bf16.msra.mxu0 %v3009
      %3038 = vmatmul.bf16.gmra.mxu0 %v3015
      %v3039 = vpop.f32.mrf.mxu0
      %v3040 = vadd.f32 0.0, %v3039
      %v3041 = vpop.f32.mrf.mxu0
      %3042 = vdwg.mxu0
      %3043 = vmatpush.bf16.msra.mxu0 0
      %3044 = vmatpush.bf16.msra.mxu0 0
      %3045 = vmatpush.bf16.msra.mxu0 0
      %3046 = vmatpush.bf16.msra.mxu0 0
      %3047 = vmatpush.bf16.msra.mxu0 0
      %3048 = vmatpush.bf16.msra.mxu0 0
      %3049 = vmatpush.bf16.msra.mxu0 0
      %3050 = vmatpush.bf16.msra.mxu0 %v3007
      %3051 = vmatmul.bf16.gmra.mxu0 %v3015
      %v3052 = vpop.f32.mrf.mxu0
      %v3053 = vadd.f32 0.0, %v3052
      %v3054 = vpop.f32.mrf.mxu0
      %3055 = vdwg.mxu0
      %v3060 = vsel %vm3013, %v2986, 0
      %3062 = vmatpush.bf16.msra.mxu0 0
      %3063 = vmatpush.bf16.msra.mxu0 0
      %3064 = vmatpush.bf16.msra.mxu0 0
      %3065 = vmatpush.bf16.msra.mxu0 0
      %3066 = vmatpush.bf16.msra.mxu0 0
      %3067 = vmatpush.bf16.msra.mxu0 0
      %3068 = vmatpush.bf16.msra.mxu0 0
      %3069 = vmatpush.bf16.msra.mxu0 %v2999
      %3070 = vmatmul.bf16.gmra.mxu0 %v3060
      %v3071 = vpop.f32.mrf.mxu0
      %v3072 = vadd.f32 %v3027, %v3071
      %v3073 = vpop.f32.mrf.mxu0
      %3074 = vdwg.mxu0
      %3075 = vmatpush.bf16.msra.mxu0 0
      %3076 = vmatpush.bf16.msra.mxu0 0
      %3077 = vmatpush.bf16.msra.mxu0 0
      %3078 = vmatpush.bf16.msra.mxu0 0
      %3079 = vmatpush.bf16.msra.mxu0 0
      %3080 = vmatpush.bf16.msra.mxu0 0
      %3081 = vmatpush.bf16.msra.mxu0 0
      %3082 = vmatpush.bf16.msra.mxu0 %v3000
      %3083 = vmatmul.bf16.gmra.mxu0 %v3060
      %v3084 = vpop.f32.mrf.mxu0
      %v3085 = vadd.f32 %v3040, %v3084
      %v3086 = vpop.f32.mrf.mxu0
      %3087 = vdwg.mxu0
      %3088 = vmatpush.bf16.msra.mxu0 0
      %3089 = vmatpush.bf16.msra.mxu0 0
      %3090 = vmatpush.bf16.msra.mxu0 0
      %3091 = vmatpush.bf16.msra.mxu0 0
      %3092 = vmatpush.bf16.msra.mxu0 0
      %3093 = vmatpush.bf16.msra.mxu0 0
      %3094 = vmatpush.bf16.msra.mxu0 0
      %3095 = vmatpush.bf16.msra.mxu0 %v3001
      %3096 = vmatmul.bf16.gmra.mxu0 %v3060
      %v3097 = vpop.f32.mrf.mxu0
      %v3098 = vadd.f32 %v3053, %v3097
      %v3099 = vpop.f32.mrf.mxu0
      %3100 = vdwg.mxu0
      %s3101 = scalar_lea.vmem %s5, 8
      %v3102 = vld [vmem:[%s3101] sm:$0xf]
      %3103 = vrot.lane.b32.xlu0 %v2999, 126
      %v3104 = vpop.permute.xlu0 %3103
      %3105 = vrot.lane.b32.xlu0 %v3000, 126
      %v3106 = vpop.permute.xlu0 %3105
      %3107 = vrot.lane.b32.xlu0 %v3001, 126
      %v3108 = vpop.permute.xlu0 %3107
      %v3109 = vsel %vm773, %v3104, %v3106
      %v3110 = vsel %vm773, %v3106, %v3108
      %v3115 = vsel %vm3013, %v3102, 0
      %3117 = vmatpush.bf16.msra.mxu0 0
      %3118 = vmatpush.bf16.msra.mxu0 0
      %3119 = vmatpush.bf16.msra.mxu0 0
      %3120 = vmatpush.bf16.msra.mxu0 0
      %3121 = vmatpush.bf16.msra.mxu0 0
      %3122 = vmatpush.bf16.msra.mxu0 0
      %3123 = vmatpush.bf16.msra.mxu0 0
      %3124 = vmatpush.bf16.msra.mxu0 %v3109
      %3125 = vmatmul.bf16.gmra.mxu0 %v3115
      %v3126 = vpop.f32.mrf.mxu0
      %v3127 = vadd.f32 0.0, %v3126
      %v3128 = vpop.f32.mrf.mxu0
      %3129 = vdwg.mxu0
      %3130 = vmatpush.bf16.msra.mxu0 0
      %3131 = vmatpush.bf16.msra.mxu0 0
      %3132 = vmatpush.bf16.msra.mxu0 0
      %3133 = vmatpush.bf16.msra.mxu0 0
      %3134 = vmatpush.bf16.msra.mxu0 0
      %3135 = vmatpush.bf16.msra.mxu0 0
      %3136 = vmatpush.bf16.msra.mxu0 0
      %3137 = vmatpush.bf16.msra.mxu0 %v3110
      %3138 = vmatmul.bf16.gmra.mxu0 %v3115
      %v3139 = vpop.f32.mrf.mxu0
      %v3140 = vadd.f32 0.0, %v3139
      %v3141 = vpop.f32.mrf.mxu0
      %3142 = vdwg.mxu0
      %3143 = vmatpush.bf16.msra.mxu0 0
      %3144 = vmatpush.bf16.msra.mxu0 0
      %3145 = vmatpush.bf16.msra.mxu0 0
      %3146 = vmatpush.bf16.msra.mxu0 0
      %3147 = vmatpush.bf16.msra.mxu0 0
      %3148 = vmatpush.bf16.msra.mxu0 0
      %3149 = vmatpush.bf16.msra.mxu0 0
      %3150 = vmatpush.bf16.msra.mxu0 %v3108
      %3151 = vmatmul.bf16.gmra.mxu0 %v3115
      %v3152 = vpop.f32.mrf.mxu0
      %v3153 = vadd.f32 0.0, %v3152
      %v3154 = vpop.f32.mrf.mxu0
      %3155 = vdwg.mxu0
      %v3156 = vadd.f32 %v3072, %v3127
      %v3157 = vadd.f32 %v3085, %v3140
      %v3158 = vadd.f32 %v3098, %v3153
      %s3159 = scalar_lea.vmem %s5, 12
      %v3160 = vld [vmem:[%s3159] sm:$0xf]
      %3161 = vrot.lane.b32.xlu0 %v2999, 110
      %v3162 = vpop.permute.xlu0 %3161
      %3163 = vrot.lane.b32.xlu0 %v3000, 110
      %v3164 = vpop.permute.xlu0 %3163
      %3165 = vrot.lane.b32.xlu0 %v3001, 110
      %v3166 = vpop.permute.xlu0 %3165
      %v3167 = vsel %vm908, %v3162, %v3164
      %v3168 = vsel %vm908, %v3164, %v3166
      %v3173 = vsel %vm3013, %v3160, 0
      %3175 = vmatpush.bf16.msra.mxu0 0
      %3176 = vmatpush.bf16.msra.mxu0 0
      %3177 = vmatpush.bf16.msra.mxu0 0
      %3178 = vmatpush.bf16.msra.mxu0 0
      %3179 = vmatpush.bf16.msra.mxu0 0
      %3180 = vmatpush.bf16.msra.mxu0 0
      %3181 = vmatpush.bf16.msra.mxu0 0
      %3182 = vmatpush.bf16.msra.mxu0 %v3167
      %3183 = vmatmul.bf16.gmra.mxu0 %v3173
      %v3184 = vpop.f32.mrf.mxu0
      %v3185 = vadd.f32 0.0, %v3184
      %v3186 = vpop.f32.mrf.mxu0
      %3187 = vdwg.mxu0
      %3188 = vmatpush.bf16.msra.mxu0 0
      %3189 = vmatpush.bf16.msra.mxu0 0
      %3190 = vmatpush.bf16.msra.mxu0 0
      %3191 = vmatpush.bf16.msra.mxu0 0
      %3192 = vmatpush.bf16.msra.mxu0 0
      %3193 = vmatpush.bf16.msra.mxu0 0
      %3194 = vmatpush.bf16.msra.mxu0 0
      %3195 = vmatpush.bf16.msra.mxu0 %v3168
      %3196 = vmatmul.bf16.gmra.mxu0 %v3173
      %v3197 = vpop.f32.mrf.mxu0
      %v3198 = vadd.f32 0.0, %v3197
      %v3199 = vpop.f32.mrf.mxu0
      %3200 = vdwg.mxu0
      %3201 = vmatpush.bf16.msra.mxu0 0
      %3202 = vmatpush.bf16.msra.mxu0 0
      %3203 = vmatpush.bf16.msra.mxu0 0
      %3204 = vmatpush.bf16.msra.mxu0 0
      %3205 = vmatpush.bf16.msra.mxu0 0
      %3206 = vmatpush.bf16.msra.mxu0 0
      %3207 = vmatpush.bf16.msra.mxu0 0
      %3208 = vmatpush.bf16.msra.mxu0 %v3166
      %3209 = vmatmul.bf16.gmra.mxu0 %v3173
      %v3210 = vpop.f32.mrf.mxu0
      %v3211 = vadd.f32 0.0, %v3210
      %v3212 = vpop.f32.mrf.mxu0
      %3213 = vdwg.mxu0
      %v3214 = vadd.f32 %v3156, %v3185
      %v3215 = vadd.f32 %v3157, %v3198
      %v3216 = vadd.f32 %v3158, %v3211
      %s3217 = scalar_lea.vmem %s5, 16
      %v3218 = vld [vmem:[%s3217] sm:$0xf]
      %3219 = vrot.lane.b32.xlu0 %v2999, 109
      %v3220 = vpop.permute.xlu0 %3219
      %3221 = vrot.lane.b32.xlu0 %v3000, 109
      %v3222 = vpop.permute.xlu0 %3221
      %3223 = vrot.lane.b32.xlu0 %v3001, 109
      %v3224 = vpop.permute.xlu0 %3223
      %v3225 = vsel %vm1043, %v3220, %v3222
      %v3226 = vsel %vm1043, %v3222, %v3224
      %v3231 = vsel %vm3013, %v3218, 0
      %3233 = vmatpush.bf16.msra.mxu0 0
      %3234 = vmatpush.bf16.msra.mxu0 0
      %3235 = vmatpush.bf16.msra.mxu0 0
      %3236 = vmatpush.bf16.msra.mxu0 0
      %3237 = vmatpush.bf16.msra.mxu0 0
      %3238 = vmatpush.bf16.msra.mxu0 0
      %3239 = vmatpush.bf16.msra.mxu0 0
      %3240 = vmatpush.bf16.msra.mxu0 %v3225
      %3241 = vmatmul.bf16.gmra.mxu0 %v3231
      %v3242 = vpop.f32.mrf.mxu0
      %v3243 = vadd.f32 0.0, %v3242
      %v3244 = vpop.f32.mrf.mxu0
      %3245 = vdwg.mxu0
      %3246 = vmatpush.bf16.msra.mxu0 0
      %3247 = vmatpush.bf16.msra.mxu0 0
      %3248 = vmatpush.bf16.msra.mxu0 0
      %3249 = vmatpush.bf16.msra.mxu0 0
      %3250 = vmatpush.bf16.msra.mxu0 0
      %3251 = vmatpush.bf16.msra.mxu0 0
      %3252 = vmatpush.bf16.msra.mxu0 0
      %3253 = vmatpush.bf16.msra.mxu0 %v3226
      %3254 = vmatmul.bf16.gmra.mxu0 %v3231
      %v3255 = vpop.f32.mrf.mxu0
      %v3256 = vadd.f32 0.0, %v3255
      %v3257 = vpop.f32.mrf.mxu0
      %3258 = vdwg.mxu0
      %3259 = vmatpush.bf16.msra.mxu0 0
      %3260 = vmatpush.bf16.msra.mxu0 0
      %3261 = vmatpush.bf16.msra.mxu0 0
      %3262 = vmatpush.bf16.msra.mxu0 0
      %3263 = vmatpush.bf16.msra.mxu0 0
      %3264 = vmatpush.bf16.msra.mxu0 0
      %3265 = vmatpush.bf16.msra.mxu0 0
      %3266 = vmatpush.bf16.msra.mxu0 %v3224
      %3267 = vmatmul.bf16.gmra.mxu0 %v3231
      %v3268 = vpop.f32.mrf.mxu0
      %v3269 = vadd.f32 0.0, %v3268
      %v3270 = vpop.f32.mrf.mxu0
      %3271 = vdwg.mxu0
      %v3272 = vadd.f32 %v3214, %v3243
      %v3273 = vadd.f32 %v3215, %v3256
      %v3274 = vadd.f32 %v3216, %v3269
      %s3275 = scalar_lea.vmem %s5, 20
      %v3276 = vld [vmem:[%s3275] sm:$0xf]
      %3277 = vrot.lane.b32.xlu0 %v2999, 108
      %v3278 = vpop.permute.xlu0 %3277
      %3279 = vrot.lane.b32.xlu0 %v3000, 108
      %v3280 = vpop.permute.xlu0 %3279
      %3281 = vrot.lane.b32.xlu0 %v3001, 108
      %v3282 = vpop.permute.xlu0 %3281
      %v3283 = vsel %vm1178, %v3278, %v3280
      %v3284 = vsel %vm1178, %v3280, %v3282
      %v3289 = vsel %vm3013, %v3276, 0
      %3291 = vmatpush.bf16.msra.mxu0 0
      %3292 = vmatpush.bf16.msra.mxu0 0
      %3293 = vmatpush.bf16.msra.mxu0 0
      %3294 = vmatpush.bf16.msra.mxu0 0
      %3295 = vmatpush.bf16.msra.mxu0 0
      %3296 = vmatpush.bf16.msra.mxu0 0
      %3297 = vmatpush.bf16.msra.mxu0 0
      %3298 = vmatpush.bf16.msra.mxu0 %v3283
      %3299 = vmatmul.bf16.gmra.mxu0 %v3289
      %v3300 = vpop.f32.mrf.mxu0
      %v3301 = vadd.f32 0.0, %v3300
      %v3302 = vpop.f32.mrf.mxu0
      %3303 = vdwg.mxu0
      %3304 = vmatpush.bf16.msra.mxu0 0
      %3305 = vmatpush.bf16.msra.mxu0 0
      %3306 = vmatpush.bf16.msra.mxu0 0
      %3307 = vmatpush.bf16.msra.mxu0 0
      %3308 = vmatpush.bf16.msra.mxu0 0
      %3309 = vmatpush.bf16.msra.mxu0 0
      %3310 = vmatpush.bf16.msra.mxu0 0
      %3311 = vmatpush.bf16.msra.mxu0 %v3284
      %3312 = vmatmul.bf16.gmra.mxu0 %v3289
      %v3313 = vpop.f32.mrf.mxu0
      %v3314 = vadd.f32 0.0, %v3313
      %v3315 = vpop.f32.mrf.mxu0
      %3316 = vdwg.mxu0
      %3317 = vmatpush.bf16.msra.mxu0 0
      %3318 = vmatpush.bf16.msra.mxu0 0
      %3319 = vmatpush.bf16.msra.mxu0 0
      %3320 = vmatpush.bf16.msra.mxu0 0
      %3321 = vmatpush.bf16.msra.mxu0 0
      %3322 = vmatpush.bf16.msra.mxu0 0
      %3323 = vmatpush.bf16.msra.mxu0 0
      %3324 = vmatpush.bf16.msra.mxu0 %v3282
      %3325 = vmatmul.bf16.gmra.mxu0 %v3289
      %v3326 = vpop.f32.mrf.mxu0
      %v3327 = vadd.f32 0.0, %v3326
      %v3328 = vpop.f32.mrf.mxu0
      %3329 = vdwg.mxu0
      %v3330 = vadd.f32 %v3272, %v3301
      %v3331 = vadd.f32 %v3273, %v3314
      %v3332 = vadd.f32 %v3274, %v3327
      %s3333 = scalar_lea.vmem %s5, 24
      %v3334 = vld [vmem:[%s3333] sm:$0xf]
      %3335 = vrot.lane.b32.xlu0 %v2999, 92
      %v3336 = vpop.permute.xlu0 %3335
      %3337 = vrot.lane.b32.xlu0 %v3000, 92
      %v3338 = vpop.permute.xlu0 %3337
      %3339 = vrot.lane.b32.xlu0 %v3001, 92
      %v3340 = vpop.permute.xlu0 %3339
      %v3341 = vsel %vm1313, %v3336, %v3338
      %v3342 = vsel %vm1313, %v3338, %v3340
      %v3347 = vsel %vm3013, %v3334, 0
      %3349 = vmatpush.bf16.msra.mxu0 0
      %3350 = vmatpush.bf16.msra.mxu0 0
      %3351 = vmatpush.bf16.msra.mxu0 0
      %3352 = vmatpush.bf16.msra.mxu0 0
      %3353 = vmatpush.bf16.msra.mxu0 0
      %3354 = vmatpush.bf16.msra.mxu0 0
      %3355 = vmatpush.bf16.msra.mxu0 0
      %3356 = vmatpush.bf16.msra.mxu0 %v3341
      %3357 = vmatmul.bf16.gmra.mxu0 %v3347
      %v3358 = vpop.f32.mrf.mxu0
      %v3359 = vadd.f32 0.0, %v3358
      %v3360 = vpop.f32.mrf.mxu0
      %3361 = vdwg.mxu0
      %3362 = vmatpush.bf16.msra.mxu0 0
      %3363 = vmatpush.bf16.msra.mxu0 0
      %3364 = vmatpush.bf16.msra.mxu0 0
      %3365 = vmatpush.bf16.msra.mxu0 0
      %3366 = vmatpush.bf16.msra.mxu0 0
      %3367 = vmatpush.bf16.msra.mxu0 0
      %3368 = vmatpush.bf16.msra.mxu0 0
      %3369 = vmatpush.bf16.msra.mxu0 %v3342
      %3370 = vmatmul.bf16.gmra.mxu0 %v3347
      %v3371 = vpop.f32.mrf.mxu0
      %v3372 = vadd.f32 0.0, %v3371
      %v3373 = vpop.f32.mrf.mxu0
      %3374 = vdwg.mxu0
      %3375 = vmatpush.bf16.msra.mxu0 0
      %3376 = vmatpush.bf16.msra.mxu0 0
      %3377 = vmatpush.bf16.msra.mxu0 0
      %3378 = vmatpush.bf16.msra.mxu0 0
      %3379 = vmatpush.bf16.msra.mxu0 0
      %3380 = vmatpush.bf16.msra.mxu0 0
      %3381 = vmatpush.bf16.msra.mxu0 0
      %3382 = vmatpush.bf16.msra.mxu0 %v3340
      %3383 = vmatmul.bf16.gmra.mxu0 %v3347
      %v3384 = vpop.f32.mrf.mxu0
      %v3385 = vadd.f32 0.0, %v3384
      %v3386 = vpop.f32.mrf.mxu0
      %3387 = vdwg.mxu0
      %v3388 = vadd.f32 %v3330, %v3359
      %v3389 = vadd.f32 %v3331, %v3372
      %v3390 = vadd.f32 %v3332, %v3385
      %s3391 = scalar_lea.vmem %s5, 28
      %v3392 = vld [vmem:[%s3391] sm:$0xf]
      %3393 = vrot.lane.b32.xlu0 %v2999, 91
      %v3394 = vpop.permute.xlu0 %3393
      %3395 = vrot.lane.b32.xlu0 %v3000, 91
      %v3396 = vpop.permute.xlu0 %3395
      %3397 = vrot.lane.b32.xlu0 %v3001, 91
      %v3398 = vpop.permute.xlu0 %3397
      %v3399 = vsel %vm1448, %v3394, %v3396
      %v3400 = vsel %vm1448, %v3396, %v3398
      %v3405 = vsel %vm3013, %v3392, 0
      %3407 = vmatpush.bf16.msra.mxu0 0
      %3408 = vmatpush.bf16.msra.mxu0 0
      %3409 = vmatpush.bf16.msra.mxu0 0
      %3410 = vmatpush.bf16.msra.mxu0 0
      %3411 = vmatpush.bf16.msra.mxu0 0
      %3412 = vmatpush.bf16.msra.mxu0 0
      %3413 = vmatpush.bf16.msra.mxu0 0
      %3414 = vmatpush.bf16.msra.mxu0 %v3399
      %3415 = vmatmul.bf16.gmra.mxu0 %v3405
      %v3416 = vpop.f32.mrf.mxu0
      %v3417 = vadd.f32 0.0, %v3416
      %v3418 = vpop.f32.mrf.mxu0
      %3419 = vdwg.mxu0
      %3420 = vmatpush.bf16.msra.mxu0 0
      %3421 = vmatpush.bf16.msra.mxu0 0
      %3422 = vmatpush.bf16.msra.mxu0 0
      %3423 = vmatpush.bf16.msra.mxu0 0
      %3424 = vmatpush.bf16.msra.mxu0 0
      %3425 = vmatpush.bf16.msra.mxu0 0
      %3426 = vmatpush.bf16.msra.mxu0 0
      %3427 = vmatpush.bf16.msra.mxu0 %v3400
      %3428 = vmatmul.bf16.gmra.mxu0 %v3405
      %v3429 = vpop.f32.mrf.mxu0
      %v3430 = vadd.f32 0.0, %v3429
      %v3431 = vpop.f32.mrf.mxu0
      %3432 = vdwg.mxu0
      %3433 = vmatpush.bf16.msra.mxu0 0
      %3434 = vmatpush.bf16.msra.mxu0 0
      %3435 = vmatpush.bf16.msra.mxu0 0
      %3436 = vmatpush.bf16.msra.mxu0 0
      %3437 = vmatpush.bf16.msra.mxu0 0
      %3438 = vmatpush.bf16.msra.mxu0 0
      %3439 = vmatpush.bf16.msra.mxu0 0
      %3440 = vmatpush.bf16.msra.mxu0 %v3398
      %3441 = vmatmul.bf16.gmra.mxu0 %v3405
      %v3442 = vpop.f32.mrf.mxu0
      %v3443 = vadd.f32 0.0, %v3442
      %v3444 = vpop.f32.mrf.mxu0
      %3445 = vdwg.mxu0
      %v3446 = vadd.f32 %v3388, %v3417
      %v3447 = vadd.f32 %v3389, %v3430
      %v3448 = vadd.f32 %v3390, %v3443
      %s3449 = scalar_lea.vmem %s5, 32
      %v3450 = vld [vmem:[%s3449] sm:$0xf]
      %3451 = vrot.lane.b32.xlu0 %v2999, 90
      %v3452 = vpop.permute.xlu0 %3451
      %3453 = vrot.lane.b32.xlu0 %v3000, 90
      %v3454 = vpop.permute.xlu0 %3453
      %3455 = vrot.lane.b32.xlu0 %v3001, 90
      %v3456 = vpop.permute.xlu0 %3455
      %v3457 = vsel %vm1583, %v3452, %v3454
      %v3458 = vsel %vm1583, %v3454, %v3456
      %v3463 = vsel %vm3013, %v3450, 0
      %3465 = vmatpush.bf16.msra.mxu0 0
      %3466 = vmatpush.bf16.msra.mxu0 0
      %3467 = vmatpush.bf16.msra.mxu0 0
      %3468 = vmatpush.bf16.msra.mxu0 0
      %3469 = vmatpush.bf16.msra.mxu0 0
      %3470 = vmatpush.bf16.msra.mxu0 0
      %3471 = vmatpush.bf16.msra.mxu0 0
      %3472 = vmatpush.bf16.msra.mxu0 %v3457
      %3473 = vmatmul.bf16.gmra.mxu0 %v3463
      %v3474 = vpop.f32.mrf.mxu0
      %v3475 = vadd.f32 0.0, %v3474
      %v3476 = vpop.f32.mrf.mxu0
      %3477 = vdwg.mxu0
      %3478 = vmatpush.bf16.msra.mxu0 0
      %3479 = vmatpush.bf16.msra.mxu0 0
      %3480 = vmatpush.bf16.msra.mxu0 0
      %3481 = vmatpush.bf16.msra.mxu0 0
      %3482 = vmatpush.bf16.msra.mxu0 0
      %3483 = vmatpush.bf16.msra.mxu0 0
      %3484 = vmatpush.bf16.msra.mxu0 0
      %3485 = vmatpush.bf16.msra.mxu0 %v3458
      %3486 = vmatmul.bf16.gmra.mxu0 %v3463
      %v3487 = vpop.f32.mrf.mxu0
      %v3488 = vadd.f32 0.0, %v3487
      %v3489 = vpop.f32.mrf.mxu0
      %3490 = vdwg.mxu0
      %3491 = vmatpush.bf16.msra.mxu0 0
      %3492 = vmatpush.bf16.msra.mxu0 0
      %3493 = vmatpush.bf16.msra.mxu0 0
      %3494 = vmatpush.bf16.msra.mxu0 0
      %3495 = vmatpush.bf16.msra.mxu0 0
      %3496 = vmatpush.bf16.msra.mxu0 0
      %3497 = vmatpush.bf16.msra.mxu0 0
      %3498 = vmatpush.bf16.msra.mxu0 %v3456
      %3499 = vmatmul.bf16.gmra.mxu0 %v3463
      %v3500 = vpop.f32.mrf.mxu0
      %v3501 = vadd.f32 0.0, %v3500
      %v3502 = vpop.f32.mrf.mxu0
      %3503 = vdwg.mxu0
      %v3504 = vadd.f32 %v3446, %v3475
      %v3505 = vadd.f32 %v3447, %v3488
      %v3506 = vadd.f32 %v3448, %v3501
      %v3507 = vld [vmem:[%s6] sm:$0xff]
      %3509 = vset.pattern.permute.xlu0 0
      %3510 = vperm.xlu0 %3509, %v3507
      %v3511 = vpop.permute.xlu0 %3510
      %v3513 = vadd.f32 %v3504, %v3511
      %v3514 = vadd.f32 %v3505, %v3511
      %v3515 = vadd.f32 %v3506, %v3511
      %v3516 = vmax.f32 %v3513, 0.0
      %v3517 = vmax.f32 %v3514, 0.0
      %v3518 = vmax.f32 %v3515, 0.0
      %v3519 = vpack.c.bf16 %v3517, %v3516
      %v3520 = vpack.c.bf16 %v3518, %v3518
      %3523 = vrot.lane.b32.xlu0 %v3519, 19
      %v3524 = vpop.permute.xlu0 %3523
      %3525 = vrot.lane.b32.xlu0 %v3520, 19
      %v3526 = vpop.permute.xlu0 %3525
      %v3527 = vrot.slane %v3524, 4
      %v3528 = vsel %vm1763, %v3527, %v3524
      %v3529 = vsel %vm1763, %v3527, %v3526
      %3532 = vst.msk [vmem:[#allocation2] sm:$0xff] %vm1782, %v3528
      %3533 = vst.msk [vmem:[#allocation2 + $0x8] sm:$0xf] %vm1784, %v3529
      %v3534 = vld [vmem:[#allocation2] sm:$0xff]
      %v3535 = vld [vmem:[#allocation2 + $0x8] sm:$0xf]
      %3538 = vrot.lane.b32.xlu0 %v3534, 126
      %v3539 = vpop.permute.xlu0 %3538
      %3540 = vrot.lane.b32.xlu0 %v3535, 126
      %v3541 = vpop.permute.xlu0 %3540
      %v3542 = vrot.slane %v3539, 4
      %v3543 = vrot.slane %v3541, 4
      %v3544 = vsel %vm1864, %v3542, %v3543
      %v3545 = vsel %vm773, %v3539, %v3544
      %v3548 = vsel %vm1824, %v3534, %v3545
      %v3549 = vsel %vm1831, %v3535, %v3541
      %3552 = vrot.lane.b32.xlu0 %v3548, 4
      %v3553 = vpop.permute.xlu0 %3552
      %3554 = vrot.lane.b32.xlu0 %v3549, 4
      %v3555 = vpop.permute.xlu0 %3554
      %v3556 = vrot.slane %v3553, 4
      %v3557 = vsel %vm1949, %v3556, %v3553
      %v3558 = vsel %vm1949, %v3556, %v3555
      %v3561 = vsel %vm1913, %v3534, %v3557
      %v3562 = vsel %vm1920, %v3535, %v3558
      %3565 = vrot.lane.b32.xlu0 %v3561, 126
      %v3566 = vpop.permute.xlu0 %3565
      %3567 = vrot.lane.b32.xlu0 %v3562, 126
      %v3568 = vpop.permute.xlu0 %3567
      %v3569 = vrot.slane %v3566, 4
      %v3570 = vrot.slane %v3568, 4
      %v3571 = vsel %vm1864, %v3569, %v3570
      %v3572 = vsel %vm773, %v3566, %v3571
      %3575 = vst.msk [vmem:[#allocation2] sm:$0xff] %vm2023, %v3572
      %3576 = vst.msk [vmem:[#allocation2 + $0x8] sm:$0xf] %vm2025, %v3568
      %v3577 = vld [vmem:[#allocation2] sm:$0xf]
      %3579 = vrot.lane.b32.xlu0 %v3577, 92
      %v3580 = vpop.permute.xlu0 %3579
      %3582 = vst.msk [vmem:[#allocation2] sm:$0xf] %vm2053, %v3580
      %v3583 = vld [vmem:[#allocation2 + $0x8] sm:$0xf]
      %3585 = vrot.lane.b32.xlu0 %v3583, 36
      %v3586 = vpop.permute.xlu0 %3585
      %3588 = vst.msk [vmem:[#allocation2 + $0x8] sm:$0xf] %vm2078, %v3586
      %v3589 = vld [vmem:[#allocation2] sm:$0xff]
      %v3590 = vld [vmem:[#allocation2 + $0x8] sm:$0xf]
      %v3591 = vld [vmem:[%s7] sm:$0xf]
      %s3592 = scalar_lea.vmem %s7, 4
      %v3593 = vld [vmem:[%s3592] sm:$0xf]
      %v3596 = vunpack.c.l.b16 %v3589
      %v3597 = vunpack.c.h.b16 %v3589
      %v3598 = vunpack.c.l.b16 %v3590
      %v3599 = vpack.c.b16 %v3596, %v3596
      %v3600 = vpack.c.b16 %v3597, %v3597
      %v3601 = vpack.c.b16 %v3598, %v3598
      %3602 = vrot.lane.b32.xlu0 %v3599, 127
      %v3603 = vpop.permute.xlu0 %3602
      %3604 = vrot.lane.b32.xlu0 %v3600, 127
      %v3605 = vpop.permute.xlu0 %3604
      %3606 = vrot.lane.b32.xlu0 %v3601, 127
      %v3607 = vpop.permute.xlu0 %3606
      %v3608 = vsel %vm564, %v3603, %v3605
      %v3609 = vsel %vm564, %v3605, %v3607
      %vm3610 = vcmask 64512
      %v3612 = vsel %vm3610, %v3593, 0
      %vm3614 = vcmask 1043456
      %v3616 = vsel %vm3614, %v3608, 0
      %v3619 = vsel %vm3614, %v3609, 0
      %v3622 = vsel %vm3614, %v3607, 0
      %3624 = vmatpush.bf16.msra.mxu0 0
      %3625 = vmatpush.bf16.msra.mxu0 0
      %3626 = vmatpush.bf16.msra.mxu0 0
      %3627 = vmatpush.bf16.msra.mxu0 0
      %3628 = vmatpush.bf16.msra.mxu0 0
      %3629 = vmatpush.bf16.msra.mxu0 0
      %3630 = vmatpush.bf16.msra.mxu0 0
      %3631 = vmatpush.bf16.msra.mxu0 %v3616
      %3632 = vmatmul.bf16.gmra.mxu0 %v3612
      %v3633 = vpop.f32.mrf.mxu0
      %v3634 = vadd.f32 0.0, %v3633
      %v3635 = vpop.f32.mrf.mxu0
      %3636 = vdwg.mxu0
      %3637 = vmatpush.bf16.msra.mxu0 0
      %3638 = vmatpush.bf16.msra.mxu0 0
      %3639 = vmatpush.bf16.msra.mxu0 0
      %3640 = vmatpush.bf16.msra.mxu0 0
      %3641 = vmatpush.bf16.msra.mxu0 0
      %3642 = vmatpush.bf16.msra.mxu0 0
      %3643 = vmatpush.bf16.msra.mxu0 0
      %3644 = vmatpush.bf16.msra.mxu0 %v3619
      %3645 = vmatmul.bf16.gmra.mxu0 %v3612
      %v3646 = vpop.f32.mrf.mxu0
      %v3647 = vadd.f32 0.0, %v3646
      %v3648 = vpop.f32.mrf.mxu0
      %3649 = vdwg.mxu0
      %3650 = vmatpush.bf16.msra.mxu0 0
      %3651 = vmatpush.bf16.msra.mxu0 0
      %3652 = vmatpush.bf16.msra.mxu0 0
      %3653 = vmatpush.bf16.msra.mxu0 0
      %3654 = vmatpush.bf16.msra.mxu0 0
      %3655 = vmatpush.bf16.msra.mxu0 0
      %3656 = vmatpush.bf16.msra.mxu0 0
      %3657 = vmatpush.bf16.msra.mxu0 %v3622
      %3658 = vmatmul.bf16.gmra.mxu0 %v3612
      %v3659 = vpop.f32.mrf.mxu0
      %v3660 = vadd.f32 0.0, %v3659
      %v3661 = vpop.f32.mrf.mxu0
      %3662 = vdwg.mxu0
      %v3664 = vsel %vm3610, %v3591, 0
      %v3667 = vsel %vm3614, %v3599, 0
      %v3670 = vsel %vm3614, %v3600, 0
      %v3673 = vsel %vm3614, %v3601, 0
      %3675 = vmatpush.bf16.msra.mxu0 0
      %3676 = vmatpush.bf16.msra.mxu0 0
      %3677 = vmatpush.bf16.msra.mxu0 0
      %3678 = vmatpush.bf16.msra.mxu0 0
      %3679 = vmatpush.bf16.msra.mxu0 0
      %3680 = vmatpush.bf16.msra.mxu0 0
      %3681 = vmatpush.bf16.msra.mxu0 0
      %3682 = vmatpush.bf16.msra.mxu0 %v3667
      %3683 = vmatmul.bf16.gmra.mxu0 %v3664
      %v3684 = vpop.f32.mrf.mxu0
      %v3685 = vadd.f32 %v3634, %v3684
      %v3686 = vpop.f32.mrf.mxu0
      %3687 = vdwg.mxu0
      %3688 = vmatpush.bf16.msra.mxu0 0
      %3689 = vmatpush.bf16.msra.mxu0 0
      %3690 = vmatpush.bf16.msra.mxu0 0
      %3691 = vmatpush.bf16.msra.mxu0 0
      %3692 = vmatpush.bf16.msra.mxu0 0
      %3693 = vmatpush.bf16.msra.mxu0 0
      %3694 = vmatpush.bf16.msra.mxu0 0
      %3695 = vmatpush.bf16.msra.mxu0 %v3670
      %3696 = vmatmul.bf16.gmra.mxu0 %v3664
      %v3697 = vpop.f32.mrf.mxu0
      %v3698 = vadd.f32 %v3647, %v3697
      %v3699 = vpop.f32.mrf.mxu0
      %3700 = vdwg.mxu0
      %3701 = vmatpush.bf16.msra.mxu0 0
      %3702 = vmatpush.bf16.msra.mxu0 0
      %3703 = vmatpush.bf16.msra.mxu0 0
      %3704 = vmatpush.bf16.msra.mxu0 0
      %3705 = vmatpush.bf16.msra.mxu0 0
      %3706 = vmatpush.bf16.msra.mxu0 0
      %3707 = vmatpush.bf16.msra.mxu0 0
      %3708 = vmatpush.bf16.msra.mxu0 %v3673
      %3709 = vmatmul.bf16.gmra.mxu0 %v3664
      %v3710 = vpop.f32.mrf.mxu0
      %v3711 = vadd.f32 %v3660, %v3710
      %v3712 = vpop.f32.mrf.mxu0
      %3713 = vdwg.mxu0
      %s3714 = scalar_lea.vmem %s7, 8
      %v3715 = vld [vmem:[%s3714] sm:$0xf]
      %3716 = vrot.lane.b32.xlu0 %v3599, 126
      %v3717 = vpop.permute.xlu0 %3716
      %3718 = vrot.lane.b32.xlu0 %v3600, 126
      %v3719 = vpop.permute.xlu0 %3718
      %3720 = vrot.lane.b32.xlu0 %v3601, 126
      %v3721 = vpop.permute.xlu0 %3720
      %v3722 = vsel %vm773, %v3717, %v3719
      %v3723 = vsel %vm773, %v3719, %v3721
      %v3725 = vsel %vm3610, %v3715, 0
      %v3728 = vsel %vm3614, %v3722, 0
      %v3731 = vsel %vm3614, %v3723, 0
      %v3734 = vsel %vm3614, %v3721, 0
      %3736 = vmatpush.bf16.msra.mxu0 0
      %3737 = vmatpush.bf16.msra.mxu0 0
      %3738 = vmatpush.bf16.msra.mxu0 0
      %3739 = vmatpush.bf16.msra.mxu0 0
      %3740 = vmatpush.bf16.msra.mxu0 0
      %3741 = vmatpush.bf16.msra.mxu0 0
      %3742 = vmatpush.bf16.msra.mxu0 0
      %3743 = vmatpush.bf16.msra.mxu0 %v3728
      %3744 = vmatmul.bf16.gmra.mxu0 %v3725
      %v3745 = vpop.f32.mrf.mxu0
      %v3746 = vadd.f32 0.0, %v3745
      %v3747 = vpop.f32.mrf.mxu0
      %3748 = vdwg.mxu0
      %3749 = vmatpush.bf16.msra.mxu0 0
      %3750 = vmatpush.bf16.msra.mxu0 0
      %3751 = vmatpush.bf16.msra.mxu0 0
      %3752 = vmatpush.bf16.msra.mxu0 0
      %3753 = vmatpush.bf16.msra.mxu0 0
      %3754 = vmatpush.bf16.msra.mxu0 0
      %3755 = vmatpush.bf16.msra.mxu0 0
      %3756 = vmatpush.bf16.msra.mxu0 %v3731
      %3757 = vmatmul.bf16.gmra.mxu0 %v3725
      %v3758 = vpop.f32.mrf.mxu0
      %v3759 = vadd.f32 0.0, %v3758
      %v3760 = vpop.f32.mrf.mxu0
      %3761 = vdwg.mxu0
      %3762 = vmatpush.bf16.msra.mxu0 0
      %3763 = vmatpush.bf16.msra.mxu0 0
      %3764 = vmatpush.bf16.msra.mxu0 0
      %3765 = vmatpush.bf16.msra.mxu0 0
      %3766 = vmatpush.bf16.msra.mxu0 0
      %3767 = vmatpush.bf16.msra.mxu0 0
      %3768 = vmatpush.bf16.msra.mxu0 0
      %3769 = vmatpush.bf16.msra.mxu0 %v3734
      %3770 = vmatmul.bf16.gmra.mxu0 %v3725
      %v3771 = vpop.f32.mrf.mxu0
      %v3772 = vadd.f32 0.0, %v3771
      %v3773 = vpop.f32.mrf.mxu0
      %3774 = vdwg.mxu0
      %v3775 = vadd.f32 %v3685, %v3746
      %v3776 = vadd.f32 %v3698, %v3759
      %v3777 = vadd.f32 %v3711, %v3772
      %s3778 = scalar_lea.vmem %s7, 12
      %v3779 = vld [vmem:[%s3778] sm:$0xf]
      %3780 = vrot.lane.b32.xlu0 %v3599, 110
      %v3781 = vpop.permute.xlu0 %3780
      %3782 = vrot.lane.b32.xlu0 %v3600, 110
      %v3783 = vpop.permute.xlu0 %3782
      %3784 = vrot.lane.b32.xlu0 %v3601, 110
      %v3785 = vpop.permute.xlu0 %3784
      %v3786 = vsel %vm908, %v3781, %v3783
      %v3787 = vsel %vm908, %v3783, %v3785
      %v3789 = vsel %vm3610, %v3779, 0
      %v3792 = vsel %vm3614, %v3786, 0
      %v3795 = vsel %vm3614, %v3787, 0
      %v3798 = vsel %vm3614, %v3785, 0
      %3800 = vmatpush.bf16.msra.mxu0 0
      %3801 = vmatpush.bf16.msra.mxu0 0
      %3802 = vmatpush.bf16.msra.mxu0 0
      %3803 = vmatpush.bf16.msra.mxu0 0
      %3804 = vmatpush.bf16.msra.mxu0 0
      %3805 = vmatpush.bf16.msra.mxu0 0
      %3806 = vmatpush.bf16.msra.mxu0 0
      %3807 = vmatpush.bf16.msra.mxu0 %v3792
      %3808 = vmatmul.bf16.gmra.mxu0 %v3789
      %v3809 = vpop.f32.mrf.mxu0
      %v3810 = vadd.f32 0.0, %v3809
      %v3811 = vpop.f32.mrf.mxu0
      %3812 = vdwg.mxu0
      %3813 = vmatpush.bf16.msra.mxu0 0
      %3814 = vmatpush.bf16.msra.mxu0 0
      %3815 = vmatpush.bf16.msra.mxu0 0
      %3816 = vmatpush.bf16.msra.mxu0 0
      %3817 = vmatpush.bf16.msra.mxu0 0
      %3818 = vmatpush.bf16.msra.mxu0 0
      %3819 = vmatpush.bf16.msra.mxu0 0
      %3820 = vmatpush.bf16.msra.mxu0 %v3795
      %3821 = vmatmul.bf16.gmra.mxu0 %v3789
      %v3822 = vpop.f32.mrf.mxu0
      %v3823 = vadd.f32 0.0, %v3822
      %v3824 = vpop.f32.mrf.mxu0
      %3825 = vdwg.mxu0
      %3826 = vmatpush.bf16.msra.mxu0 0
      %3827 = vmatpush.bf16.msra.mxu0 0
      %3828 = vmatpush.bf16.msra.mxu0 0
      %3829 = vmatpush.bf16.msra.mxu0 0
      %3830 = vmatpush.bf16.msra.mxu0 0
      %3831 = vmatpush.bf16.msra.mxu0 0
      %3832 = vmatpush.bf16.msra.mxu0 0
      %3833 = vmatpush.bf16.msra.mxu0 %v3798
      %3834 = vmatmul.bf16.gmra.mxu0 %v3789
      %v3835 = vpop.f32.mrf.mxu0
      %v3836 = vadd.f32 0.0, %v3835
      %v3837 = vpop.f32.mrf.mxu0
      %3838 = vdwg.mxu0
      %v3839 = vadd.f32 %v3775, %v3810
      %v3840 = vadd.f32 %v3776, %v3823
      %v3841 = vadd.f32 %v3777, %v3836
      %s3842 = scalar_lea.vmem %s7, 16
      %v3843 = vld [vmem:[%s3842] sm:$0xf]
      %3844 = vrot.lane.b32.xlu0 %v3599, 109
      %v3845 = vpop.permute.xlu0 %3844
      %3846 = vrot.lane.b32.xlu0 %v3600, 109
      %v3847 = vpop.permute.xlu0 %3846
      %3848 = vrot.lane.b32.xlu0 %v3601, 109
      %v3849 = vpop.permute.xlu0 %3848
      %v3850 = vsel %vm1043, %v3845, %v3847
      %v3851 = vsel %vm1043, %v3847, %v3849
      %v3853 = vsel %vm3610, %v3843, 0
      %v3856 = vsel %vm3614, %v3850, 0
      %v3859 = vsel %vm3614, %v3851, 0
      %v3862 = vsel %vm3614, %v3849, 0
      %3864 = vmatpush.bf16.msra.mxu0 0
      %3865 = vmatpush.bf16.msra.mxu0 0
      %3866 = vmatpush.bf16.msra.mxu0 0
      %3867 = vmatpush.bf16.msra.mxu0 0
      %3868 = vmatpush.bf16.msra.mxu0 0
      %3869 = vmatpush.bf16.msra.mxu0 0
      %3870 = vmatpush.bf16.msra.mxu0 0
      %3871 = vmatpush.bf16.msra.mxu0 %v3856
      %3872 = vmatmul.bf16.gmra.mxu0 %v3853
      %v3873 = vpop.f32.mrf.mxu0
      %v3874 = vadd.f32 0.0, %v3873
      %v3875 = vpop.f32.mrf.mxu0
      %3876 = vdwg.mxu0
      %3877 = vmatpush.bf16.msra.mxu0 0
      %3878 = vmatpush.bf16.msra.mxu0 0
      %3879 = vmatpush.bf16.msra.mxu0 0
      %3880 = vmatpush.bf16.msra.mxu0 0
      %3881 = vmatpush.bf16.msra.mxu0 0
      %3882 = vmatpush.bf16.msra.mxu0 0
      %3883 = vmatpush.bf16.msra.mxu0 0
      %3884 = vmatpush.bf16.msra.mxu0 %v3859
      %3885 = vmatmul.bf16.gmra.mxu0 %v3853
      %v3886 = vpop.f32.mrf.mxu0
      %v3887 = vadd.f32 0.0, %v3886
      %v3888 = vpop.f32.mrf.mxu0
      %3889 = vdwg.mxu0
      %3890 = vmatpush.bf16.msra.mxu0 0
      %3891 = vmatpush.bf16.msra.mxu0 0
      %3892 = vmatpush.bf16.msra.mxu0 0
      %3893 = vmatpush.bf16.msra.mxu0 0
      %3894 = vmatpush.bf16.msra.mxu0 0
      %3895 = vmatpush.bf16.msra.mxu0 0
      %3896 = vmatpush.bf16.msra.mxu0 0
      %3897 = vmatpush.bf16.msra.mxu0 %v3862
      %3898 = vmatmul.bf16.gmra.mxu0 %v3853
      %v3899 = vpop.f32.mrf.mxu0
      %v3900 = vadd.f32 0.0, %v3899
      %v3901 = vpop.f32.mrf.mxu0
      %3902 = vdwg.mxu0
      %v3903 = vadd.f32 %v3839, %v3874
      %v3904 = vadd.f32 %v3840, %v3887
      %v3905 = vadd.f32 %v3841, %v3900
      %s3906 = scalar_lea.vmem %s7, 20
      %v3907 = vld [vmem:[%s3906] sm:$0xf]
      %3908 = vrot.lane.b32.xlu0 %v3599, 108
      %v3909 = vpop.permute.xlu0 %3908
      %3910 = vrot.lane.b32.xlu0 %v3600, 108
      %v3911 = vpop.permute.xlu0 %3910
      %3912 = vrot.lane.b32.xlu0 %v3601, 108
      %v3913 = vpop.permute.xlu0 %3912
      %v3914 = vsel %vm1178, %v3909, %v3911
      %v3915 = vsel %vm1178, %v3911, %v3913
      %v3917 = vsel %vm3610, %v3907, 0
      %v3920 = vsel %vm3614, %v3914, 0
      %v3923 = vsel %vm3614, %v3915, 0
      %v3926 = vsel %vm3614, %v3913, 0
      %3928 = vmatpush.bf16.msra.mxu0 0
      %3929 = vmatpush.bf16.msra.mxu0 0
      %3930 = vmatpush.bf16.msra.mxu0 0
      %3931 = vmatpush.bf16.msra.mxu0 0
      %3932 = vmatpush.bf16.msra.mxu0 0
      %3933 = vmatpush.bf16.msra.mxu0 0
      %3934 = vmatpush.bf16.msra.mxu0 0
      %3935 = vmatpush.bf16.msra.mxu0 %v3920
      %3936 = vmatmul.bf16.gmra.mxu0 %v3917
      %v3937 = vpop.f32.mrf.mxu0
      %v3938 = vadd.f32 0.0, %v3937
      %v3939 = vpop.f32.mrf.mxu0
      %3940 = vdwg.mxu0
      %3941 = vmatpush.bf16.msra.mxu0 0
      %3942 = vmatpush.bf16.msra.mxu0 0
      %3943 = vmatpush.bf16.msra.mxu0 0
      %3944 = vmatpush.bf16.msra.mxu0 0
      %3945 = vmatpush.bf16.msra.mxu0 0
      %3946 = vmatpush.bf16.msra.mxu0 0
      %3947 = vmatpush.bf16.msra.mxu0 0
      %3948 = vmatpush.bf16.msra.mxu0 %v3923
      %3949 = vmatmul.bf16.gmra.mxu0 %v3917
      %v3950 = vpop.f32.mrf.mxu0
      %v3951 = vadd.f32 0.0, %v3950
      %v3952 = vpop.f32.mrf.mxu0
      %3953 = vdwg.mxu0
      %3954 = vmatpush.bf16.msra.mxu0 0
      %3955 = vmatpush.bf16.msra.mxu0 0
      %3956 = vmatpush.bf16.msra.mxu0 0
      %3957 = vmatpush.bf16.msra.mxu0 0
      %3958 = vmatpush.bf16.msra.mxu0 0
      %3959 = vmatpush.bf16.msra.mxu0 0
      %3960 = vmatpush.bf16.msra.mxu0 0
      %3961 = vmatpush.bf16.msra.mxu0 %v3926
      %3962 = vmatmul.bf16.gmra.mxu0 %v3917
      %v3963 = vpop.f32.mrf.mxu0
      %v3964 = vadd.f32 0.0, %v3963
      %v3965 = vpop.f32.mrf.mxu0
      %3966 = vdwg.mxu0
      %v3967 = vadd.f32 %v3903, %v3938
      %v3968 = vadd.f32 %v3904, %v3951
      %v3969 = vadd.f32 %v3905, %v3964
      %s3970 = scalar_lea.vmem %s7, 24
      %v3971 = vld [vmem:[%s3970] sm:$0xf]
      %3972 = vrot.lane.b32.xlu0 %v3599, 92
      %v3973 = vpop.permute.xlu0 %3972
      %3974 = vrot.lane.b32.xlu0 %v3600, 92
      %v3975 = vpop.permute.xlu0 %3974
      %3976 = vrot.lane.b32.xlu0 %v3601, 92
      %v3977 = vpop.permute.xlu0 %3976
      %v3978 = vsel %vm1313, %v3973, %v3975
      %v3979 = vsel %vm1313, %v3975, %v3977
      %v3981 = vsel %vm3610, %v3971, 0
      %v3984 = vsel %vm3614, %v3978, 0
      %v3987 = vsel %vm3614, %v3979, 0
      %v3990 = vsel %vm3614, %v3977, 0
      %3992 = vmatpush.bf16.msra.mxu0 0
      %3993 = vmatpush.bf16.msra.mxu0 0
      %3994 = vmatpush.bf16.msra.mxu0 0
      %3995 = vmatpush.bf16.msra.mxu0 0
      %3996 = vmatpush.bf16.msra.mxu0 0
      %3997 = vmatpush.bf16.msra.mxu0 0
      %3998 = vmatpush.bf16.msra.mxu0 0
      %3999 = vmatpush.bf16.msra.mxu0 %v3984
      %4000 = vmatmul.bf16.gmra.mxu0 %v3981
      %v4001 = vpop.f32.mrf.mxu0
      %v4002 = vadd.f32 0.0, %v4001
      %v4003 = vpop.f32.mrf.mxu0
      %4004 = vdwg.mxu0
      %4005 = vmatpush.bf16.msra.mxu0 0
      %4006 = vmatpush.bf16.msra.mxu0 0
      %4007 = vmatpush.bf16.msra.mxu0 0
      %4008 = vmatpush.bf16.msra.mxu0 0
      %4009 = vmatpush.bf16.msra.mxu0 0
      %4010 = vmatpush.bf16.msra.mxu0 0
      %4011 = vmatpush.bf16.msra.mxu0 0
      %4012 = vmatpush.bf16.msra.mxu0 %v3987
      %4013 = vmatmul.bf16.gmra.mxu0 %v3981
      %v4014 = vpop.f32.mrf.mxu0
      %v4015 = vadd.f32 0.0, %v4014
      %v4016 = vpop.f32.mrf.mxu0
      %4017 = vdwg.mxu0
      %4018 = vmatpush.bf16.msra.mxu0 0
      %4019 = vmatpush.bf16.msra.mxu0 0
      %4020 = vmatpush.bf16.msra.mxu0 0
      %4021 = vmatpush.bf16.msra.mxu0 0
      %4022 = vmatpush.bf16.msra.mxu0 0
      %4023 = vmatpush.bf16.msra.mxu0 0
      %4024 = vmatpush.bf16.msra.mxu0 0
      %4025 = vmatpush.bf16.msra.mxu0 %v3990
      %4026 = vmatmul.bf16.gmra.mxu0 %v3981
      %v4027 = vpop.f32.mrf.mxu0
      %v4028 = vadd.f32 0.0, %v4027
      %v4029 = vpop.f32.mrf.mxu0
      %4030 = vdwg.mxu0
      %v4031 = vadd.f32 %v3967, %v4002
      %v4032 = vadd.f32 %v3968, %v4015
      %v4033 = vadd.f32 %v3969, %v4028
      %s4034 = scalar_lea.vmem %s7, 28
      %v4035 = vld [vmem:[%s4034] sm:$0xf]
      %4036 = vrot.lane.b32.xlu0 %v3599, 91
      %v4037 = vpop.permute.xlu0 %4036
      %4038 = vrot.lane.b32.xlu0 %v3600, 91
      %v4039 = vpop.permute.xlu0 %4038
      %4040 = vrot.lane.b32.xlu0 %v3601, 91
      %v4041 = vpop.permute.xlu0 %4040
      %v4042 = vsel %vm1448, %v4037, %v4039
      %v4043 = vsel %vm1448, %v4039, %v4041
      %v4045 = vsel %vm3610, %v4035, 0
      %v4048 = vsel %vm3614, %v4042, 0
      %v4051 = vsel %vm3614, %v4043, 0
      %v4054 = vsel %vm3614, %v4041, 0
      %4056 = vmatpush.bf16.msra.mxu0 0
      %4057 = vmatpush.bf16.msra.mxu0 0
      %4058 = vmatpush.bf16.msra.mxu0 0
      %4059 = vmatpush.bf16.msra.mxu0 0
      %4060 = vmatpush.bf16.msra.mxu0 0
      %4061 = vmatpush.bf16.msra.mxu0 0
      %4062 = vmatpush.bf16.msra.mxu0 0
      %4063 = vmatpush.bf16.msra.mxu0 %v4048
      %4064 = vmatmul.bf16.gmra.mxu0 %v4045
      %v4065 = vpop.f32.mrf.mxu0
      %v4066 = vadd.f32 0.0, %v4065
      %v4067 = vpop.f32.mrf.mxu0
      %4068 = vdwg.mxu0
      %4069 = vmatpush.bf16.msra.mxu0 0
      %4070 = vmatpush.bf16.msra.mxu0 0
      %4071 = vmatpush.bf16.msra.mxu0 0
      %4072 = vmatpush.bf16.msra.mxu0 0
      %4073 = vmatpush.bf16.msra.mxu0 0
      %4074 = vmatpush.bf16.msra.mxu0 0
      %4075 = vmatpush.bf16.msra.mxu0 0
      %4076 = vmatpush.bf16.msra.mxu0 %v4051
      %4077 = vmatmul.bf16.gmra.mxu0 %v4045
      %v4078 = vpop.f32.mrf.mxu0
      %v4079 = vadd.f32 0.0, %v4078
      %v4080 = vpop.f32.mrf.mxu0
      %4081 = vdwg.mxu0
      %4082 = vmatpush.bf16.msra.mxu0 0
      %4083 = vmatpush.bf16.msra.mxu0 0
      %4084 = vmatpush.bf16.msra.mxu0 0
      %4085 = vmatpush.bf16.msra.mxu0 0
      %4086 = vmatpush.bf16.msra.mxu0 0
      %4087 = vmatpush.bf16.msra.mxu0 0
      %4088 = vmatpush.bf16.msra.mxu0 0
      %4089 = vmatpush.bf16.msra.mxu0 %v4054
      %4090 = vmatmul.bf16.gmra.mxu0 %v4045
      %v4091 = vpop.f32.mrf.mxu0
      %v4092 = vadd.f32 0.0, %v4091
      %v4093 = vpop.f32.mrf.mxu0
      %4094 = vdwg.mxu0
      %v4095 = vadd.f32 %v4031, %v4066
      %v4096 = vadd.f32 %v4032, %v4079
      %v4097 = vadd.f32 %v4033, %v4092
      %s4098 = scalar_lea.vmem %s7, 32
      %v4099 = vld [vmem:[%s4098] sm:$0xf]
      %4100 = vrot.lane.b32.xlu0 %v3599, 90
      %v4101 = vpop.permute.xlu0 %4100
      %4102 = vrot.lane.b32.xlu0 %v3600, 90
      %v4103 = vpop.permute.xlu0 %4102
      %4104 = vrot.lane.b32.xlu0 %v3601, 90
      %v4105 = vpop.permute.xlu0 %4104
      %v4106 = vsel %vm1583, %v4101, %v4103
      %v4107 = vsel %vm1583, %v4103, %v4105
      %v4109 = vsel %vm3610, %v4099, 0
      %v4112 = vsel %vm3614, %v4106, 0
      %v4115 = vsel %vm3614, %v4107, 0
      %v4118 = vsel %vm3614, %v4105, 0
      %4120 = vmatpush.bf16.msra.mxu0 0
      %4121 = vmatpush.bf16.msra.mxu0 0
      %4122 = vmatpush.bf16.msra.mxu0 0
      %4123 = vmatpush.bf16.msra.mxu0 0
      %4124 = vmatpush.bf16.msra.mxu0 0
      %4125 = vmatpush.bf16.msra.mxu0 0
      %4126 = vmatpush.bf16.msra.mxu0 0
      %4127 = vmatpush.bf16.msra.mxu0 %v4112
      %4128 = vmatmul.bf16.gmra.mxu0 %v4109
      %v4129 = vpop.f32.mrf.mxu0
      %v4130 = vadd.f32 0.0, %v4129
      %v4131 = vpop.f32.mrf.mxu0
      %4132 = vdwg.mxu0
      %4133 = vmatpush.bf16.msra.mxu0 0
      %4134 = vmatpush.bf16.msra.mxu0 0
      %4135 = vmatpush.bf16.msra.mxu0 0
      %4136 = vmatpush.bf16.msra.mxu0 0
      %4137 = vmatpush.bf16.msra.mxu0 0
      %4138 = vmatpush.bf16.msra.mxu0 0
      %4139 = vmatpush.bf16.msra.mxu0 0
      %4140 = vmatpush.bf16.msra.mxu0 %v4115
      %4141 = vmatmul.bf16.gmra.mxu0 %v4109
      %v4142 = vpop.f32.mrf.mxu0
      %v4143 = vadd.f32 0.0, %v4142
      %v4144 = vpop.f32.mrf.mxu0
      %4145 = vdwg.mxu0
      %4146 = vmatpush.bf16.msra.mxu0 0
      %4147 = vmatpush.bf16.msra.mxu0 0
      %4148 = vmatpush.bf16.msra.mxu0 0
      %4149 = vmatpush.bf16.msra.mxu0 0
      %4150 = vmatpush.bf16.msra.mxu0 0
      %4151 = vmatpush.bf16.msra.mxu0 0
      %4152 = vmatpush.bf16.msra.mxu0 0
      %4153 = vmatpush.bf16.msra.mxu0 %v4118
      %4154 = vmatmul.bf16.gmra.mxu0 %v4109
      %v4155 = vpop.f32.mrf.mxu0
      %v4156 = vadd.f32 0.0, %v4155
      %v4157 = vpop.f32.mrf.mxu0
      %4158 = vdwg.mxu0
      %v4159 = vadd.f32 %v4095, %v4130
      %v4160 = vadd.f32 %v4096, %v4143
      %v4161 = vadd.f32 %v4097, %v4156
      %v4162 = vld [vmem:[%s8] sm:$0xff]
      %4164 = vset.pattern.permute.xlu0 0
      %4165 = vperm.xlu0 %4164, %v4162
      %v4166 = vpop.permute.xlu0 %4165
      %v4168 = vadd.f32 %v4159, %v4166
      %v4169 = vadd.f32 %v4160, %v4166
      %v4170 = vadd.f32 %v4161, %v4166
      %v4171 = vmax.f32 %v4168, 0.0
      %v4172 = vmax.f32 %v4169, 0.0
      %v4173 = vmax.f32 %v4170, 0.0
      %4174 = vst [vmem:[%s332] sm:$0xff] %v4171
      %4175 = vst [vmem:[%s332 + $0x8] sm:$0xff] %v4172
      %4176 = vst.msk [vmem:[%s332 + $0x10] sm:$0xff] %vm2149, %v4173
      %p4177 = scmp.lt.s32.totalorder %s20, 1
      %s4178 = scalar_select %p4177, %s20, 1
      %s4179 = smul.addr %s4178, 3
      %s4180 = smul.addr %s4179, 8
      %s4181 = scalar_lea.vmem %s9, %s4180
      // Predicated region
      $region57: #{reconstruction_layer.1} parent=55 // pred_check
        %p4182 = pneg %p232
      $region58: #{reconstruction_layer.1} parent=55 // pred_check_branch
        %4184 = sbr.rel (%p4182) target = $region60
      $region59: #{reconstruction_layer.1} parent=55 // pred_region
        _
      $region60: #{reconstruction_layer.1} parent=55 // pred_fallthru
        _
    $region56: #{reconstruction_layer.1} parent=5 // pred_fallthru
      _
    %p4185 = scmp.le.s32.totalorder 2, %s15
    // Predicated region
    $region61: #{reconstruction_layer.1} parent=5 // pred_check
      %p4186 = pneg %p4185
    $region62: #{reconstruction_layer.1} parent=5 // pred_check_branch
      %4188 = sbr.rel (%p4186) target = $region64
    $region63: #{reconstruction_layer.1} parent=5 // pred_region
      %s4189 = ssub.s32 %s15, 2
      // Predicated region
      $region65: #{reconstruction_layer.1} parent=63 // pred_check
        %p4190 = pneg %p238
      $region66: #{reconstruction_layer.1} parent=63 // pred_check_branch
        %4192 = sbr.rel (%p4190) target = $region68
      $region67: #{reconstruction_layer.1} parent=63 // pred_region
        %p4193 = scmp.lt.s32.totalorder %s21, 1
        %s4194 = scalar_select %p4193, %s21, 1
        %s4195 = smul.addr %s4194, 3
        %s4196 = smul.addr %s4195, 8
        %s4197 = scalar_lea.vmem %s9, %s4196
      $region68: #{reconstruction_layer.1} parent=63 // pred_fallthru
        _
    $region64: #{reconstruction_layer.1} parent=5 // pred_fallthru
      _
  $region6: #{reconstruction_layer.1} parent=0 // loop_footer
    %s19 = sadd.s32 1, %s15
  $region7: #{reconstruction_layer.1} parent=0 // loop_footer_branch
    %14 = sbr.rel target = $region3
  $region8: #{reconstruction_layer.1} parent=0 // loop_exit
    _

</llo_original>
